<compile_context>
chip_gen: v7x
topology: tpu7x:2x2x1
jax: 0.10.0
libtpu: 0.0.40
codegen_flags: <defaults>
</compile_context>

<pallas_src>
import math
import functools

import jax
import jax.numpy as jnp
from jax import lax
from jax.experimental import pallas as pl
from jax.experimental.pallas import tpu as pltpu

LN_EPS = 1e-5          # PyTorch nn.LayerNorm default
NEG_INF = -1e30        # large finite negative -> NaN-safe causal masking


def _vmem_limit_bytes():
    # 75% of reported VMEM leaves headroom for Mosaic internal scratch.
    # (v5e/v6e: 128 MiB -> 96 MiB; v7x: 64 MiB/TC -> 48 MiB.)
    try:
        cap = int(pltpu.get_tpu_info().vmem_capacity_bytes)
    except Exception:
        cap = 64 * 1024 * 1024
    return max(32 * 1024 * 1024, (cap * 3) // 4)


# ----------------------------- in-kernel helpers (fp32) -----------------------------
def _layernorm(x, w, b):
    mean = jnp.mean(x, axis=-1, keepdims=True)
    var = jnp.mean((x - mean) ** 2, axis=-1, keepdims=True)
    return (x - mean) * lax.rsqrt(var + LN_EPS) * w + b


def _new_gelu(x):
    c = math.sqrt(2.0 / math.pi)
    return 0.5 * x * (1.0 + jnp.tanh(c * (x + 0.044715 * x * x * x)))


# ----------------------------- fused all-layers transformer kernel -----------------------------
def make_blocks_kernel(n_head):
    def kernel(x_ref,
               ln1_w_ref, ln1_b_ref,
               w_attn_ref, b_attn_ref,
               w_proj_ref, b_proj_ref,
               ln2_w_ref, ln2_b_ref,
               w_fc_ref, b_fc_ref,
               w_fcp_ref, b_fcp_ref,
               o_ref):
        l = pl.program_id(1)

        # o_ref's block index only depends on b, so it stays resident in VMEM
        # across the whole L axis -> use it as the residual carrier.
        @pl.when(l == 0)
        def _():
            o_ref[...] = x_ref[...]

        x = o_ref[0]                               # (T, C) fp32 residual
        T, C = x.shape
        H = n_head
        D = C // H

        # ---------------- attention branch ----------------
        h1 = _layernorm(x, ln1_w_ref[...], ln1_b_ref[...])
        # One lane-dense fused QKV matmul (bf16 MXU inputs, fp32 accumulation).
        qkv = jnp.dot(h1.astype(jnp.bfloat16), w_attn_ref[...],
                      preferred_element_type=jnp.float32) + b_attn_ref[...]
        # NOTE: 1/sqrt(D) is pre-folded into the Q weights/bias on the host.

        rows = lax.broadcasted_iota(jnp.int32, (T, T), 0)
        cols = lax.broadcasted_iota(jnp.int32, (T, T), 1)
        causal = cols <= rows

        heads_y = []
        for h in range(H):                         # static, fully unrolled (H == 8)
            qh = qkv[:, h * D:(h + 1) * D].astype(jnp.bfloat16)
            kh = qkv[:, C + h * D:C + (h + 1) * D].astype(jnp.bfloat16)
            vh = qkv[:, 2 * C + h * D:2 * C + (h + 1) * D].astype(jnp.bfloat16)

            att = lax.dot_general(qh, kh, (((1,), (1,)), ((), ())),
                                  preferred_element_type=jnp.float32)    # (T, T)
            att = jnp.where(causal, att, NEG_INF)
            att = att - jnp.max(att, axis=-1, keepdims=True)
            p = jnp.exp(att)
            p = p * pl.reciprocal(jnp.sum(p, axis=-1, keepdims=True), approx=True)
            # attn_dropout: identity (eval mode)
            heads_y.append(jnp.dot(p.astype(jnp.bfloat16), vh,
                                   preferred_element_type=jnp.float32))  # (T, D)

        y = jnp.concatenate(heads_y, axis=-1)      # (T, C) head-merge
        attn_out = jnp.dot(y.astype(jnp.bfloat16), w_proj_ref[...],
                           preferred_element_type=jnp.float32) + b_proj_ref[...]
        # resid_dropout: identity (eval mode)
        x = x + attn_out

        # ---------------- MLP branch ----------------
        h2 = _layernorm(x, ln2_w_ref[...], ln2_b_ref[...])
        hfc = jnp.dot(h2.astype(jnp.bfloat16), w_fc_ref[...],
                      preferred_element_type=jnp.float32) + b_fc_ref[...]
        # TODO(synk): on v6e/v7x the GELU/exp chain could run in bf16 (bf16 VPU/EUP);
        # kept fp32 for v5e compatibility and tighter numerics.
        hfc = _new_gelu(hfc)
        mlp = jnp.dot(hfc.astype(jnp.bfloat16), w_fcp_ref[...],
                      preferred_element_type=jnp.float32) + b_fcp_ref[...]
        # mlp dropout: identity (eval mode)
        o_ref[0] = (x + mlp).astype(o_ref.dtype)

    return kernel


# ----------------------------- final LayerNorm + lm_head kernel -----------------------------
def lm_head_kernel(x_ref, lnf_w_ref, lnf_b_ref, wlm_ref, o_ref):
    h = _layernorm(x_ref[0], lnf_w_ref[...], lnf_b_ref[...])
    o_ref[0] = jnp.dot(h.astype(jnp.bfloat16), wlm_ref[...],
                       preferred_element_type=jnp.float32).astype(o_ref.dtype)


# ----------------------------- wrappers -----------------------------
def _blocks_cost(B, L, T, C, H):
    flops = B * L * (24 * T * C * C + 4 * T * T * C)
    transcendentals = B * L * (H * T * T + 4 * T * C)
    bytes_accessed = (2 * B * T * C * 4                                   # x in/out
                      + L * (12 * C * C * 2                               # bf16 weights
                             + (3 * C + C + 4 * C + C) * 4                # biases
                             + 4 * C * 4))                                # LN params
    return pl.CostEstimate(flops=int(flops), transcendentals=int(transcendentals),
                           bytes_accessed=int(bytes_accessed))


def gpt_blocks(x, w, *, n_head):
    """All L transformer blocks in one pallas_call; grid=(B, L)."""
    B, T, C = x.shape
    L = w["w_attn"].shape[0]

    def wspec(a):
        zeros = (0,) * (a.ndim - 1)
        return pl.BlockSpec((None,) + a.shape[1:],
                            lambda b, l, _z=zeros: (l,) + _z)

    names = ["ln1_w", "ln1_b", "w_attn", "b_attn", "w_proj", "b_proj",
             "ln2_w", "ln2_b", "w_fc", "b_fc", "w_fcp", "b_fcp"]
    weights = [w[n] for n in names]

    in_specs = ([pl.BlockSpec((1, T, C), lambda b, l: (b, 0, 0))]
                + [wspec(a) for a in weights])
    out_spec = pl.BlockSpec((1, T, C), lambda b, l: (b, 0, 0))

    return pl.pallas_call(
        make_blocks_kernel(n_head),
        out_shape=jax.ShapeDtypeStruct((B, T, C), x.dtype),
        grid_spec=pltpu.PrefetchScalarGridSpec(
            num_scalar_prefetch=0, grid=(B, L),
            in_specs=in_specs, out_specs=out_spec),
        compiler_params=pltpu.CompilerParams(
            dimension_semantics=("parallel", "arbitrary"),
            vmem_limit_bytes=_vmem_limit_bytes()),
        cost_estimate=_blocks_cost(B, L, T, C, n_head),
    )(x, *weights)


def _vocab_tile(V):
    for t in (4096, 2048, 1024, 512, 256, 128):
        if V % t == 0:
            return t
    return V


def lm_head(x, lnf_w, lnf_b, wlm):
    B, T, C = x.shape
    V = wlm.shape[1]
    TV = _vocab_tile(V)
    in_specs = [pl.BlockSpec((1, T, C), lambda b, v: (b, 0, 0)),
                pl.BlockSpec((1, C), lambda b, v: (0, 0)),
                pl.BlockSpec((1, C), lambda b, v: (0, 0)),
                pl.BlockSpec((C, TV), lambda b, v: (0, v))]
    out_spec = pl.BlockSpec((1, T, TV), lambda b, v: (b, 0, v))
    return pl.pallas_call(
        lm_head_kernel,
        out_shape=jax.ShapeDtypeStruct((B, T, V), jnp.float32),
        grid_spec=pltpu.PrefetchScalarGridSpec(
            num_scalar_prefetch=0, grid=(B, V // TV),
            in_specs=in_specs, out_specs=out_spec),
        compiler_params=pltpu.CompilerParams(
            dimension_semantics=("parallel", "parallel"),
            vmem_limit_bytes=_vmem_limit_bytes()),
        cost_estimate=pl.CostEstimate(
            flops=int(2 * B * T * C * V), transcendentals=0,
            bytes_accessed=int(B * T * C * 4 + C * V * 2 + B * T * V * 4)),
    )(x, lnf_w, lnf_b, wlm)


def prepare_params(params, n_head):
    """One-time host-side repack: stack per-layer weights on a leading L axis,
    cast matmul weights to bf16, fold 1/sqrt(D) into the Q projection."""
    C = params["wte"].shape[1]
    D = C // n_head
    scale = 1.0 / math.sqrt(D)
    blocks = params["blocks"]

    def fold_q_w(w):   # (C, 3C): scale the Q columns
        return jnp.concatenate([w[:, :C] * scale, w[:, C:]], axis=1)

    def fold_q_b(b):   # (3C,)
        return jnp.concatenate([b[:C] * scale, b[C:]])

    block_w = {
        "ln1_w": jnp.stack([p["ln1_w"].reshape(1, C) for p in blocks]),
        "ln1_b": jnp.stack([p["ln1_b"].reshape(1, C) for p in blocks]),
        "w_attn": jnp.stack([fold_q_w(p["w_attn"]) for p in blocks]).astype(jnp.bfloat16),
        "b_attn": jnp.stack([fold_q_b(p["b_attn"]).reshape(1, 3 * C) for p in blocks]),
        "w_proj": jnp.stack([p["w_proj"] for p in blocks]).astype(jnp.bfloat16),
        "b_proj": jnp.stack([p["b_proj"].reshape(1, C) for p in blocks]),
        "ln2_w": jnp.stack([p["ln2_w"].reshape(1, C) for p in blocks]),
        "ln2_b": jnp.stack([p["ln2_b"].reshape(1, C) for p in blocks]),
        "w_fc": jnp.stack([p["w_fc"] for p in blocks]).astype(jnp.bfloat16),
        "b_fc": jnp.stack([p["b_fc"].reshape(1, 4 * C) for p in blocks]),
        "w_fcp": jnp.stack([p["w_fcp"] for p in blocks]).astype(jnp.bfloat16),
        "b_fcp": jnp.stack([p["b_fcp"].reshape(1, C) for p in blocks]),
    }
    return {
        "wte": params["wte"],
        "wpe": params["wpe"],
        "block_w": block_w,
        "lnf_w": params["lnf_w"].reshape(1, C),
        "lnf_b": params["lnf_b"].reshape(1, C),
        "w_lm": params["w_lm"].astype(jnp.bfloat16),
    }


def gpt_forward(idx, prepped, *, n_head):
    """Embeddings (JAX gather) -> one fused all-layers Pallas call -> ln_f+lm_head call."""
    B, T = idx.shape
    # TODO(synk): embedding gather (wte/wpe) stays in the JAX wrapper; fusing it would
    # need a scalar-prefetch DMA-gather Pallas kernel.
    x = jnp.take(prepped["wte"], idx, axis=0) + prepped["wpe"][None, :T, :]
    # drop: identity (eval mode)
    x = gpt_blocks(x, prepped["block_w"], n_head=n_head)
    return lm_head(x, prepped["lnf_w"], prepped["lnf_b"], prepped["w_lm"])


# ----------------------------- pure-JAX fp32 reference (mirrors PyTorch, eval mode) -----------------------------
def _ln_ref(x, w, b):
    mu = jnp.mean(x, axis=-1, keepdims=True)
    var = jnp.mean((x - mu) ** 2, axis=-1, keepdims=True)
    return (x - mu) / jnp.sqrt(var + LN_EPS) * w + b


def reference_block(x, p, *, n_head):
    B, T, C = x.shape
    D = C // n_head
    h = _ln_ref(x, p["ln1_w"], p["ln1_b"])
    qkv = h @ p["w_attn"] + p["b_attn"]
    q, k, v = jnp.split(qkv, 3, axis=-1)
    q = q.reshape(B, T, n_head, D).transpose(0, 2, 1, 3)
    k = k.reshape(B, T, n_head, D).transpose(0, 2, 1, 3)
    v = v.reshape(B, T, n_head, D).transpose(0, 2, 1, 3)
    att = (q @ k.transpose(0, 1, 3, 2)) / math.sqrt(D)
    mask = jnp.tril(jnp.ones((T, T), dtype=bool))
    att = jnp.where(mask[None, None], att, -jnp.inf)
    att = jax.nn.softmax(att, axis=-1)
    y = (att @ v).transpose(0, 2, 1, 3).reshape(B, T, C)
    x = x + y @ p["w_proj"] + p["b_proj"]
    h2 = _ln_ref(x, p["ln2_w"], p["ln2_b"])
    hfc = h2 @ p["w_fc"] + p["b_fc"]
    hfc = 0.5 * hfc * (1.0 + jnp.tanh(math.sqrt(2.0 / math.pi) * (hfc + 0.044715 * hfc ** 3)))
    return x + hfc @ p["w_fcp"] + p["b_fcp"]


def reference_gpt(idx, params, *, n_head):
    T = idx.shape[1]
    x = params["wte"][idx] + params["wpe"][:T][None]
    for p in params["blocks"]:
        x = reference_block(x, p, n_head=n_head)
    x = _ln_ref(x, params["lnf_w"], params["lnf_b"])
    return x @ params["w_lm"]


# ----------------------------- parameter init (PyTorch-style) -----------------------------
def init_gpt_params(key, dim, vocab, max_seq_len, n_layer):
    keys = jax.random.split(key, 3 + n_layer)
    s = 0.02
    proj_s = s / math.sqrt(2 * 8)
    blocks = []
    for li in range(n_layer):
        bk = jax.random.split(keys[3 + li], 8)
        blocks.append({
            "ln1_w": jnp.ones((dim,), jnp.float32), "ln1_b": jnp.zeros((dim,), jnp.float32),
            "w_attn": s * jax.random.normal(bk[0], (dim, 3 * dim), jnp.float32),
            "b_attn": s * jax.random.normal(bk[1], (3 * dim,), jnp.float32),
            "w_proj": proj_s * jax.random.normal(bk[2], (dim, dim), jnp.float32),
            "b_proj": s * jax.random.normal(bk[3], (dim,), jnp.float32),
            "ln2_w": jnp.ones((dim,), jnp.float32), "ln2_b": jnp.zeros((dim,), jnp.float32),
            "w_fc": s * jax.random.normal(bk[4], (dim, 4 * dim), jnp.float32),
            "b_fc": s * jax.random.normal(bk[5], (4 * dim,), jnp.float32),
            "w_fcp": proj_s * jax.random.normal(bk[6], (4 * dim, dim), jnp.float32),
            "b_fcp": s * jax.random.normal(bk[7], (dim,), jnp.float32),
        })
    return {
        "wte": s * jax.random.normal(keys[0], (vocab, dim), jnp.float32),
        "wpe": s * jax.random.normal(keys[1], (max_seq_len, dim), jnp.float32),
        "blocks": blocks,
        "lnf_w": jnp.ones((dim,), jnp.float32),
        "lnf_b": jnp.zeros((dim,), jnp.float32),
        "w_lm": s * jax.random.normal(keys[2], (dim, vocab), jnp.float32),
    }


if __name__ == "__main__":
    # heads must be 8: the PyTorch reference hard-codes `.view(B, T, 8, C // n_head)`,
    # and GPT stacks `heads` blocks (so n_layers = 8 too).
    B, T, C, HEADS = 2, 8, 32, 8
    VOCAB, MAX_SEQ, N_BLOCKS = 256, 16, HEADS
    assert C % HEADS == 0
    # NOTE: these shapes are a correctness smoke test only; real benchmarking needs C>=128.

    key = jax.random.PRNGKey(0)
    k_idx, k_p = jax.random.split(key)
    idx = jax.random.randint(k_idx, (B, T), 0, VOCAB, dtype=jnp.int32)
    params = init_gpt_params(k_p, C, VOCAB, MAX_SEQ, N_BLOCKS)

    # Weight repacking hoisted out of the forward: runs once.
    prepped = prepare_params(params, HEADS)
    fwd = jax.jit(functools.partial(gpt_forward, n_head=HEADS))
    logits = jax.block_until_ready(fwd(idx, prepped))

    ref = reference_gpt(idx, params, n_head=HEADS)
    assert logits.shape == (B, T, VOCAB)
    # bf16 MXU inputs + approx reciprocal => slightly looser tolerance vs fp32 reference.
    assert jnp.allclose(logits, ref, atol=2e-2, rtol=2e-2), float(jnp.max(jnp.abs(logits - ref)))

    print("KERNEL_OK")
</pallas_src>

<mosaic_0001>
module attributes {stable_mosaic.version = 11 : i64} {
  func.func @lm_head_kernel(%arg0: i32, %arg1: i32, %arg2: memref<1x8x32xf32, #tpu.memory_space<vmem>>, %arg3: memref<1x32xf32, #tpu.memory_space<vmem>>, %arg4: memref<1x32xf32, #tpu.memory_space<vmem>>, %arg5: memref<32x256xbf16, #tpu.memory_space<vmem>>, %arg6: memref<1x8x256xf32, #tpu.memory_space<vmem>>) attributes {dimension_semantics = [#tpu.dimension_semantics<parallel>, #tpu.dimension_semantics<parallel>], iteration_bounds = array<i64: 2, 1>, scalar_prefetch = 0 : i64, scratch_operands = 0 : i64, tpu.core_type = #tpu.core_type<tc>, window_params = [{transform_indices = @transform_0, window_bounds = array<i64: 1, 8, 32>}, {pipeline_mode = #tpu.pipeline_mode<synchronous>, transform_indices = @transform_1, window_bounds = array<i64: 1, 32>}, {pipeline_mode = #tpu.pipeline_mode<synchronous>, transform_indices = @transform_2, window_bounds = array<i64: 1, 32>}, {transform_indices = @transform_3, window_bounds = array<i64: 32, 256>}, {transform_indices = @transform_4, window_bounds = array<i64: 1, 8, 256>}]} {
    %c0 = arith.constant 0 : index
    %c0_0 = arith.constant 0 : index
    %c0_1 = arith.constant 0 : index
    %0 = vector.load %arg2[%c0, %c0_0, %c0_1] : memref<1x8x32xf32, #tpu.memory_space<vmem>>, vector<1x8x32xf32>
    %1 = vector.shape_cast %0 : vector<1x8x32xf32> to vector<8x32xf32>
    %c0_2 = arith.constant 0 : index
    %c0_3 = arith.constant 0 : index
    %2 = vector.load %arg3[%c0_2, %c0_3] : memref<1x32xf32, #tpu.memory_space<vmem>>, vector<1x32xf32>
    %c0_4 = arith.constant 0 : index
    %c0_5 = arith.constant 0 : index
    %3 = vector.load %arg4[%c0_4, %c0_5] : memref<1x32xf32, #tpu.memory_space<vmem>>, vector<1x32xf32>
    %cst = arith.constant dense<0.000000e+00> : vector<8xf32>
    %4 = vector.multi_reduction <add>, %1, %cst [1] : vector<8x32xf32> to vector<8xf32>
    %5 = vector.shape_cast %4 : vector<8xf32> to vector<8x1xf32>
    %cst_6 = arith.constant 3.200000e+01 : f32
    %6 = vector.broadcast %cst_6 : f32 to vector<8x1xf32>
    %7 = arith.divf %5, %6 : vector<8x1xf32>
    %8 = vector.broadcast %7 : vector<8x1xf32> to vector<8x32xf32>
    %9 = arith.subf %1, %8 : vector<8x32xf32>
    %10 = arith.mulf %9, %9 : vector<8x32xf32>
    %cst_7 = arith.constant dense<0.000000e+00> : vector<8xf32>
    %11 = vector.multi_reduction <add>, %10, %cst_7 [1] : vector<8x32xf32> to vector<8xf32>
    %12 = vector.shape_cast %11 : vector<8xf32> to vector<8x1xf32>
    %cst_8 = arith.constant 3.200000e+01 : f32
    %13 = vector.broadcast %cst_8 : f32 to vector<8x1xf32>
    %14 = arith.divf %12, %13 : vector<8x1xf32>
    %15 = vector.broadcast %7 : vector<8x1xf32> to vector<8x32xf32>
    %16 = arith.subf %1, %15 : vector<8x32xf32>
    %cst_9 = arith.constant 9.99999974E-6 : f32
    %17 = vector.broadcast %cst_9 : f32 to vector<8x1xf32>
    %18 = arith.addf %14, %17 : vector<8x1xf32>
    %19 = math.rsqrt %18 : vector<8x1xf32>
    %20 = vector.broadcast %19 : vector<8x1xf32> to vector<8x32xf32>
    %21 = arith.mulf %16, %20 : vector<8x32xf32>
    %22 = vector.broadcast %2 : vector<1x32xf32> to vector<8x32xf32>
    %23 = arith.mulf %21, %22 : vector<8x32xf32>
    %24 = vector.broadcast %3 : vector<1x32xf32> to vector<8x32xf32>
    %25 = arith.addf %23, %24 : vector<8x32xf32>
    %26 = arith.truncf %25 : vector<8x32xf32> to vector<8x32xbf16>
    %c0_10 = arith.constant 0 : index
    %c0_11 = arith.constant 0 : index
    %27 = vector.load %arg5[%c0_10, %c0_11] : memref<32x256xbf16, #tpu.memory_space<vmem>>, vector<32x256xbf16>
    %cst_12 = arith.constant dense<0.000000e+00> : vector<8x256xf32>
    %28 = tpu.matmul %26, %27, %cst_12 {dimension_numbers = #tpu.dot_dimension_numbers<[1], [0], [0], [1], [0, 0, 1, 1], [], []>} : vector<8x32xbf16>, vector<32x256xbf16>, vector<8x256xf32> -> vector<8x256xf32>
    %c0_13 = arith.constant 0 : index
    %c0_14 = arith.constant 0 : index
    %c0_15 = arith.constant 0 : index
    %29 = vector.load %arg6[%c0_13, %c0_14, %c0_15] : memref<1x8x256xf32, #tpu.memory_space<vmem>>, vector<1x8x256xf32>
    %30 = vector.shape_cast %29 : vector<1x8x256xf32> to vector<8x256xf32>
    %31 = vector.shape_cast %28 : vector<8x256xf32> to vector<1x8x256xf32>
    tpu.vector_store %arg6[%c0_13, %c0_14, %c0_15], %31 {strides = array<i32>} : memref<1x8x256xf32, #tpu.memory_space<vmem>>, vector<1x8x256xf32>,
    return
  }
  func.func @transform_0(%arg0: i32, %arg1: i32) -> (i32, i32, i32) {
    %c0_i32 = arith.constant 0 : i32
    %c0_i32_0 = arith.constant 0 : i32
    %c0_i32_1 = arith.constant 0 : i32
    return %arg0, %c0_i32, %c0_i32_0 : i32, i32, i32
  }
  func.func @transform_1(%arg0: i32, %arg1: i32) -> (i32, i32) {
    %c0_i32 = arith.constant 0 : i32
    %c0_i32_0 = arith.constant 0 : i32
    %c0_i32_1 = arith.constant 0 : i32
    return %c0_i32, %c0_i32_0 : i32, i32
  }
  func.func @transform_2(%arg0: i32, %arg1: i32) -> (i32, i32) {
    %c0_i32 = arith.constant 0 : i32
    %c0_i32_0 = arith.constant 0 : i32
    %c0_i32_1 = arith.constant 0 : i32
    return %c0_i32, %c0_i32_0 : i32, i32
  }
  func.func @transform_3(%arg0: i32, %arg1: i32) -> (i32, i32) {
    %c0_i32 = arith.constant 0 : i32
    %c0_i32_0 = arith.constant 0 : i32
    return %c0_i32, %arg1 : i32, i32
  }
  func.func @transform_4(%arg0: i32, %arg1: i32) -> (i32, i32, i32) {
    %c0_i32 = arith.constant 0 : i32
    %c0_i32_0 = arith.constant 0 : i32
    return %arg0, %c0_i32, %arg1 : i32, i32, i32
  }
}

module attributes {stable_mosaic.version = 11 : i64} {
  func.func @kernel(%arg0: i32, %arg1: i32, %arg2: memref<1x8x32xf32, #tpu.memory_space<vmem>>, %arg3: memref<1x1x32xf32, #tpu.memory_space<vmem>>, %arg4: memref<1x1x32xf32, #tpu.memory_space<vmem>>, %arg5: memref<1x32x96xbf16, #tpu.memory_space<vmem>>, %arg6: memref<1x1x96xf32, #tpu.memory_space<vmem>>, %arg7: memref<1x32x32xbf16, #tpu.memory_space<vmem>>, %arg8: memref<1x1x32xf32, #tpu.memory_space<vmem>>, %arg9: memref<1x1x32xf32, #tpu.memory_space<vmem>>, %arg10: memref<1x1x32xf32, #tpu.memory_space<vmem>>, %arg11: memref<1x32x128xbf16, #tpu.memory_space<vmem>>, %arg12: memref<1x1x128xf32, #tpu.memory_space<vmem>>, %arg13: memref<1x128x32xbf16, #tpu.memory_space<vmem>>, %arg14: memref<1x1x32xf32, #tpu.memory_space<vmem>>, %arg15: memref<1x8x32xf32, #tpu.memory_space<vmem>>) attributes {dimension_semantics = [#tpu.dimension_semantics<parallel>, #tpu.dimension_semantics<arbitrary>], iteration_bounds = array<i64: 2, 8>, scalar_prefetch = 0 : i64, scratch_operands = 0 : i64, tpu.core_type = #tpu.core_type<tc>, window_params = [{transform_indices = @transform_0, window_bounds = array<i64: 1, 8, 32>}, {transform_indices = @transform_1, window_bounds = array<i64: 1, 1, 32>}, {transform_indices = @transform_2, window_bounds = array<i64: 1, 1, 32>}, {transform_indices = @transform_3, window_bounds = array<i64: 1, 32, 96>}, {transform_indices = @transform_4, window_bounds = array<i64: 1, 1, 96>}, {transform_indices = @transform_5, window_bounds = array<i64: 1, 32, 32>}, {transform_indices = @transform_6, window_bounds = array<i64: 1, 1, 32>}, {transform_indices = @transform_7, window_bounds = array<i64: 1, 1, 32>}, {transform_indices = @transform_8, window_bounds = array<i64: 1, 1, 32>}, {transform_indices = @transform_9, window_bounds = array<i64: 1, 32, 128>}, {transform_indices = @transform_10, window_bounds = array<i64: 1, 1, 128>}, {transform_indices = @transform_11, window_bounds = array<i64: 1, 128, 32>}, {transform_indices = @transform_12, window_bounds = array<i64: 1, 1, 32>}, {transform_indices = @transform_13, window_bounds = array<i64: 1, 8, 32>}]} {
    %c0_i32 = arith.constant 0 : i32
    %0 = arith.cmpi eq, %arg1, %c0_i32 : i32
    %1 = arith.extui %0 : i1 to i32
    %c0_i32_0 = arith.constant 0 : i32
    %2 = arith.cmpi ne, %1, %c0_i32_0 : i32
    scf.if %2 {
      %c0_99 = arith.constant 0 : index
      %c0_100 = arith.constant 0 : index
      %c0_101 = arith.constant 0 : index
      %279 = vector.load %arg2[%c0_99, %c0_100, %c0_101] : memref<1x8x32xf32, #tpu.memory_space<vmem>>, vector<1x8x32xf32>
      %c0_102 = arith.constant 0 : index
      %c0_103 = arith.constant 0 : index
      %c0_104 = arith.constant 0 : index
      %280 = vector.load %arg15[%c0_102, %c0_103, %c0_104] : memref<1x8x32xf32, #tpu.memory_space<vmem>>, vector<1x8x32xf32>
      tpu.vector_store %arg15[%c0_102, %c0_103, %c0_104], %279 {strides = array<i32>} : memref<1x8x32xf32, #tpu.memory_space<vmem>>, vector<1x8x32xf32>,
    } else {
    }
    %c0 = arith.constant 0 : index
    %c0_1 = arith.constant 0 : index
    %c0_2 = arith.constant 0 : index
    %3 = vector.load %arg15[%c0, %c0_1, %c0_2] : memref<1x8x32xf32, #tpu.memory_space<vmem>>, vector<1x8x32xf32>
    %4 = vector.shape_cast %3 : vector<1x8x32xf32> to vector<8x32xf32>
    %c0_3 = arith.constant 0 : index
    %c0_4 = arith.constant 0 : index
    %c0_5 = arith.constant 0 : index
    %5 = vector.load %arg3[%c0_3, %c0_4, %c0_5] : memref<1x1x32xf32, #tpu.memory_space<vmem>>, vector<1x1x32xf32>
    %6 = vector.shape_cast %5 : vector<1x1x32xf32> to vector<1x32xf32>
    %c0_6 = arith.constant 0 : index
    %c0_7 = arith.constant 0 : index
    %c0_8 = arith.constant 0 : index
    %7 = vector.load %arg4[%c0_6, %c0_7, %c0_8] : memref<1x1x32xf32, #tpu.memory_space<vmem>>, vector<1x1x32xf32>
    %8 = vector.shape_cast %7 : vector<1x1x32xf32> to vector<1x32xf32>
    %cst = arith.constant dense<0.000000e+00> : vector<8xf32>
    %9 = vector.multi_reduction <add>, %4, %cst [1] : vector<8x32xf32> to vector<8xf32>
    %10 = vector.shape_cast %9 : vector<8xf32> to vector<8x1xf32>
    %cst_9 = arith.constant 3.200000e+01 : f32
    %11 = vector.broadcast %cst_9 : f32 to vector<8x1xf32>
    %12 = arith.divf %10, %11 : vector<8x1xf32>
    %13 = vector.broadcast %12 : vector<8x1xf32> to vector<8x32xf32>
    %14 = arith.subf %4, %13 : vector<8x32xf32>
    %15 = arith.mulf %14, %14 : vector<8x32xf32>
    %cst_10 = arith.constant dense<0.000000e+00> : vector<8xf32>
    %16 = vector.multi_reduction <add>, %15, %cst_10 [1] : vector<8x32xf32> to vector<8xf32>
    %17 = vector.shape_cast %16 : vector<8xf32> to vector<8x1xf32>
    %cst_11 = arith.constant 3.200000e+01 : f32
    %18 = vector.broadcast %cst_11 : f32 to vector<8x1xf32>
    %19 = arith.divf %17, %18 : vector<8x1xf32>
    %20 = vector.broadcast %12 : vector<8x1xf32> to vector<8x32xf32>
    %21 = arith.subf %4, %20 : vector<8x32xf32>
    %cst_12 = arith.constant 9.99999974E-6 : f32
    %22 = vector.broadcast %cst_12 : f32 to vector<8x1xf32>
    %23 = arith.addf %19, %22 : vector<8x1xf32>
    %24 = math.rsqrt %23 : vector<8x1xf32>
    %25 = vector.broadcast %24 : vector<8x1xf32> to vector<8x32xf32>
    %26 = arith.mulf %21, %25 : vector<8x32xf32>
    %27 = vector.broadcast %6 : vector<1x32xf32> to vector<8x32xf32>
    %28 = arith.mulf %26, %27 : vector<8x32xf32>
    %29 = vector.broadcast %8 : vector<1x32xf32> to vector<8x32xf32>
    %30 = arith.addf %28, %29 : vector<8x32xf32>
    %31 = arith.truncf %30 : vector<8x32xf32> to vector<8x32xbf16>
    %c0_13 = arith.constant 0 : index
    %c0_14 = arith.constant 0 : index
    %c0_15 = arith.constant 0 : index
    %32 = vector.load %arg5[%c0_13, %c0_14, %c0_15] : memref<1x32x96xbf16, #tpu.memory_space<vmem>>, vector<1x32x96xbf16>
    %33 = vector.shape_cast %32 : vector<1x32x96xbf16> to vector<32x96xbf16>
    %cst_16 = arith.constant dense<0.000000e+00> : vector<8x96xf32>
    %34 = tpu.matmul %31, %33, %cst_16 {dimension_numbers = #tpu.dot_dimension_numbers<[1], [0], [0], [1], [0, 0, 1, 1], [], []>} : vector<8x32xbf16>, vector<32x96xbf16>, vector<8x96xf32> -> vector<8x96xf32>
    %c0_17 = arith.constant 0 : index
    %c0_18 = arith.constant 0 : index
    %c0_19 = arith.constant 0 : index
    %35 = vector.load %arg6[%c0_17, %c0_18, %c0_19] : memref<1x1x96xf32, #tpu.memory_space<vmem>>, vector<1x1x96xf32>
    %36 = vector.shape_cast %35 : vector<1x1x96xf32> to vector<1x96xf32>
    %37 = vector.broadcast %36 : vector<1x96xf32> to vector<8x96xf32>
    %38 = arith.addf %34, %37 : vector<8x96xf32>
    %39 = tpu.iota {dimensions = array<i32: 0>} : vector<8x8xi32>
    %40 = tpu.iota {dimensions = array<i32: 1>} : vector<8x8xi32>
    %41 = arith.cmpi sle, %40, %39 : vector<8x8xi32>
    %42 = vector.extract_strided_slice %38 {offsets = [0, 0], sizes = [8, 4], strides = [1, 1]} : vector<8x96xf32> to vector<8x4xf32>
    %43 = arith.truncf %42 : vector<8x4xf32> to vector<8x4xbf16>
    %44 = vector.extract_strided_slice %38 {offsets = [0, 32], sizes = [8, 4], strides = [1, 1]} : vector<8x96xf32> to vector<8x4xf32>
    %45 = arith.truncf %44 : vector<8x4xf32> to vector<8x4xbf16>
    %46 = vector.extract_strided_slice %38 {offsets = [0, 64], sizes = [8, 4], strides = [1, 1]} : vector<8x96xf32> to vector<8x4xf32>
    %47 = arith.truncf %46 : vector<8x4xf32> to vector<8x4xbf16>
    %cst_20 = arith.constant dense<0.000000e+00> : vector<8x8xf32>
    %48 = tpu.matmul %43, %45, %cst_20 {dimension_numbers = #tpu.dot_dimension_numbers<[1], [1], [0], [0], [0, 0, 1, 0], [], []>} : vector<8x4xbf16>, vector<8x4xbf16>, vector<8x8xf32> -> vector<8x8xf32>
    %cst_21 = arith.constant -1.000000e+30 : f32
    %49 = vector.broadcast %cst_21 : f32 to vector<8x8xf32>
    %50 = arith.select %41, %48, %49 : vector<8x8xi1>, vector<8x8xf32>
    %cst_22 = arith.constant dense<0xFF800000> : vector<8xf32>
    %51 = vector.multi_reduction <maximumf>, %50, %cst_22 [1] : vector<8x8xf32> to vector<8xf32>
    %52 = vector.shape_cast %51 : vector<8xf32> to vector<8x1xf32>
    %53 = vector.broadcast %52 : vector<8x1xf32> to vector<8x8xf32>
    %54 = arith.subf %50, %53 : vector<8x8xf32>
    %55 = math.exp %54 : vector<8x8xf32>
    %cst_23 = arith.constant dense<0.000000e+00> : vector<8xf32>
    %56 = vector.multi_reduction <add>, %55, %cst_23 [1] : vector<8x8xf32> to vector<8xf32>
    %57 = vector.shape_cast %56 : vector<8xf32> to vector<8x1xf32>
    %58 = tpu.reciprocal %57 {approx = true} : vector<8x1xf32> -> vector<8x1xf32>
    %59 = vector.broadcast %58 : vector<8x1xf32> to vector<8x8xf32>
    %60 = arith.mulf %55, %59 : vector<8x8xf32>
    %61 = arith.truncf %60 : vector<8x8xf32> to vector<8x8xbf16>
    %cst_24 = arith.constant dense<0.000000e+00> : vector<8x4xf32>
    %62 = tpu.matmul %61, %47, %cst_24 {dimension_numbers = #tpu.dot_dimension_numbers<[1], [0], [0], [1], [0, 0, 1, 1], [], []>} : vector<8x8xbf16>, vector<8x4xbf16>, vector<8x4xf32> -> vector<8x4xf32>
    %63 = vector.extract_strided_slice %38 {offsets = [0, 4], sizes = [8, 4], strides = [1, 1]} : vector<8x96xf32> to vector<8x4xf32>
    %64 = arith.truncf %63 : vector<8x4xf32> to vector<8x4xbf16>
    %65 = vector.extract_strided_slice %38 {offsets = [0, 36], sizes = [8, 4], strides = [1, 1]} : vector<8x96xf32> to vector<8x4xf32>
    %66 = arith.truncf %65 : vector<8x4xf32> to vector<8x4xbf16>
    %67 = vector.extract_strided_slice %38 {offsets = [0, 68], sizes = [8, 4], strides = [1, 1]} : vector<8x96xf32> to vector<8x4xf32>
    %68 = arith.truncf %67 : vector<8x4xf32> to vector<8x4xbf16>
    %cst_25 = arith.constant dense<0.000000e+00> : vector<8x8xf32>
    %69 = tpu.matmul %64, %66, %cst_25 {dimension_numbers = #tpu.dot_dimension_numbers<[1], [1], [0], [0], [0, 0, 1, 0], [], []>} : vector<8x4xbf16>, vector<8x4xbf16>, vector<8x8xf32> -> vector<8x8xf32>
    %cst_26 = arith.constant -1.000000e+30 : f32
    %70 = vector.broadcast %cst_26 : f32 to vector<8x8xf32>
    %71 = arith.select %41, %69, %70 : vector<8x8xi1>, vector<8x8xf32>
    %cst_27 = arith.constant dense<0xFF800000> : vector<8xf32>
    %72 = vector.multi_reduction <maximumf>, %71, %cst_27 [1] : vector<8x8xf32> to vector<8xf32>
    %73 = vector.shape_cast %72 : vector<8xf32> to vector<8x1xf32>
    %74 = vector.broadcast %73 : vector<8x1xf32> to vector<8x8xf32>
    %75 = arith.subf %71, %74 : vector<8x8xf32>
    %76 = math.exp %75 : vector<8x8xf32>
    %cst_28 = arith.constant dense<0.000000e+00> : vector<8xf32>
    %77 = vector.multi_reduction <add>, %76, %cst_28 [1] : vector<8x8xf32> to vector<8xf32>
    %78 = vector.shape_cast %77 : vector<8xf32> to vector<8x1xf32>
    %79 = tpu.reciprocal %78 {approx = true} : vector<8x1xf32> -> vector<8x1xf32>
    %80 = vector.broadcast %79 : vector<8x1xf32> to vector<8x8xf32>
    %81 = arith.mulf %76, %80 : vector<8x8xf32>
    %82 = arith.truncf %81 : vector<8x8xf32> to vector<8x8xbf16>
    %cst_29 = arith.constant dense<0.000000e+00> : vector<8x4xf32>
    %83 = tpu.matmul %82, %68, %cst_29 {dimension_numbers = #tpu.dot_dimension_numbers<[1], [0], [0], [1], [0, 0, 1, 1], [], []>} : vector<8x8xbf16>, vector<8x4xbf16>, vector<8x4xf32> -> vector<8x4xf32>
    %84 = vector.extract_strided_slice %38 {offsets = [0, 8], sizes = [8, 4], strides = [1, 1]} : vector<8x96xf32> to vector<8x4xf32>
    %85 = arith.truncf %84 : vector<8x4xf32> to vector<8x4xbf16>
    %86 = vector.extract_strided_slice %38 {offsets = [0, 40], sizes = [8, 4], strides = [1, 1]} : vector<8x96xf32> to vector<8x4xf32>
    %87 = arith.truncf %86 : vector<8x4xf32> to vector<8x4xbf16>
    %88 = vector.extract_strided_slice %38 {offsets = [0, 72], sizes = [8, 4], strides = [1, 1]} : vector<8x96xf32> to vector<8x4xf32>
    %89 = arith.truncf %88 : vector<8x4xf32> to vector<8x4xbf16>
    %cst_30 = arith.constant dense<0.000000e+00> : vector<8x8xf32>
    %90 = tpu.matmul %85, %87, %cst_30 {dimension_numbers = #tpu.dot_dimension_numbers<[1], [1], [0], [0], [0, 0, 1, 0], [], []>} : vector<8x4xbf16>, vector<8x4xbf16>, vector<8x8xf32> -> vector<8x8xf32>
    %cst_31 = arith.constant -1.000000e+30 : f32
    %91 = vector.broadcast %cst_31 : f32 to vector<8x8xf32>
    %92 = arith.select %41, %90, %91 : vector<8x8xi1>, vector<8x8xf32>
    %cst_32 = arith.constant dense<0xFF800000> : vector<8xf32>
    %93 = vector.multi_reduction <maximumf>, %92, %cst_32 [1] : vector<8x8xf32> to vector<8xf32>
    %94 = vector.shape_cast %93 : vector<8xf32> to vector<8x1xf32>
    %95 = vector.broadcast %94 : vector<8x1xf32> to vector<8x8xf32>
    %96 = arith.subf %92, %95 : vector<8x8xf32>
    %97 = math.exp %96 : vector<8x8xf32>
    %cst_33 = arith.constant dense<0.000000e+00> : vector<8xf32>
    %98 = vector.multi_reduction <add>, %97, %cst_33 [1] : vector<8x8xf32> to vector<8xf32>
    %99 = vector.shape_cast %98 : vector<8xf32> to vector<8x1xf32>
    %100 = tpu.reciprocal %99 {approx = true} : vector<8x1xf32> -> vector<8x1xf32>
    %101 = vector.broadcast %100 : vector<8x1xf32> to vector<8x8xf32>
    %102 = arith.mulf %97, %101 : vector<8x8xf32>
    %103 = arith.truncf %102 : vector<8x8xf32> to vector<8x8xbf16>
    %cst_34 = arith.constant dense<0.000000e+00> : vector<8x4xf32>
    %104 = tpu.matmul %103, %89, %cst_34 {dimension_numbers = #tpu.dot_dimension_numbers<[1], [0], [0], [1], [0, 0, 1, 1], [], []>} : vector<8x8xbf16>, vector<8x4xbf16>, vector<8x4xf32> -> vector<8x4xf32>
    %105 = vector.extract_strided_slice %38 {offsets = [0, 12], sizes = [8, 4], strides = [1, 1]} : vector<8x96xf32> to vector<8x4xf32>
    %106 = arith.truncf %105 : vector<8x4xf32> to vector<8x4xbf16>
    %107 = vector.extract_strided_slice %38 {offsets = [0, 44], sizes = [8, 4], strides = [1, 1]} : vector<8x96xf32> to vector<8x4xf32>
    %108 = arith.truncf %107 : vector<8x4xf32> to vector<8x4xbf16>
    %109 = vector.extract_strided_slice %38 {offsets = [0, 76], sizes = [8, 4], strides = [1, 1]} : vector<8x96xf32> to vector<8x4xf32>
    %110 = arith.truncf %109 : vector<8x4xf32> to vector<8x4xbf16>
    %cst_35 = arith.constant dense<0.000000e+00> : vector<8x8xf32>
    %111 = tpu.matmul %106, %108, %cst_35 {dimension_numbers = #tpu.dot_dimension_numbers<[1], [1], [0], [0], [0, 0, 1, 0], [], []>} : vector<8x4xbf16>, vector<8x4xbf16>, vector<8x8xf32> -> vector<8x8xf32>
    %cst_36 = arith.constant -1.000000e+30 : f32
    %112 = vector.broadcast %cst_36 : f32 to vector<8x8xf32>
    %113 = arith.select %41, %111, %112 : vector<8x8xi1>, vector<8x8xf32>
    %cst_37 = arith.constant dense<0xFF800000> : vector<8xf32>
    %114 = vector.multi_reduction <maximumf>, %113, %cst_37 [1] : vector<8x8xf32> to vector<8xf32>
    %115 = vector.shape_cast %114 : vector<8xf32> to vector<8x1xf32>
    %116 = vector.broadcast %115 : vector<8x1xf32> to vector<8x8xf32>
    %117 = arith.subf %113, %116 : vector<8x8xf32>
    %118 = math.exp %117 : vector<8x8xf32>
    %cst_38 = arith.constant dense<0.000000e+00> : vector<8xf32>
    %119 = vector.multi_reduction <add>, %118, %cst_38 [1] : vector<8x8xf32> to vector<8xf32>
    %120 = vector.shape_cast %119 : vector<8xf32> to vector<8x1xf32>
    %121 = tpu.reciprocal %120 {approx = true} : vector<8x1xf32> -> vector<8x1xf32>
    %122 = vector.broadcast %121 : vector<8x1xf32> to vector<8x8xf32>
    %123 = arith.mulf %118, %122 : vector<8x8xf32>
    %124 = arith.truncf %123 : vector<8x8xf32> to vector<8x8xbf16>
    %cst_39 = arith.constant dense<0.000000e+00> : vector<8x4xf32>
    %125 = tpu.matmul %124, %110, %cst_39 {dimension_numbers = #tpu.dot_dimension_numbers<[1], [0], [0], [1], [0, 0, 1, 1], [], []>} : vector<8x8xbf16>, vector<8x4xbf16>, vector<8x4xf32> -> vector<8x4xf32>
    %126 = vector.extract_strided_slice %38 {offsets = [0, 16], sizes = [8, 4], strides = [1, 1]} : vector<8x96xf32> to vector<8x4xf32>
    %127 = arith.truncf %126 : vector<8x4xf32> to vector<8x4xbf16>
    %128 = vector.extract_strided_slice %38 {offsets = [0, 48], sizes = [8, 4], strides = [1, 1]} : vector<8x96xf32> to vector<8x4xf32>
    %129 = arith.truncf %128 : vector<8x4xf32> to vector<8x4xbf16>
    %130 = vector.extract_strided_slice %38 {offsets = [0, 80], sizes = [8, 4], strides = [1, 1]} : vector<8x96xf32> to vector<8x4xf32>
    %131 = arith.truncf %130 : vector<8x4xf32> to vector<8x4xbf16>
    %cst_40 = arith.constant dense<0.000000e+00> : vector<8x8xf32>
    %132 = tpu.matmul %127, %129, %cst_40 {dimension_numbers = #tpu.dot_dimension_numbers<[1], [1], [0], [0], [0, 0, 1, 0], [], []>} : vector<8x4xbf16>, vector<8x4xbf16>, vector<8x8xf32> -> vector<8x8xf32>
    %cst_41 = arith.constant -1.000000e+30 : f32
    %133 = vector.broadcast %cst_41 : f32 to vector<8x8xf32>
    %134 = arith.select %41, %132, %133 : vector<8x8xi1>, vector<8x8xf32>
    %cst_42 = arith.constant dense<0xFF800000> : vector<8xf32>
    %135 = vector.multi_reduction <maximumf>, %134, %cst_42 [1] : vector<8x8xf32> to vector<8xf32>
    %136 = vector.shape_cast %135 : vector<8xf32> to vector<8x1xf32>
    %137 = vector.broadcast %136 : vector<8x1xf32> to vector<8x8xf32>
    %138 = arith.subf %134, %137 : vector<8x8xf32>
    %139 = math.exp %138 : vector<8x8xf32>
    %cst_43 = arith.constant dense<0.000000e+00> : vector<8xf32>
    %140 = vector.multi_reduction <add>, %139, %cst_43 [1] : vector<8x8xf32> to vector<8xf32>
    %141 = vector.shape_cast %140 : vector<8xf32> to vector<8x1xf32>
    %142 = tpu.reciprocal %141 {approx = true} : vector<8x1xf32> -> vector<8x1xf32>
    %143 = vector.broadcast %142 : vector<8x1xf32> to vector<8x8xf32>
    %144 = arith.mulf %139, %143 : vector<8x8xf32>
    %145 = arith.truncf %144 : vector<8x8xf32> to vector<8x8xbf16>
    %cst_44 = arith.constant dense<0.000000e+00> : vector<8x4xf32>
    %146 = tpu.matmul %145, %131, %cst_44 {dimension_numbers = #tpu.dot_dimension_numbers<[1], [0], [0], [1], [0, 0, 1, 1], [], []>} : vector<8x8xbf16>, vector<8x4xbf16>, vector<8x4xf32> -> vector<8x4xf32>
    %147 = vector.extract_strided_slice %38 {offsets = [0, 20], sizes = [8, 4], strides = [1, 1]} : vector<8x96xf32> to vector<8x4xf32>
    %148 = arith.truncf %147 : vector<8x4xf32> to vector<8x4xbf16>
    %149 = vector.extract_strided_slice %38 {offsets = [0, 52], sizes = [8, 4], strides = [1, 1]} : vector<8x96xf32> to vector<8x4xf32>
    %150 = arith.truncf %149 : vector<8x4xf32> to vector<8x4xbf16>
    %151 = vector.extract_strided_slice %38 {offsets = [0, 84], sizes = [8, 4], strides = [1, 1]} : vector<8x96xf32> to vector<8x4xf32>
    %152 = arith.truncf %151 : vector<8x4xf32> to vector<8x4xbf16>
    %cst_45 = arith.constant dense<0.000000e+00> : vector<8x8xf32>
    %153 = tpu.matmul %148, %150, %cst_45 {dimension_numbers = #tpu.dot_dimension_numbers<[1], [1], [0], [0], [0, 0, 1, 0], [], []>} : vector<8x4xbf16>, vector<8x4xbf16>, vector<8x8xf32> -> vector<8x8xf32>
    %cst_46 = arith.constant -1.000000e+30 : f32
    %154 = vector.broadcast %cst_46 : f32 to vector<8x8xf32>
    %155 = arith.select %41, %153, %154 : vector<8x8xi1>, vector<8x8xf32>
    %cst_47 = arith.constant dense<0xFF800000> : vector<8xf32>
    %156 = vector.multi_reduction <maximumf>, %155, %cst_47 [1] : vector<8x8xf32> to vector<8xf32>
    %157 = vector.shape_cast %156 : vector<8xf32> to vector<8x1xf32>
    %158 = vector.broadcast %157 : vector<8x1xf32> to vector<8x8xf32>
    %159 = arith.subf %155, %158 : vector<8x8xf32>
    %160 = math.exp %159 : vector<8x8xf32>
    %cst_48 = arith.constant dense<0.000000e+00> : vector<8xf32>
    %161 = vector.multi_reduction <add>, %160, %cst_48 [1] : vector<8x8xf32> to vector<8xf32>
    %162 = vector.shape_cast %161 : vector<8xf32> to vector<8x1xf32>
    %163 = tpu.reciprocal %162 {approx = true} : vector<8x1xf32> -> vector<8x1xf32>
    %164 = vector.broadcast %163 : vector<8x1xf32> to vector<8x8xf32>
    %165 = arith.mulf %160, %164 : vector<8x8xf32>
    %166 = arith.truncf %165 : vector<8x8xf32> to vector<8x8xbf16>
    %cst_49 = arith.constant dense<0.000000e+00> : vector<8x4xf32>
    %167 = tpu.matmul %166, %152, %cst_49 {dimension_numbers = #tpu.dot_dimension_numbers<[1], [0], [0], [1], [0, 0, 1, 1], [], []>} : vector<8x8xbf16>, vector<8x4xbf16>, vector<8x4xf32> -> vector<8x4xf32>
    %168 = vector.extract_strided_slice %38 {offsets = [0, 24], sizes = [8, 4], strides = [1, 1]} : vector<8x96xf32> to vector<8x4xf32>
    %169 = arith.truncf %168 : vector<8x4xf32> to vector<8x4xbf16>
    %170 = vector.extract_strided_slice %38 {offsets = [0, 56], sizes = [8, 4], strides = [1, 1]} : vector<8x96xf32> to vector<8x4xf32>
    %171 = arith.truncf %170 : vector<8x4xf32> to vector<8x4xbf16>
    %172 = vector.extract_strided_slice %38 {offsets = [0, 88], sizes = [8, 4], strides = [1, 1]} : vector<8x96xf32> to vector<8x4xf32>
    %173 = arith.truncf %172 : vector<8x4xf32> to vector<8x4xbf16>
    %cst_50 = arith.constant dense<0.000000e+00> : vector<8x8xf32>
    %174 = tpu.matmul %169, %171, %cst_50 {dimension_numbers = #tpu.dot_dimension_numbers<[1], [1], [0], [0], [0, 0, 1, 0], [], []>} : vector<8x4xbf16>, vector<8x4xbf16>, vector<8x8xf32> -> vector<8x8xf32>
    %cst_51 = arith.constant -1.000000e+30 : f32
    %175 = vector.broadcast %cst_51 : f32 to vector<8x8xf32>
    %176 = arith.select %41, %174, %175 : vector<8x8xi1>, vector<8x8xf32>
    %cst_52 = arith.constant dense<0xFF800000> : vector<8xf32>
    %177 = vector.multi_reduction <maximumf>, %176, %cst_52 [1] : vector<8x8xf32> to vector<8xf32>
    %178 = vector.shape_cast %177 : vector<8xf32> to vector<8x1xf32>
    %179 = vector.broadcast %178 : vector<8x1xf32> to vector<8x8xf32>
    %180 = arith.subf %176, %179 : vector<8x8xf32>
    %181 = math.exp %180 : vector<8x8xf32>
    %cst_53 = arith.constant dense<0.000000e+00> : vector<8xf32>
    %182 = vector.multi_reduction <add>, %181, %cst_53 [1] : vector<8x8xf32> to vector<8xf32>
    %183 = vector.shape_cast %182 : vector<8xf32> to vector<8x1xf32>
    %184 = tpu.reciprocal %183 {approx = true} : vector<8x1xf32> -> vector<8x1xf32>
    %185 = vector.broadcast %184 : vector<8x1xf32> to vector<8x8xf32>
    %186 = arith.mulf %181, %185 : vector<8x8xf32>
    %187 = arith.truncf %186 : vector<8x8xf32> to vector<8x8xbf16>
    %cst_54 = arith.constant dense<0.000000e+00> : vector<8x4xf32>
    %188 = tpu.matmul %187, %173, %cst_54 {dimension_numbers = #tpu.dot_dimension_numbers<[1], [0], [0], [1], [0, 0, 1, 1], [], []>} : vector<8x8xbf16>, vector<8x4xbf16>, vector<8x4xf32> -> vector<8x4xf32>
    %189 = vector.extract_strided_slice %38 {offsets = [0, 28], sizes = [8, 4], strides = [1, 1]} : vector<8x96xf32> to vector<8x4xf32>
    %190 = arith.truncf %189 : vector<8x4xf32> to vector<8x4xbf16>
    %191 = vector.extract_strided_slice %38 {offsets = [0, 60], sizes = [8, 4], strides = [1, 1]} : vector<8x96xf32> to vector<8x4xf32>
    %192 = arith.truncf %191 : vector<8x4xf32> to vector<8x4xbf16>
    %193 = vector.extract_strided_slice %38 {offsets = [0, 92], sizes = [8, 4], strides = [1, 1]} : vector<8x96xf32> to vector<8x4xf32>
    %194 = arith.truncf %193 : vector<8x4xf32> to vector<8x4xbf16>
    %cst_55 = arith.constant dense<0.000000e+00> : vector<8x8xf32>
    %195 = tpu.matmul %190, %192, %cst_55 {dimension_numbers = #tpu.dot_dimension_numbers<[1], [1], [0], [0], [0, 0, 1, 0], [], []>} : vector<8x4xbf16>, vector<8x4xbf16>, vector<8x8xf32> -> vector<8x8xf32>
    %cst_56 = arith.constant -1.000000e+30 : f32
    %196 = vector.broadcast %cst_56 : f32 to vector<8x8xf32>
    %197 = arith.select %41, %195, %196 : vector<8x8xi1>, vector<8x8xf32>
    %cst_57 = arith.constant dense<0xFF800000> : vector<8xf32>
    %198 = vector.multi_reduction <maximumf>, %197, %cst_57 [1] : vector<8x8xf32> to vector<8xf32>
    %199 = vector.shape_cast %198 : vector<8xf32> to vector<8x1xf32>
    %200 = vector.broadcast %199 : vector<8x1xf32> to vector<8x8xf32>
    %201 = arith.subf %197, %200 : vector<8x8xf32>
    %202 = math.exp %201 : vector<8x8xf32>
    %cst_58 = arith.constant dense<0.000000e+00> : vector<8xf32>
    %203 = vector.multi_reduction <add>, %202, %cst_58 [1] : vector<8x8xf32> to vector<8xf32>
    %204 = vector.shape_cast %203 : vector<8xf32> to vector<8x1xf32>
    %205 = tpu.reciprocal %204 {approx = true} : vector<8x1xf32> -> vector<8x1xf32>
    %206 = vector.broadcast %205 : vector<8x1xf32> to vector<8x8xf32>
    %207 = arith.mulf %202, %206 : vector<8x8xf32>
    %208 = arith.truncf %207 : vector<8x8xf32> to vector<8x8xbf16>
    %cst_59 = arith.constant dense<0.000000e+00> : vector<8x4xf32>
    %209 = tpu.matmul %208, %194, %cst_59 {dimension_numbers = #tpu.dot_dimension_numbers<[1], [0], [0], [1], [0, 0, 1, 1], [], []>} : vector<8x8xbf16>, vector<8x4xbf16>, vector<8x4xf32> -> vector<8x4xf32>
    %210 = tpu.concatenate %62, %83, %104, %125, %146, %167, %188, %209 in 1 : vector<8x4xf32>, vector<8x4xf32>, vector<8x4xf32>, vector<8x4xf32>, vector<8x4xf32>, vector<8x4xf32>, vector<8x4xf32>, vector<8x4xf32> -> vector<8x32xf32>
    %211 = arith.truncf %210 : vector<8x32xf32> to vector<8x32xbf16>
    %c0_60 = arith.constant 0 : index
    %c0_61 = arith.constant 0 : index
    %c0_62 = arith.constant 0 : index
    %212 = vector.load %arg7[%c0_60, %c0_61, %c0_62] : memref<1x32x32xbf16, #tpu.memory_space<vmem>>, vector<1x32x32xbf16>
    %213 = vector.shape_cast %212 : vector<1x32x32xbf16> to vector<32x32xbf16>
    %cst_63 = arith.constant dense<0.000000e+00> : vector<8x32xf32>
    %214 = tpu.matmul %211, %213, %cst_63 {dimension_numbers = #tpu.dot_dimension_numbers<[1], [0], [0], [1], [0, 0, 1, 1], [], []>} : vector<8x32xbf16>, vector<32x32xbf16>, vector<8x32xf32> -> vector<8x32xf32>
    %c0_64 = arith.constant 0 : index
    %c0_65 = arith.constant 0 : index
    %c0_66 = arith.constant 0 : index
    %215 = vector.load %arg8[%c0_64, %c0_65, %c0_66] : memref<1x1x32xf32, #tpu.memory_space<vmem>>, vector<1x1x32xf32>
    %216 = vector.shape_cast %215 : vector<1x1x32xf32> to vector<1x32xf32>
    %217 = vector.broadcast %216 : vector<1x32xf32> to vector<8x32xf32>
    %218 = arith.addf %214, %217 : vector<8x32xf32>
    %219 = arith.addf %4, %218 : vector<8x32xf32>
    %c0_67 = arith.constant 0 : index
    %c0_68 = arith.constant 0 : index
    %c0_69 = arith.constant 0 : index
    %220 = vector.load %arg9[%c0_67, %c0_68, %c0_69] : memref<1x1x32xf32, #tpu.memory_space<vmem>>, vector<1x1x32xf32>
    %221 = vector.shape_cast %220 : vector<1x1x32xf32> to vector<1x32xf32>
    %c0_70 = arith.constant 0 : index
    %c0_71 = arith.constant 0 : index
    %c0_72 = arith.constant 0 : index
    %222 = vector.load %arg10[%c0_70, %c0_71, %c0_72] : memref<1x1x32xf32, #tpu.memory_space<vmem>>, vector<1x1x32xf32>
    %223 = vector.shape_cast %222 : vector<1x1x32xf32> to vector<1x32xf32>
    %cst_73 = arith.constant dense<0.000000e+00> : vector<8xf32>
    %224 = vector.multi_reduction <add>, %219, %cst_73 [1] : vector<8x32xf32> to vector<8xf32>
    %225 = vector.shape_cast %224 : vector<8xf32> to vector<8x1xf32>
    %cst_74 = arith.constant 3.200000e+01 : f32
    %226 = vector.broadcast %cst_74 : f32 to vector<8x1xf32>
    %227 = arith.divf %225, %226 : vector<8x1xf32>
    %228 = vector.broadcast %227 : vector<8x1xf32> to vector<8x32xf32>
    %229 = arith.subf %219, %228 : vector<8x32xf32>
    %230 = arith.mulf %229, %229 : vector<8x32xf32>
    %cst_75 = arith.constant dense<0.000000e+00> : vector<8xf32>
    %231 = vector.multi_reduction <add>, %230, %cst_75 [1] : vector<8x32xf32> to vector<8xf32>
    %232 = vector.shape_cast %231 : vector<8xf32> to vector<8x1xf32>
    %cst_76 = arith.constant 3.200000e+01 : f32
    %233 = vector.broadcast %cst_76 : f32 to vector<8x1xf32>
    %234 = arith.divf %232, %233 : vector<8x1xf32>
    %235 = vector.broadcast %227 : vector<8x1xf32> to vector<8x32xf32>
    %236 = arith.subf %219, %235 : vector<8x32xf32>
    %cst_77 = arith.constant 9.99999974E-6 : f32
    %237 = vector.broadcast %cst_77 : f32 to vector<8x1xf32>
    %238 = arith.addf %234, %237 : vector<8x1xf32>
    %239 = math.rsqrt %238 : vector<8x1xf32>
    %240 = vector.broadcast %239 : vector<8x1xf32> to vector<8x32xf32>
    %241 = arith.mulf %236, %240 : vector<8x32xf32>
    %242 = vector.broadcast %221 : vector<1x32xf32> to vector<8x32xf32>
    %243 = arith.mulf %241, %242 : vector<8x32xf32>
    %244 = vector.broadcast %223 : vector<1x32xf32> to vector<8x32xf32>
    %245 = arith.addf %243, %244 : vector<8x32xf32>
    %246 = arith.truncf %245 : vector<8x32xf32> to vector<8x32xbf16>
    %c0_78 = arith.constant 0 : index
    %c0_79 = arith.constant 0 : index
    %c0_80 = arith.constant 0 : index
    %247 = vector.load %arg11[%c0_78, %c0_79, %c0_80] : memref<1x32x128xbf16, #tpu.memory_space<vmem>>, vector<1x32x128xbf16>
    %248 = vector.shape_cast %247 : vector<1x32x128xbf16> to vector<32x128xbf16>
    %cst_81 = arith.constant dense<0.000000e+00> : vector<8x128xf32>
    %249 = tpu.matmul %246, %248, %cst_81 {dimension_numbers = #tpu.dot_dimension_numbers<[1], [0], [0], [1], [0, 0, 1, 1], [], []>} : vector<8x32xbf16>, vector<32x128xbf16>, vector<8x128xf32> -> vector<8x128xf32>
    %c0_82 = arith.constant 0 : index
    %c0_83 = arith.constant 0 : index
    %c0_84 = arith.constant 0 : index
    %250 = vector.load %arg12[%c0_82, %c0_83, %c0_84] : memref<1x1x128xf32, #tpu.memory_space<vmem>>, vector<1x1x128xf32>
    %251 = vector.shape_cast %250 : vector<1x1x128xf32> to vector<1x128xf32>
    %252 = vector.broadcast %251 : vector<1x128xf32> to vector<8x128xf32>
    %253 = arith.addf %249, %252 : vector<8x128xf32>
    %cst_85 = arith.constant 5.000000e-01 : f32
    %254 = vector.broadcast %cst_85 : f32 to vector<8x128xf32>
    %255 = arith.mulf %254, %253 : vector<8x128xf32>
    %cst_86 = arith.constant 4.471500e-02 : f32
    %256 = vector.broadcast %cst_86 : f32 to vector<8x128xf32>
    %257 = arith.mulf %256, %253 : vector<8x128xf32>
    %258 = arith.mulf %257, %253 : vector<8x128xf32>
    %259 = arith.mulf %258, %253 : vector<8x128xf32>
    %260 = arith.addf %253, %259 : vector<8x128xf32>
    %cst_87 = arith.constant 0.797884583 : f32
    %261 = vector.broadcast %cst_87 : f32 to vector<8x128xf32>
    %262 = arith.mulf %261, %260 : vector<8x128xf32>
    %263 = math.tanh %262 : vector<8x128xf32>
    %cst_88 = arith.constant 1.000000e+00 : f32
    %264 = vector.broadcast %cst_88 : f32 to vector<8x128xf32>
    %265 = arith.addf %264, %263 : vector<8x128xf32>
    %266 = arith.mulf %255, %265 : vector<8x128xf32>
    %267 = arith.truncf %266 : vector<8x128xf32> to vector<8x128xbf16>
    %c0_89 = arith.constant 0 : index
    %c0_90 = arith.constant 0 : index
    %c0_91 = arith.constant 0 : index
    %268 = vector.load %arg13[%c0_89, %c0_90, %c0_91] : memref<1x128x32xbf16, #tpu.memory_space<vmem>>, vector<1x128x32xbf16>
    %269 = vector.shape_cast %268 : vector<1x128x32xbf16> to vector<128x32xbf16>
    %cst_92 = arith.constant dense<0.000000e+00> : vector<8x32xf32>
    %270 = tpu.matmul %267, %269, %cst_92 {dimension_numbers = #tpu.dot_dimension_numbers<[1], [0], [0], [1], [0, 0, 1, 1], [], []>} : vector<8x128xbf16>, vector<128x32xbf16>, vector<8x32xf32> -> vector<8x32xf32>
    %c0_93 = arith.constant 0 : index
    %c0_94 = arith.constant 0 : index
    %c0_95 = arith.constant 0 : index
    %271 = vector.load %arg14[%c0_93, %c0_94, %c0_95] : memref<1x1x32xf32, #tpu.memory_space<vmem>>, vector<1x1x32xf32>
    %272 = vector.shape_cast %271 : vector<1x1x32xf32> to vector<1x32xf32>
    %273 = vector.broadcast %272 : vector<1x32xf32> to vector<8x32xf32>
    %274 = arith.addf %270, %273 : vector<8x32xf32>
    %275 = arith.addf %219, %274 : vector<8x32xf32>
    %c0_96 = arith.constant 0 : index
    %c0_97 = arith.constant 0 : index
    %c0_98 = arith.constant 0 : index
    %276 = vector.load %arg15[%c0_96, %c0_97, %c0_98] : memref<1x8x32xf32, #tpu.memory_space<vmem>>, vector<1x8x32xf32>
    %277 = vector.shape_cast %276 : vector<1x8x32xf32> to vector<8x32xf32>
    %278 = vector.shape_cast %275 : vector<8x32xf32> to vector<1x8x32xf32>
    tpu.vector_store %arg15[%c0_96, %c0_97, %c0_98], %278 {strides = array<i32>} : memref<1x8x32xf32, #tpu.memory_space<vmem>>, vector<1x8x32xf32>,
    return
  }
  func.func @transform_0(%arg0: i32, %arg1: i32) -> (i32, i32, i32) {
    %c0_i32 = arith.constant 0 : i32
    %c0_i32_0 = arith.constant 0 : i32
    %c0_i32_1 = arith.constant 0 : i32
    return %arg0, %c0_i32, %c0_i32_0 : i32, i32, i32
  }
  func.func @transform_1(%arg0: i32, %arg1: i32) -> (i32, i32, i32) {
    %c0_i32 = arith.constant 0 : i32
    %c0_i32_0 = arith.constant 0 : i32
    %c0_i32_1 = arith.constant 0 : i32
    return %arg1, %c0_i32, %c0_i32_0 : i32, i32, i32
  }
  func.func @transform_2(%arg0: i32, %arg1: i32) -> (i32, i32, i32) {
    %c0_i32 = arith.constant 0 : i32
    %c0_i32_0 = arith.constant 0 : i32
    %c0_i32_1 = arith.constant 0 : i32
    return %arg1, %c0_i32, %c0_i32_0 : i32, i32, i32
  }
  func.func @transform_3(%arg0: i32, %arg1: i32) -> (i32, i32, i32) {
    %c0_i32 = arith.constant 0 : i32
    %c0_i32_0 = arith.constant 0 : i32
    %c0_i32_1 = arith.constant 0 : i32
    return %arg1, %c0_i32, %c0_i32_0 : i32, i32, i32
  }
  func.func @transform_4(%arg0: i32, %arg1: i32) -> (i32, i32, i32) {
    %c0_i32 = arith.constant 0 : i32
    %c0_i32_0 = arith.constant 0 : i32
    %c0_i32_1 = arith.constant 0 : i32
    return %arg1, %c0_i32, %c0_i32_0 : i32, i32, i32
  }
  func.func @transform_5(%arg0: i32, %arg1: i32) -> (i32, i32, i32) {
    %c0_i32 = arith.constant 0 : i32
    %c0_i32_0 = arith.constant 0 : i32
    %c0_i32_1 = arith.constant 0 : i32
    return %arg1, %c0_i32, %c0_i32_0 : i32, i32, i32
  }
  func.func @transform_6(%arg0: i32, %arg1: i32) -> (i32, i32, i32) {
    %c0_i32 = arith.constant 0 : i32
    %c0_i32_0 = arith.constant 0 : i32
    %c0_i32_1 = arith.constant 0 : i32
    return %arg1, %c0_i32, %c0_i32_0 : i32, i32, i32
  }
  func.func @transform_7(%arg0: i32, %arg1: i32) -> (i32, i32, i32) {
    %c0_i32 = arith.constant 0 : i32
    %c0_i32_0 = arith.constant 0 : i32
    %c0_i32_1 = arith.constant 0 : i32
    return %arg1, %c0_i32, %c0_i32_0 : i32, i32, i32
  }
  func.func @transform_8(%arg0: i32, %arg1: i32) -> (i32, i32, i32) {
    %c0_i32 = arith.constant 0 : i32
    %c0_i32_0 = arith.constant 0 : i32
    %c0_i32_1 = arith.constant 0 : i32
    return %arg1, %c0_i32, %c0_i32_0 : i32, i32, i32
  }
  func.func @transform_9(%arg0: i32, %arg1: i32) -> (i32, i32, i32) {
    %c0_i32 = arith.constant 0 : i32
    %c0_i32_0 = arith.constant 0 : i32
    %c0_i32_1 = arith.constant 0 : i32
    return %arg1, %c0_i32, %c0_i32_0 : i32, i32, i32
  }
  func.func @transform_10(%arg0: i32, %arg1: i32) -> (i32, i32, i32) {
    %c0_i32 = arith.constant 0 : i32
    %c0_i32_0 = arith.constant 0 : i32
    %c0_i32_1 = arith.constant 0 : i32
    return %arg1, %c0_i32, %c0_i32_0 : i32, i32, i32
  }
  func.func @transform_11(%arg0: i32, %arg1: i32) -> (i32, i32, i32) {
    %c0_i32 = arith.constant 0 : i32
    %c0_i32_0 = arith.constant 0 : i32
    %c0_i32_1 = arith.constant 0 : i32
    return %arg1, %c0_i32, %c0_i32_0 : i32, i32, i32
  }
  func.func @transform_12(%arg0: i32, %arg1: i32) -> (i32, i32, i32) {
    %c0_i32 = arith.constant 0 : i32
    %c0_i32_0 = arith.constant 0 : i32
    %c0_i32_1 = arith.constant 0 : i32
    return %arg1, %c0_i32, %c0_i32_0 : i32, i32, i32
  }
  func.func @transform_13(%arg0: i32, %arg1: i32) -> (i32, i32, i32) {
    %c0_i32 = arith.constant 0 : i32
    %c0_i32_0 = arith.constant 0 : i32
    %c0_i32_1 = arith.constant 0 : i32
    return %arg0, %c0_i32, %c0_i32_0 : i32, i32, i32
  }
}

</mosaic_0001>

<llo_original>
// kernel: gpt_forward.3
$region0: #{gpt_forward.3}
  #allocation0 [shape = 'u32[]', space=smem, size = 0x4, offset = 0x4, fixed_abs, tag = 'smem constant byte address 0x4 - core index']
  #allocation1 [shape = 'u32[144,128]{1,0:T(1,128)}', space=vmem, size = 0x12000, scoped, tag = 'internal scratch']
  %s0 = inlined_call_operand.vmem [shape: f32[2,8,32], index: 0, kind: input, shape index: {}]
  %s1 = inlined_call_operand.vmem [shape: f32[1,32], index: 1, kind: input, shape index: {}]
  %s2 = inlined_call_operand.vmem [shape: f32[1,32], index: 2, kind: input, shape index: {}]
  %s3 = inlined_call_operand.vmem [shape: bf16[32,256], index: 3, kind: input, shape index: {}]
  %s4 = inlined_call_operand.hbm [shape: f32[2,8,256], index: 4, kind: output, shape index: {}]
  %s5 = sld [smem:[#allocation0]]
  $region49: #{gpt_forward.3} parent=0
    _
  %s7 = ssub.s32 1, %s5
  %s8 = scalar_select 0, %s7, %s5
  $region1: #{gpt_forward.3} parent=0
    #allocation2 [shape = 'u8[16384]{0}', space=vmem, size = 0x4000, scoped, tag = 'output window, operand 0']
    #allocation3 [shape = 's32[2]{0}', space=sflag, size = 0x8, scoped, tag = 'scoped memory for gpt_forward.3']
    %9 = vsyncpa [#allocation3], 0
    %s10 = scalar_lea.sflag [#allocation3], 1
    %11 = vsyncpa %s10, 0
    loop: start=0, step=1, limit=4
    $region2: #{gpt_forward.3} parent=1 // loop_pre_header
      _
    $region3: #{gpt_forward.3} parent=1 // loop_header
      %s13 = sphi 0, %s17
      %p14 = scmp.ge.s32.totalorder %s13, 4
      %s20 = sphi 0, %s32
      %s21 = sphi 0, %s28
      %s22 = sphi 0, %s20
      %s23 = sphi 0, %s21
      %s24 = sphi 0, %s22
      %s25 = sphi 0, %s23
      %s35 = sphi 0, %s37
      %s38 = sphi 0, %s35
      %s39 = sphi 0, %s38
      %s55 = sphi 0, %s39
      %s59 = sphi 0, %s59
      %s61 = sphi 0, %s59
      %s62 = sphi 0, %s61
      %s76 = sphi 0, %s62
      %s80 = sphi 0, %s80
      %s82 = sphi 0, %s80
      %s83 = sphi 0, %s82
      %s97 = sphi 0, %s83
      %s103 = sphi 0, %s105
      %s106 = sphi 0, %s103
      %s107 = sphi 0, %s106
      %s123 = sphi 0, %s107
      %s131 = sphi 0, %s133
      %s134 = sphi 0, %s131
      %s135 = sphi 0, %s134
      %s151 = sphi 0, %s135
    $region4: #{gpt_forward.3} parent=1 // loop_header_branch
      %16 = sbr.rel (%p14) target = $region8
    $region5: #{gpt_forward.3} parent=1 // loop_body
      %s18 = ssub.s32 %s13, 1
      %s19 = ssub.s32 %s13, 2
      %s26 = sadd.s32 1, %s21
      %p27 = scmp.ge.s32.totalorder %s26, 1
      %s28 = scalar_select %p27, 0, %s26
      %s29 = sadd.s32 1, %s20
      %s30 = scalar_select %p27, %s29, %s20
      %p31 = scmp.ge.s32.totalorder %s30, 2
      %s32 = scalar_select %p31, 0, %s30
      %s33 = ssub.s32 %s20, %s32
      %p34 = scmp.eq.s32.totalorder %s33, 0
      %s36 = sadd.s32 %s35, 1
      %s37 = scalar_select %p34, %s35, %s36
      %p40 = pneg %p34
      %p41 = scmp.eq.s32.totalorder %s13, 1
      %p42 = por %p40, %p41
      %p43 = scmp.ne.s32.totalorder %s35, %s38
      %p44 = scmp.eq.s32.totalorder %s13, 0
      %p45 = por %p43, %p44
      %p46 = scmp.ne.s32.totalorder %s35, %s38
      %p47 = scmp.eq.s32.totalorder %s18, 1
      %p48 = por %p46, %p47
      %p49 = scmp.ne.s32.totalorder %s38, %s39
      %p50 = scmp.eq.s32.totalorder %s18, 0
      %p51 = por %p49, %p50
      %p52 = scmp.ne.s32.totalorder %s38, %s39
      %p53 = scmp.eq.s32.totalorder %s19, 1
      %p54 = por %p52, %p53
      %p56 = scmp.ne.s32.totalorder %s39, %s55
      %p57 = scmp.eq.s32.totalorder %s19, 0
      %p58 = por %p56, %p57
      %s60 = sadd.s32 %s59, 1
      %p63 = scmp.eq.s32.totalorder %s13, 1
      %p64 = scmp.ne.s32.totalorder %s59, %s61
      %p65 = scmp.eq.s32.totalorder %s13, 0
      %p66 = por %p64, %p65
      %p67 = scmp.ne.s32.totalorder %s59, %s61
      %p68 = scmp.eq.s32.totalorder %s18, 1
      %p69 = por %p67, %p68
      %p70 = scmp.ne.s32.totalorder %s61, %s62
      %p71 = scmp.eq.s32.totalorder %s18, 0
      %p72 = por %p70, %p71
      %p73 = scmp.ne.s32.totalorder %s61, %s62
      %p74 = scmp.eq.s32.totalorder %s19, 1
      %p75 = por %p73, %p74
      %p77 = scmp.ne.s32.totalorder %s62, %s76
      %p78 = scmp.eq.s32.totalorder %s19, 0
      %p79 = por %p77, %p78
      %s81 = sadd.s32 %s80, 1
      %p84 = scmp.eq.s32.totalorder %s13, 1
      %p85 = scmp.ne.s32.totalorder %s80, %s82
      %p86 = scmp.eq.s32.totalorder %s13, 0
      %p87 = por %p85, %p86
      %p88 = scmp.ne.s32.totalorder %s80, %s82
      %p89 = scmp.eq.s32.totalorder %s18, 1
      %p90 = por %p88, %p89
      %p91 = scmp.ne.s32.totalorder %s82, %s83
      %p92 = scmp.eq.s32.totalorder %s18, 0
      %p93 = por %p91, %p92
      %p94 = scmp.ne.s32.totalorder %s82, %s83
      %p95 = scmp.eq.s32.totalorder %s19, 1
      %p96 = por %p94, %p95
      %p98 = scmp.ne.s32.totalorder %s83, %s97
      %p99 = scmp.eq.s32.totalorder %s19, 0
      %p100 = por %p98, %p99
      %s101 = ssub.s32 %s21, %s28
      %p102 = scmp.eq.s32.totalorder %s101, 0
      %s104 = sadd.s32 %s103, 1
      %s105 = scalar_select %p102, %s103, %s104
      %p108 = pneg %p102
      %p109 = scmp.eq.s32.totalorder %s13, 1
      %p110 = por %p108, %p109
      %p111 = scmp.ne.s32.totalorder %s103, %s106
      %p112 = scmp.eq.s32.totalorder %s13, 0
      %p113 = por %p111, %p112
      %p114 = scmp.ne.s32.totalorder %s103, %s106
      %p115 = scmp.eq.s32.totalorder %s18, 1
      %p116 = por %p114, %p115
      %p117 = scmp.ne.s32.totalorder %s106, %s107
      %p118 = scmp.eq.s32.totalorder %s18, 0
      %p119 = por %p117, %p118
      %p120 = scmp.ne.s32.totalorder %s106, %s107
      %p121 = scmp.eq.s32.totalorder %s19, 1
      %p122 = por %p120, %p121
      %p124 = scmp.ne.s32.totalorder %s107, %s123
      %p125 = scmp.eq.s32.totalorder %s19, 0
      %p126 = por %p124, %p125
      %s127 = ssub.s32 %s20, %s32
      %s128 = ssub.s32 %s21, %s28
      %s129 = sor.u32 %s127, %s128
      %p130 = scmp.eq.s32.totalorder %s129, 0
      %s132 = sadd.s32 %s131, 1
      %s133 = scalar_select %p130, %s131, %s132
      %p136 = pneg %p130
      %p137 = scmp.eq.s32.totalorder %s13, 1
      %p138 = por %p136, %p137
      %p139 = scmp.ne.s32.totalorder %s131, %s134
      %p140 = scmp.eq.s32.totalorder %s13, 0
      %p141 = por %p139, %p140
      %p142 = scmp.ne.s32.totalorder %s131, %s134
      %p143 = scmp.eq.s32.totalorder %s18, 1
      %p144 = por %p142, %p143
      %p145 = scmp.ne.s32.totalorder %s134, %s135
      %p146 = scmp.eq.s32.totalorder %s18, 0
      %p147 = por %p145, %p146
      %p148 = scmp.ne.s32.totalorder %s134, %s135
      %p149 = scmp.eq.s32.totalorder %s19, 1
      %p150 = por %p148, %p149
      %p152 = scmp.ne.s32.totalorder %s135, %s151
      %p153 = scmp.eq.s32.totalorder %s19, 0
      %p154 = por %p152, %p153
      %p155 = scmp.le.s32.totalorder 1, %s13
      %p156 = scmp.lt.s32.totalorder %s13, 3
      %p157 = pnand %p155, %p156
      %p158 = pneg %p157
      // Predicated region
      $region9: #{gpt_forward.3} parent=5 // pred_check
        _
      $region10: #{gpt_forward.3} parent=5 // pred_check_branch
        %160 = sbr.rel (%p157) target = $region12
      $region11: #{gpt_forward.3} parent=5 // pred_region
        %s161 = ssub.s32 %s13, 1
        // Predicated region
        $region13: #{gpt_forward.3} parent=11 // pred_check
          %p162 = pneg %p72
        $region14: #{gpt_forward.3} parent=11 // pred_check_branch
          %164 = sbr.rel (%p162) target = $region16
        $region15: #{gpt_forward.3} parent=11 // pred_region
          _
        $region16: #{gpt_forward.3} parent=11 // pred_fallthru
          _
        // Predicated region
        $region17: #{gpt_forward.3} parent=11 // pred_check
          %p165 = pneg %p93
        $region18: #{gpt_forward.3} parent=11 // pred_check_branch
          %167 = sbr.rel (%p165) target = $region20
        $region19: #{gpt_forward.3} parent=11 // pred_region
          _
        $region20: #{gpt_forward.3} parent=11 // pred_fallthru
          _
        // Predicated region
        $region21: #{gpt_forward.3} parent=11 // pred_check
          %p168 = pneg %p119
        $region22: #{gpt_forward.3} parent=11 // pred_check_branch
          %170 = sbr.rel (%p168) target = $region24
        $region23: #{gpt_forward.3} parent=11 // pred_region
          %s171 = smul.u32 2, %s23
          %p172 = scmp.lt.s32.totalorder %s171, 1
          %s173 = scalar_select %p172, %s171, 1
          %s174 = smul.addr %s173, 4
          %s175 = scalar_lea.vmem %s3, %s174
          %s176 = smul.u32 2, %s23
        $region24: #{gpt_forward.3} parent=11 // pred_fallthru
          _
      $region12: #{gpt_forward.3} parent=5 // pred_fallthru
        _
      %p177 = scmp.lt.s32.totalorder %s13, 2
      // Predicated region
      $region25: #{gpt_forward.3} parent=5 // pred_check
        %p178 = pneg %p177
      $region26: #{gpt_forward.3} parent=5 // pred_check_branch
        %180 = sbr.rel (%p178) target = $region28
      $region27: #{gpt_forward.3} parent=5 // pred_region
        // Predicated region
        $region29: #{gpt_forward.3} parent=27 // pred_check
          %p181 = pneg %p45
        $region30: #{gpt_forward.3} parent=27 // pred_check_branch
          %183 = sbr.rel (%p181) target = $region32
        $region31: #{gpt_forward.3} parent=27 // pred_region
          %p184 = scmp.lt.s32.totalorder %s20, 1
          %s185 = scalar_select %p184, %s20, 1
          %s186 = smul.addr %s185, 8
          %s187 = scalar_lea.vmem %s0, %s186
        $region32: #{gpt_forward.3} parent=27 // pred_fallthru
          _
      $region28: #{gpt_forward.3} parent=5 // pred_fallthru
        _
      %p188 = scmp.le.s32.totalorder 1, %s13
      %p189 = scmp.lt.s32.totalorder %s13, 3
      %p190 = pnand %p188, %p189
      %p191 = pneg %p190
      // Predicated region
      $region33: #{gpt_forward.3} parent=5 // pred_check
        _
      $region34: #{gpt_forward.3} parent=5 // pred_check_branch
        %193 = sbr.rel (%p190) target = $region36
      $region35: #{gpt_forward.3} parent=5 // pred_region
        %s194 = ssub.s32 %s13, 1
        %p195 = scmp.lt.s32.totalorder %s22, 1
        %s196 = scalar_select %p195, %s22, 1
        %s197 = smul.addr %s196, 8
        %s198 = scalar_lea.vmem %s0, %s197
        %p199 = pneg %p51
        %p200 = pneg %p48
        %p201 = pneg %p72
        %p202 = pneg %p69
        %p203 = pneg %p93
        %p204 = pneg %p90
        %s205 = smul.u32 2, %s23
        %p206 = scmp.lt.s32.totalorder %s205, 1
        %s207 = scalar_select %p206, %s205, 1
        %s208 = smul.addr %s207, 4
        %s209 = scalar_lea.vmem %s3, %s208
        %p210 = pneg %p119
        %p211 = pneg %p116
        %p212 = pneg %p147
        %p213 = pneg %p144
        %s214 = sand.u32 %s134, 1
        %s215 = scalar_lea.sflag [#allocation3], %s214
        %s216 = sand.u32 %s134, 1
        %s217 = smul.addr %s216, 16
        %s218 = scalar_lea.vmem [#allocation2], %s217
        %p219 = scmp.lt.s32.totalorder %s22, 1
        %s220 = scalar_select %p219, %s22, 1
        %s221 = smul.addr %s220, 8
        %s222 = scalar_lea.vmem %s0, %s221
        %s223 = smul.u32 2, %s23
        %p224 = scmp.lt.s32.totalorder %s223, 1
        %s225 = scalar_select %p224, %s223, 1
        %s226 = smul.addr %s225, 4
        %s227 = scalar_lea.vmem %s3, %s226
        %s228 = smul.u32 2, %s23
        %s229 = smul.u32 2, %s23
        %v231 = vld [vmem:[%s222] sm:$0xff]
        %v232 = vld [vmem:[%s1] sm:$0x1]
        %v233 = vld [vmem:[%s2] sm:$0x1]
        %vm234 = vcmask 261120
        %v235 = vsel %vm234, %v231, 0.0
        %236 = vadd.xlane.f32.xlu0 %v235
        %v237 = vpop.xlane.xlu0 %236
        %v238 = vrcp.pop 32.0
        %v239 = vmul.f32 %v237, %v238
        %v240 = vsub.f32 %v231, %v239
        %v241 = vmul.f32 %v240, %v240
        %v242 = vsel %vm234, %v241, 0.0
        %243 = vadd.xlane.f32.xlu0 %v242
        %v244 = vpop.xlane.xlu0 %243
        %v245 = vmul.f32 %v244, %v238
        %v246 = vadd.f32 %v245, 1e-05
        %v247 = vrsqrt.pop %v246
        %v248 = vmul.f32 %v240, %v247
        %v250 = vlaneseq
        %v251 = vshrl.u32 %v250, 7
        %v252 = vsub.s32 0, %v251
        %v253 = vrot.slane %v232, %v252
        %v255 = vmul.f32 %v248, %v253
        %v257 = vlaneseq
        %v258 = vshrl.u32 %v257, 7
        %v259 = vsub.s32 0, %v258
        %v260 = vrot.slane %v233, %v259
        %v262 = vadd.f32 %v255, %v260
        %v263 = vpack.c.bf16 %v262, %v262
        %v264 = vld [vmem:[%s227] sm:$0xff]
        %v265 = vld [vmem:[%s227 + $0x8] sm:$0xff]
        %v266 = vld [vmem:[%s227 + $0x10] sm:$0xff]
        %v267 = vld [vmem:[%s227 + $0x18] sm:$0xff]
        %v272 = vunpack.c.l.b16 %v264
        %v273 = vunpack.c.h.b16 %v264
        %v274 = vunpack.c.l.b16 %v265
        %v275 = vunpack.c.h.b16 %v265
        %v276 = vunpack.c.l.b16 %v266
        %v277 = vunpack.c.h.b16 %v266
        %v278 = vunpack.c.l.b16 %v267
        %v279 = vunpack.c.h.b16 %v267
        %v280 = vpack.c.b16 %v274, %v272
        %v281 = vpack.c.b16 %v275, %v273
        %v282 = vpack.c.b16 %v278, %v276
        %v283 = vpack.c.b16 %v279, %v277
        %v289 = vsel %vm234, %v263, 0
        %291 = vmatprep.subr.bf16.mxu0 %v281
        %292 = vmatpush1.bf16.msra.mxu0 %v280
        %293 = vmatprep.subr.bf16.mxu0 %v283
        %294 = vmatpush1.bf16.msra.mxu0 %v282
        %295 = vmatprep.subr.bf16.mxu0 0
        %296 = vmatpush1.bf16.msra.mxu0 0
        %297 = vmatprep.subr.bf16.mxu0 0
        %298 = vmatpush1.bf16.msra.mxu0 0
        %299 = vmatprep.subr.bf16.mxu0 0
        %300 = vmatpush1.bf16.msra.mxu0 0
        %301 = vmatprep.subr.bf16.mxu0 0
        %302 = vmatpush1.bf16.msra.mxu0 0
        %303 = vmatprep.subr.bf16.mxu0 0
        %304 = vmatpush1.bf16.msra.mxu0 0
        %305 = vmatprep.subr.bf16.mxu0 0
        %306 = vmatpush1.bf16.msra.mxu0 0
        %307 = vmatprep.subr.bf16.mxu0 0
        %308 = vmatpush1.bf16.msra.mxu0 0
        %309 = vmatprep.subr.bf16.mxu0 0
        %310 = vmatpush1.bf16.msra.mxu0 0
        %311 = vmatprep.subr.bf16.mxu0 0
        %312 = vmatpush1.bf16.msra.mxu0 0
        %313 = vmatprep.subr.bf16.mxu0 0
        %314 = vmatpush1.bf16.msra.mxu0 0
        %315 = vmatprep.subr.bf16.mxu0 0
        %316 = vmatpush1.bf16.msra.mxu0 0
        %317 = vmatprep.subr.bf16.mxu0 0
        %318 = vmatpush1.bf16.msra.mxu0 0
        %319 = vmatprep.subr.bf16.mxu0 0
        %320 = vmatpush1.bf16.msra.mxu0 0
        %321 = vmatprep.subr.bf16.mxu0 0
        %322 = vmatpush1.bf16.msra.mxu0 0
        %323 = vmatprep.mubr.bf16.mxu0 0
        %324 = vmatmul.mubr.bf16.gmra.mrb[0].mxu0 %v289
        %v325 = vpop.f32.mrb[0].mxu0
        %v326 = vadd.f32 0.0, %v325
        %v327 = vpop.f32.mrb[0].mxu0
        %v328 = vadd.f32 0.0, %v327
        %v329 = vpop.f32.mrb[0].mxu0
        %v330 = vpop.f32.mrb[0].mxu0
        %331 = vdwg.mxu0
        %332 = vst [vmem:[%s218] sm:$0xff] %v326
        %333 = vst [vmem:[%s218 + $0x8] sm:$0xff] %v328
        %s334 = sand.u32 %s134, 1
        %s335 = scalar_lea.sflag [#allocation3], %s334
        %s336 = sand.u32 %s134, 1
        %s337 = smul.addr %s336, 16
        %s338 = scalar_lea.vmem [#allocation2], %s337
        // Predicated region
        $region37: #{gpt_forward.3} parent=35 // pred_check
          %p339 = pneg %p144
        $region38: #{gpt_forward.3} parent=35 // pred_check_branch
          %341 = sbr.rel (%p339) target = $region40
        $region39: #{gpt_forward.3} parent=35 // pred_region
          %s342 = smul.u32 2, %s23
          %s344 = ssub.s32 256, 256
          %345 = vsyncadd %s335, %s344
          %s346 = smul.addr %s22, 2
          %s347 = sadd.s32 %s342, %s346
          %s348 = smul.addr %s347, 128
          %s349 = scalar_lea.hbm %s4, %s348
          %s351 = sshll.u32 %s338, 4
          %s352 = int_to_ptr.vmem [resolvable:$true] %s351
          %354 = dma.vmem_to_hbm [thread:$0]  %s352, 256, %s349, %s335
        $region40: #{gpt_forward.3} parent=35 // pred_fallthru
          _
      $region36: #{gpt_forward.3} parent=5 // pred_fallthru
        _
      %p355 = scmp.le.s32.totalorder 2, %s13
      // Predicated region
      $region41: #{gpt_forward.3} parent=5 // pred_check
        %p356 = pneg %p355
      $region42: #{gpt_forward.3} parent=5 // pred_check_branch
        %358 = sbr.rel (%p356) target = $region44
      $region43: #{gpt_forward.3} parent=5 // pred_region
        %s359 = ssub.s32 %s13, 2
        // Predicated region
        $region45: #{gpt_forward.3} parent=43 // pred_check
          %p360 = pneg %p150
        $region46: #{gpt_forward.3} parent=43 // pred_check_branch
          %362 = sbr.rel (%p360) target = $region48
        $region47: #{gpt_forward.3} parent=43 // pred_region
          %s363 = sand.u32 %s135, 1
          %s364 = scalar_lea.sflag [#allocation3], %s363
          %s365 = sand.u32 %s135, 1
          %s366 = smul.addr %s365, 16
          %s367 = scalar_lea.vmem [#allocation2], %s366
          %368 = dma.done %s364, 256
        $region48: #{gpt_forward.3} parent=43 // pred_fallthru
          _
      $region44: #{gpt_forward.3} parent=5 // pred_fallthru
        _
    $region6: #{gpt_forward.3} parent=1 // loop_footer
      %s17 = sadd.s32 1, %s13
    $region7: #{gpt_forward.3} parent=1 // loop_footer_branch
      %12 = sbr.rel target = $region3
    $region8: #{gpt_forward.3} parent=1 // loop_exit
      _
    %369 = vsyncpa [#allocation3], 1
    %s370 = scalar_lea.sflag [#allocation3], 1
    %371 = vsyncpa %s370, 1

// kernel: gpt_forward.2
$region0: #{gpt_forward.2}
  #allocation0 [shape = 'u32[]', space=smem, size = 0x4, offset = 0x4, fixed_abs, tag = 'smem constant byte address 0x4 - core index']
  #allocation1 [shape = 'u32[144,128]{1,0:T(1,128)}', space=vmem, size = 0x12000, scoped, tag = 'internal scratch']
  %s0 = inlined_call_operand.vmem [shape: f32[2,8,32], index: 0, kind: input, shape index: {}]
  %s1 = inlined_call_operand.vmem [shape: f32[8,1,32], index: 1, kind: input, shape index: {}]
  %s2 = inlined_call_operand.vmem [shape: f32[8,1,32], index: 2, kind: input, shape index: {}]
  %s3 = inlined_call_operand.vmem [shape: bf16[8,32,96], index: 3, kind: input, shape index: {}]
  %s4 = inlined_call_operand.vmem [shape: f32[8,1,96], index: 4, kind: input, shape index: {}]
  %s5 = inlined_call_operand.vmem [shape: bf16[8,32,32], index: 5, kind: input, shape index: {}]
  %s6 = inlined_call_operand.vmem [shape: f32[8,1,32], index: 6, kind: input, shape index: {}]
  %s7 = inlined_call_operand.vmem [shape: f32[8,1,32], index: 7, kind: input, shape index: {}]
  %s8 = inlined_call_operand.vmem [shape: f32[8,1,32], index: 8, kind: input, shape index: {}]
  %s9 = inlined_call_operand.vmem [shape: bf16[8,32,128], index: 9, kind: input, shape index: {}]
  %s10 = inlined_call_operand.vmem [shape: f32[8,1,128], index: 10, kind: input, shape index: {}]
  %s11 = inlined_call_operand.vmem [shape: bf16[8,128,32], index: 11, kind: input, shape index: {}]
  %s12 = inlined_call_operand.vmem [shape: f32[8,1,32], index: 12, kind: input, shape index: {}]
  %s13 = inlined_call_operand.vmem [shape: f32[2,8,32], index: 13, kind: output, shape index: {}]
  %s14 = sld [smem:[#allocation0]]
  $region89: #{gpt_forward.2} parent=0
    _
  %s16 = ssub.s32 1, %s14
  %s17 = scalar_select 0, %s16, %s14
  loop: start=0, step=1, limit=18
  $region2: #{gpt_forward.2} parent=0 // loop_pre_header
    _
  $region3: #{gpt_forward.2} parent=0 // loop_header
    %s19 = sphi 0, %s23
    %p20 = scmp.ge.s32.totalorder %s19, 18
    %s26 = sphi 0, %s38
    %s27 = sphi 0, %s34
    %s28 = sphi 0, %s26
    %s29 = sphi 0, %s27
    %s30 = sphi 0, %s28
    %s31 = sphi 0, %s29
    %s41 = sphi 0, %s43
    %s44 = sphi 0, %s41
    %s45 = sphi 0, %s44
    %s61 = sphi 0, %s45
    %s67 = sphi 0, %s69
    %s70 = sphi 0, %s67
    %s71 = sphi 0, %s70
    %s87 = sphi 0, %s71
    %s93 = sphi 0, %s95
    %s96 = sphi 0, %s93
    %s97 = sphi 0, %s96
    %s113 = sphi 0, %s97
    %s119 = sphi 0, %s121
    %s122 = sphi 0, %s119
    %s123 = sphi 0, %s122
    %s139 = sphi 0, %s123
    %s145 = sphi 0, %s147
    %s148 = sphi 0, %s145
    %s149 = sphi 0, %s148
    %s165 = sphi 0, %s149
    %s171 = sphi 0, %s173
    %s174 = sphi 0, %s171
    %s175 = sphi 0, %s174
    %s191 = sphi 0, %s175
    %s197 = sphi 0, %s199
    %s200 = sphi 0, %s197
    %s201 = sphi 0, %s200
    %s217 = sphi 0, %s201
    %s223 = sphi 0, %s225
    %s226 = sphi 0, %s223
    %s227 = sphi 0, %s226
    %s243 = sphi 0, %s227
    %s249 = sphi 0, %s251
    %s252 = sphi 0, %s249
    %s253 = sphi 0, %s252
    %s269 = sphi 0, %s253
    %s275 = sphi 0, %s277
    %s278 = sphi 0, %s275
    %s279 = sphi 0, %s278
    %s295 = sphi 0, %s279
    %s301 = sphi 0, %s303
    %s304 = sphi 0, %s301
    %s305 = sphi 0, %s304
    %s321 = sphi 0, %s305
    %s327 = sphi 0, %s329
    %s330 = sphi 0, %s327
    %s331 = sphi 0, %s330
    %s347 = sphi 0, %s331
    %s353 = sphi 0, %s355
    %s356 = sphi 0, %s353
    %s357 = sphi 0, %s356
    %s373 = sphi 0, %s357
    %s379 = sphi 0, %s381
    %s382 = sphi 0, %s379
    %s383 = sphi 0, %s382
    %s399 = sphi 0, %s383
  $region4: #{gpt_forward.2} parent=0 // loop_header_branch
    %22 = sbr.rel (%p20) target = $region8
  $region5: #{gpt_forward.2} parent=0 // loop_body
    %s24 = ssub.s32 %s19, 1
    %s25 = ssub.s32 %s19, 2
    %s32 = sadd.s32 1, %s27
    %p33 = scmp.ge.s32.totalorder %s32, 8
    %s34 = scalar_select %p33, 0, %s32
    %s35 = sadd.s32 1, %s26
    %s36 = scalar_select %p33, %s35, %s26
    %p37 = scmp.ge.s32.totalorder %s36, 2
    %s38 = scalar_select %p37, 0, %s36
    %s39 = ssub.s32 %s26, %s38
    %p40 = scmp.eq.s32.totalorder %s39, 0
    %s42 = sadd.s32 %s41, 1
    %s43 = scalar_select %p40, %s41, %s42
    %p46 = pneg %p40
    %p47 = scmp.eq.s32.totalorder %s19, 15
    %p48 = por %p46, %p47
    %p49 = scmp.ne.s32.totalorder %s41, %s44
    %p50 = scmp.eq.s32.totalorder %s19, 0
    %p51 = por %p49, %p50
    %p52 = scmp.ne.s32.totalorder %s41, %s44
    %p53 = scmp.eq.s32.totalorder %s24, 15
    %p54 = por %p52, %p53
    %p55 = scmp.ne.s32.totalorder %s44, %s45
    %p56 = scmp.eq.s32.totalorder %s24, 0
    %p57 = por %p55, %p56
    %p58 = scmp.ne.s32.totalorder %s44, %s45
    %p59 = scmp.eq.s32.totalorder %s25, 15
    %p60 = por %p58, %p59
    %p62 = scmp.ne.s32.totalorder %s45, %s61
    %p63 = scmp.eq.s32.totalorder %s25, 0
    %p64 = por %p62, %p63
    %s65 = ssub.s32 %s27, %s34
    %p66 = scmp.eq.s32.totalorder %s65, 0
    %s68 = sadd.s32 %s67, 1
    %s69 = scalar_select %p66, %s67, %s68
    %p72 = pneg %p66
    %p73 = scmp.eq.s32.totalorder %s19, 15
    %p74 = por %p72, %p73
    %p75 = scmp.ne.s32.totalorder %s67, %s70
    %p76 = scmp.eq.s32.totalorder %s19, 0
    %p77 = por %p75, %p76
    %p78 = scmp.ne.s32.totalorder %s67, %s70
    %p79 = scmp.eq.s32.totalorder %s24, 15
    %p80 = por %p78, %p79
    %p81 = scmp.ne.s32.totalorder %s70, %s71
    %p82 = scmp.eq.s32.totalorder %s24, 0
    %p83 = por %p81, %p82
    %p84 = scmp.ne.s32.totalorder %s70, %s71
    %p85 = scmp.eq.s32.totalorder %s25, 15
    %p86 = por %p84, %p85
    %p88 = scmp.ne.s32.totalorder %s71, %s87
    %p89 = scmp.eq.s32.totalorder %s25, 0
    %p90 = por %p88, %p89
    %s91 = ssub.s32 %s27, %s34
    %p92 = scmp.eq.s32.totalorder %s91, 0
    %s94 = sadd.s32 %s93, 1
    %s95 = scalar_select %p92, %s93, %s94
    %p98 = pneg %p92
    %p99 = scmp.eq.s32.totalorder %s19, 15
    %p100 = por %p98, %p99
    %p101 = scmp.ne.s32.totalorder %s93, %s96
    %p102 = scmp.eq.s32.totalorder %s19, 0
    %p103 = por %p101, %p102
    %p104 = scmp.ne.s32.totalorder %s93, %s96
    %p105 = scmp.eq.s32.totalorder %s24, 15
    %p106 = por %p104, %p105
    %p107 = scmp.ne.s32.totalorder %s96, %s97
    %p108 = scmp.eq.s32.totalorder %s24, 0
    %p109 = por %p107, %p108
    %p110 = scmp.ne.s32.totalorder %s96, %s97
    %p111 = scmp.eq.s32.totalorder %s25, 15
    %p112 = por %p110, %p111
    %p114 = scmp.ne.s32.totalorder %s97, %s113
    %p115 = scmp.eq.s32.totalorder %s25, 0
    %p116 = por %p114, %p115
    %s117 = ssub.s32 %s27, %s34
    %p118 = scmp.eq.s32.totalorder %s117, 0
    %s120 = sadd.s32 %s119, 1
    %s121 = scalar_select %p118, %s119, %s120
    %p124 = pneg %p118
    %p125 = scmp.eq.s32.totalorder %s19, 15
    %p126 = por %p124, %p125
    %p127 = scmp.ne.s32.totalorder %s119, %s122
    %p128 = scmp.eq.s32.totalorder %s19, 0
    %p129 = por %p127, %p128
    %p130 = scmp.ne.s32.totalorder %s119, %s122
    %p131 = scmp.eq.s32.totalorder %s24, 15
    %p132 = por %p130, %p131
    %p133 = scmp.ne.s32.totalorder %s122, %s123
    %p134 = scmp.eq.s32.totalorder %s24, 0
    %p135 = por %p133, %p134
    %p136 = scmp.ne.s32.totalorder %s122, %s123
    %p137 = scmp.eq.s32.totalorder %s25, 15
    %p138 = por %p136, %p137
    %p140 = scmp.ne.s32.totalorder %s123, %s139
    %p141 = scmp.eq.s32.totalorder %s25, 0
    %p142 = por %p140, %p141
    %s143 = ssub.s32 %s27, %s34
    %p144 = scmp.eq.s32.totalorder %s143, 0
    %s146 = sadd.s32 %s145, 1
    %s147 = scalar_select %p144, %s145, %s146
    %p150 = pneg %p144
    %p151 = scmp.eq.s32.totalorder %s19, 15
    %p152 = por %p150, %p151
    %p153 = scmp.ne.s32.totalorder %s145, %s148
    %p154 = scmp.eq.s32.totalorder %s19, 0
    %p155 = por %p153, %p154
    %p156 = scmp.ne.s32.totalorder %s145, %s148
    %p157 = scmp.eq.s32.totalorder %s24, 15
    %p158 = por %p156, %p157
    %p159 = scmp.ne.s32.totalorder %s148, %s149
    %p160 = scmp.eq.s32.totalorder %s24, 0
    %p161 = por %p159, %p160
    %p162 = scmp.ne.s32.totalorder %s148, %s149
    %p163 = scmp.eq.s32.totalorder %s25, 15
    %p164 = por %p162, %p163
    %p166 = scmp.ne.s32.totalorder %s149, %s165
    %p167 = scmp.eq.s32.totalorder %s25, 0
    %p168 = por %p166, %p167
    %s169 = ssub.s32 %s27, %s34
    %p170 = scmp.eq.s32.totalorder %s169, 0
    %s172 = sadd.s32 %s171, 1
    %s173 = scalar_select %p170, %s171, %s172
    %p176 = pneg %p170
    %p177 = scmp.eq.s32.totalorder %s19, 15
    %p178 = por %p176, %p177
    %p179 = scmp.ne.s32.totalorder %s171, %s174
    %p180 = scmp.eq.s32.totalorder %s19, 0
    %p181 = por %p179, %p180
    %p182 = scmp.ne.s32.totalorder %s171, %s174
    %p183 = scmp.eq.s32.totalorder %s24, 15
    %p184 = por %p182, %p183
    %p185 = scmp.ne.s32.totalorder %s174, %s175
    %p186 = scmp.eq.s32.totalorder %s24, 0
    %p187 = por %p185, %p186
    %p188 = scmp.ne.s32.totalorder %s174, %s175
    %p189 = scmp.eq.s32.totalorder %s25, 15
    %p190 = por %p188, %p189
    %p192 = scmp.ne.s32.totalorder %s175, %s191
    %p193 = scmp.eq.s32.totalorder %s25, 0
    %p194 = por %p192, %p193
    %s195 = ssub.s32 %s27, %s34
    %p196 = scmp.eq.s32.totalorder %s195, 0
    %s198 = sadd.s32 %s197, 1
    %s199 = scalar_select %p196, %s197, %s198
    %p202 = pneg %p196
    %p203 = scmp.eq.s32.totalorder %s19, 15
    %p204 = por %p202, %p203
    %p205 = scmp.ne.s32.totalorder %s197, %s200
    %p206 = scmp.eq.s32.totalorder %s19, 0
    %p207 = por %p205, %p206
    %p208 = scmp.ne.s32.totalorder %s197, %s200
    %p209 = scmp.eq.s32.totalorder %s24, 15
    %p210 = por %p208, %p209
    %p211 = scmp.ne.s32.totalorder %s200, %s201
    %p212 = scmp.eq.s32.totalorder %s24, 0
    %p213 = por %p211, %p212
    %p214 = scmp.ne.s32.totalorder %s200, %s201
    %p215 = scmp.eq.s32.totalorder %s25, 15
    %p216 = por %p214, %p215
    %p218 = scmp.ne.s32.totalorder %s201, %s217
    %p219 = scmp.eq.s32.totalorder %s25, 0
    %p220 = por %p218, %p219
    %s221 = ssub.s32 %s27, %s34
    %p222 = scmp.eq.s32.totalorder %s221, 0
    %s224 = sadd.s32 %s223, 1
    %s225 = scalar_select %p222, %s223, %s224
    %p228 = pneg %p222
    %p229 = scmp.eq.s32.totalorder %s19, 15
    %p230 = por %p228, %p229
    %p231 = scmp.ne.s32.totalorder %s223, %s226
    %p232 = scmp.eq.s32.totalorder %s19, 0
    %p233 = por %p231, %p232
    %p234 = scmp.ne.s32.totalorder %s223, %s226
    %p235 = scmp.eq.s32.totalorder %s24, 15
    %p236 = por %p234, %p235
    %p237 = scmp.ne.s32.totalorder %s226, %s227
    %p238 = scmp.eq.s32.totalorder %s24, 0
    %p239 = por %p237, %p238
    %p240 = scmp.ne.s32.totalorder %s226, %s227
    %p241 = scmp.eq.s32.totalorder %s25, 15
    %p242 = por %p240, %p241
    %p244 = scmp.ne.s32.totalorder %s227, %s243
    %p245 = scmp.eq.s32.totalorder %s25, 0
    %p246 = por %p244, %p245
    %s247 = ssub.s32 %s27, %s34
    %p248 = scmp.eq.s32.totalorder %s247, 0
    %s250 = sadd.s32 %s249, 1
    %s251 = scalar_select %p248, %s249, %s250
    %p254 = pneg %p248
    %p255 = scmp.eq.s32.totalorder %s19, 15
    %p256 = por %p254, %p255
    %p257 = scmp.ne.s32.totalorder %s249, %s252
    %p258 = scmp.eq.s32.totalorder %s19, 0
    %p259 = por %p257, %p258
    %p260 = scmp.ne.s32.totalorder %s249, %s252
    %p261 = scmp.eq.s32.totalorder %s24, 15
    %p262 = por %p260, %p261
    %p263 = scmp.ne.s32.totalorder %s252, %s253
    %p264 = scmp.eq.s32.totalorder %s24, 0
    %p265 = por %p263, %p264
    %p266 = scmp.ne.s32.totalorder %s252, %s253
    %p267 = scmp.eq.s32.totalorder %s25, 15
    %p268 = por %p266, %p267
    %p270 = scmp.ne.s32.totalorder %s253, %s269
    %p271 = scmp.eq.s32.totalorder %s25, 0
    %p272 = por %p270, %p271
    %s273 = ssub.s32 %s27, %s34
    %p274 = scmp.eq.s32.totalorder %s273, 0
    %s276 = sadd.s32 %s275, 1
    %s277 = scalar_select %p274, %s275, %s276
    %p280 = pneg %p274
    %p281 = scmp.eq.s32.totalorder %s19, 15
    %p282 = por %p280, %p281
    %p283 = scmp.ne.s32.totalorder %s275, %s278
    %p284 = scmp.eq.s32.totalorder %s19, 0
    %p285 = por %p283, %p284
    %p286 = scmp.ne.s32.totalorder %s275, %s278
    %p287 = scmp.eq.s32.totalorder %s24, 15
    %p288 = por %p286, %p287
    %p289 = scmp.ne.s32.totalorder %s278, %s279
    %p290 = scmp.eq.s32.totalorder %s24, 0
    %p291 = por %p289, %p290
    %p292 = scmp.ne.s32.totalorder %s278, %s279
    %p293 = scmp.eq.s32.totalorder %s25, 15
    %p294 = por %p292, %p293
    %p296 = scmp.ne.s32.totalorder %s279, %s295
    %p297 = scmp.eq.s32.totalorder %s25, 0
    %p298 = por %p296, %p297
    %s299 = ssub.s32 %s27, %s34
    %p300 = scmp.eq.s32.totalorder %s299, 0
    %s302 = sadd.s32 %s301, 1
    %s303 = scalar_select %p300, %s301, %s302
    %p306 = pneg %p300
    %p307 = scmp.eq.s32.totalorder %s19, 15
    %p308 = por %p306, %p307
    %p309 = scmp.ne.s32.totalorder %s301, %s304
    %p310 = scmp.eq.s32.totalorder %s19, 0
    %p311 = por %p309, %p310
    %p312 = scmp.ne.s32.totalorder %s301, %s304
    %p313 = scmp.eq.s32.totalorder %s24, 15
    %p314 = por %p312, %p313
    %p315 = scmp.ne.s32.totalorder %s304, %s305
    %p316 = scmp.eq.s32.totalorder %s24, 0
    %p317 = por %p315, %p316
    %p318 = scmp.ne.s32.totalorder %s304, %s305
    %p319 = scmp.eq.s32.totalorder %s25, 15
    %p320 = por %p318, %p319
    %p322 = scmp.ne.s32.totalorder %s305, %s321
    %p323 = scmp.eq.s32.totalorder %s25, 0
    %p324 = por %p322, %p323
    %s325 = ssub.s32 %s27, %s34
    %p326 = scmp.eq.s32.totalorder %s325, 0
    %s328 = sadd.s32 %s327, 1
    %s329 = scalar_select %p326, %s327, %s328
    %p332 = pneg %p326
    %p333 = scmp.eq.s32.totalorder %s19, 15
    %p334 = por %p332, %p333
    %p335 = scmp.ne.s32.totalorder %s327, %s330
    %p336 = scmp.eq.s32.totalorder %s19, 0
    %p337 = por %p335, %p336
    %p338 = scmp.ne.s32.totalorder %s327, %s330
    %p339 = scmp.eq.s32.totalorder %s24, 15
    %p340 = por %p338, %p339
    %p341 = scmp.ne.s32.totalorder %s330, %s331
    %p342 = scmp.eq.s32.totalorder %s24, 0
    %p343 = por %p341, %p342
    %p344 = scmp.ne.s32.totalorder %s330, %s331
    %p345 = scmp.eq.s32.totalorder %s25, 15
    %p346 = por %p344, %p345
    %p348 = scmp.ne.s32.totalorder %s331, %s347
    %p349 = scmp.eq.s32.totalorder %s25, 0
    %p350 = por %p348, %p349
    %s351 = ssub.s32 %s27, %s34
    %p352 = scmp.eq.s32.totalorder %s351, 0
    %s354 = sadd.s32 %s353, 1
    %s355 = scalar_select %p352, %s353, %s354
    %p358 = pneg %p352
    %p359 = scmp.eq.s32.totalorder %s19, 15
    %p360 = por %p358, %p359
    %p361 = scmp.ne.s32.totalorder %s353, %s356
    %p362 = scmp.eq.s32.totalorder %s19, 0
    %p363 = por %p361, %p362
    %p364 = scmp.ne.s32.totalorder %s353, %s356
    %p365 = scmp.eq.s32.totalorder %s24, 15
    %p366 = por %p364, %p365
    %p367 = scmp.ne.s32.totalorder %s356, %s357
    %p368 = scmp.eq.s32.totalorder %s24, 0
    %p369 = por %p367, %p368
    %p370 = scmp.ne.s32.totalorder %s356, %s357
    %p371 = scmp.eq.s32.totalorder %s25, 15
    %p372 = por %p370, %p371
    %p374 = scmp.ne.s32.totalorder %s357, %s373
    %p375 = scmp.eq.s32.totalorder %s25, 0
    %p376 = por %p374, %p375
    %s377 = ssub.s32 %s26, %s38
    %p378 = scmp.eq.s32.totalorder %s377, 0
    %s380 = sadd.s32 %s379, 1
    %s381 = scalar_select %p378, %s379, %s380
    %p384 = pneg %p378
    %p385 = scmp.eq.s32.totalorder %s19, 15
    %p386 = por %p384, %p385
    %p387 = scmp.ne.s32.totalorder %s379, %s382
    %p388 = scmp.eq.s32.totalorder %s19, 0
    %p389 = por %p387, %p388
    %p390 = scmp.ne.s32.totalorder %s379, %s382
    %p391 = scmp.eq.s32.totalorder %s24, 15
    %p392 = por %p390, %p391
    %p393 = scmp.ne.s32.totalorder %s382, %s383
    %p394 = scmp.eq.s32.totalorder %s24, 0
    %p395 = por %p393, %p394
    %p396 = scmp.ne.s32.totalorder %s382, %s383
    %p397 = scmp.eq.s32.totalorder %s25, 15
    %p398 = por %p396, %p397
    %p400 = scmp.ne.s32.totalorder %s383, %s399
    %p401 = scmp.eq.s32.totalorder %s25, 0
    %p402 = por %p400, %p401
    %p403 = scmp.le.s32.totalorder 1, %s19
    %p404 = scmp.lt.s32.totalorder %s19, 17
    %p405 = pnand %p403, %p404
    %p406 = pneg %p405
    // Predicated region
    $region9: #{gpt_forward.2} parent=5 // pred_check
      _
    $region10: #{gpt_forward.2} parent=5 // pred_check_branch
      %408 = sbr.rel (%p405) target = $region12
    $region11: #{gpt_forward.2} parent=5 // pred_region
      %s409 = ssub.s32 %s19, 1
    $region12: #{gpt_forward.2} parent=5 // pred_fallthru
      _
    %p410 = scmp.lt.s32.totalorder %s19, 16
    // Predicated region
    $region13: #{gpt_forward.2} parent=5 // pred_check
      %p411 = pneg %p410
    $region14: #{gpt_forward.2} parent=5 // pred_check_branch
      %413 = sbr.rel (%p411) target = $region16
    $region15: #{gpt_forward.2} parent=5 // pred_region
      // Predicated region
      $region17: #{gpt_forward.2} parent=15 // pred_check
        %p414 = pneg %p51
      $region18: #{gpt_forward.2} parent=15 // pred_check_branch
        %416 = sbr.rel (%p414) target = $region20
      $region19: #{gpt_forward.2} parent=15 // pred_region
        %p417 = scmp.lt.s32.totalorder %s26, 1
        %s418 = scalar_select %p417, %s26, 1
        %s419 = smul.addr %s418, 8
        %s420 = scalar_lea.vmem %s0, %s419
      $region20: #{gpt_forward.2} parent=15 // pred_fallthru
        _
      // Predicated region
      $region21: #{gpt_forward.2} parent=15 // pred_check
        %p421 = pneg %p77
      $region22: #{gpt_forward.2} parent=15 // pred_check_branch
        %423 = sbr.rel (%p421) target = $region24
      $region23: #{gpt_forward.2} parent=15 // pred_region
        %p424 = scmp.lt.s32.totalorder %s27, 7
        %s425 = scalar_select %p424, %s27, 7
        %s426 = scalar_lea.vmem %s1, %s425
      $region24: #{gpt_forward.2} parent=15 // pred_fallthru
        _
      // Predicated region
      $region25: #{gpt_forward.2} parent=15 // pred_check
        %p427 = pneg %p103
      $region26: #{gpt_forward.2} parent=15 // pred_check_branch
        %429 = sbr.rel (%p427) target = $region28
      $region27: #{gpt_forward.2} parent=15 // pred_region
        %p430 = scmp.lt.s32.totalorder %s27, 7
        %s431 = scalar_select %p430, %s27, 7
        %s432 = scalar_lea.vmem %s2, %s431
      $region28: #{gpt_forward.2} parent=15 // pred_fallthru
        _
      // Predicated region
      $region29: #{gpt_forward.2} parent=15 // pred_check
        %p433 = pneg %p129
      $region30: #{gpt_forward.2} parent=15 // pred_check_branch
        %435 = sbr.rel (%p433) target = $region32
      $region31: #{gpt_forward.2} parent=15 // pred_region
        %p436 = scmp.lt.s32.totalorder %s27, 7
        %s437 = scalar_select %p436, %s27, 7
        %s438 = smul.addr %s437, 4
        %s439 = smul.addr %s438, 4
        %s440 = scalar_lea.vmem %s3, %s439
      $region32: #{gpt_forward.2} parent=15 // pred_fallthru
        _
      // Predicated region
      $region33: #{gpt_forward.2} parent=15 // pred_check
        %p441 = pneg %p155
      $region34: #{gpt_forward.2} parent=15 // pred_check_branch
        %443 = sbr.rel (%p441) target = $region36
      $region35: #{gpt_forward.2} parent=15 // pred_region
        %p444 = scmp.lt.s32.totalorder %s27, 7
        %s445 = scalar_select %p444, %s27, 7
        %s446 = scalar_lea.vmem %s4, %s445
      $region36: #{gpt_forward.2} parent=15 // pred_fallthru
        _
      // Predicated region
      $region37: #{gpt_forward.2} parent=15 // pred_check
        %p447 = pneg %p181
      $region38: #{gpt_forward.2} parent=15 // pred_check_branch
        %449 = sbr.rel (%p447) target = $region40
      $region39: #{gpt_forward.2} parent=15 // pred_region
        %p450 = scmp.lt.s32.totalorder %s27, 7
        %s451 = scalar_select %p450, %s27, 7
        %s452 = smul.addr %s451, 4
        %s453 = smul.addr %s452, 4
        %s454 = scalar_lea.vmem %s5, %s453
      $region40: #{gpt_forward.2} parent=15 // pred_fallthru
        _
      // Predicated region
      $region41: #{gpt_forward.2} parent=15 // pred_check
        %p455 = pneg %p207
      $region42: #{gpt_forward.2} parent=15 // pred_check_branch
        %457 = sbr.rel (%p455) target = $region44
      $region43: #{gpt_forward.2} parent=15 // pred_region
        %p458 = scmp.lt.s32.totalorder %s27, 7
        %s459 = scalar_select %p458, %s27, 7
        %s460 = scalar_lea.vmem %s6, %s459
      $region44: #{gpt_forward.2} parent=15 // pred_fallthru
        _
      // Predicated region
      $region45: #{gpt_forward.2} parent=15 // pred_check
        %p461 = pneg %p233
      $region46: #{gpt_forward.2} parent=15 // pred_check_branch
        %463 = sbr.rel (%p461) target = $region48
      $region47: #{gpt_forward.2} parent=15 // pred_region
        %p464 = scmp.lt.s32.totalorder %s27, 7
        %s465 = scalar_select %p464, %s27, 7
        %s466 = scalar_lea.vmem %s7, %s465
      $region48: #{gpt_forward.2} parent=15 // pred_fallthru
        _
      // Predicated region
      $region49: #{gpt_forward.2} parent=15 // pred_check
        %p467 = pneg %p259
      $region50: #{gpt_forward.2} parent=15 // pred_check_branch
        %469 = sbr.rel (%p467) target = $region52
      $region51: #{gpt_forward.2} parent=15 // pred_region
        %p470 = scmp.lt.s32.totalorder %s27, 7
        %s471 = scalar_select %p470, %s27, 7
        %s472 = scalar_lea.vmem %s8, %s471
      $region52: #{gpt_forward.2} parent=15 // pred_fallthru
        _
      // Predicated region
      $region53: #{gpt_forward.2} parent=15 // pred_check
        %p473 = pneg %p285
      $region54: #{gpt_forward.2} parent=15 // pred_check_branch
        %475 = sbr.rel (%p473) target = $region56
      $region55: #{gpt_forward.2} parent=15 // pred_region
        %p476 = scmp.lt.s32.totalorder %s27, 7
        %s477 = scalar_select %p476, %s27, 7
        %s478 = smul.addr %s477, 4
        %s479 = smul.addr %s478, 4
        %s480 = scalar_lea.vmem %s9, %s479
      $region56: #{gpt_forward.2} parent=15 // pred_fallthru
        _
      // Predicated region
      $region57: #{gpt_forward.2} parent=15 // pred_check
        %p481 = pneg %p311
      $region58: #{gpt_forward.2} parent=15 // pred_check_branch
        %483 = sbr.rel (%p481) target = $region60
      $region59: #{gpt_forward.2} parent=15 // pred_region
        %p484 = scmp.lt.s32.totalorder %s27, 7
        %s485 = scalar_select %p484, %s27, 7
        %s486 = scalar_lea.vmem %s10, %s485
      $region60: #{gpt_forward.2} parent=15 // pred_fallthru
        _
      // Predicated region
      $region61: #{gpt_forward.2} parent=15 // pred_check
        %p487 = pneg %p337
      $region62: #{gpt_forward.2} parent=15 // pred_check_branch
        %489 = sbr.rel (%p487) target = $region64
      $region63: #{gpt_forward.2} parent=15 // pred_region
        %p490 = scmp.lt.s32.totalorder %s27, 7
        %s491 = scalar_select %p490, %s27, 7
        %s492 = smul.addr %s491, 16
        %s493 = smul.addr %s492, 4
        %s494 = scalar_lea.vmem %s11, %s493
      $region64: #{gpt_forward.2} parent=15 // pred_fallthru
        _
      // Predicated region
      $region65: #{gpt_forward.2} parent=15 // pred_check
        %p495 = pneg %p363
      $region66: #{gpt_forward.2} parent=15 // pred_check_branch
        %497 = sbr.rel (%p495) target = $region68
      $region67: #{gpt_forward.2} parent=15 // pred_region
        %p498 = scmp.lt.s32.totalorder %s27, 7
        %s499 = scalar_select %p498, %s27, 7
        %s500 = scalar_lea.vmem %s12, %s499
      $region68: #{gpt_forward.2} parent=15 // pred_fallthru
        _
    $region16: #{gpt_forward.2} parent=5 // pred_fallthru
      _
    %p501 = scmp.le.s32.totalorder 1, %s19
    %p502 = scmp.lt.s32.totalorder %s19, 17
    %p503 = pnand %p501, %p502
    %p504 = pneg %p503
    // Predicated region
    $region69: #{gpt_forward.2} parent=5 // pred_check
      _
    $region70: #{gpt_forward.2} parent=5 // pred_check_branch
      %506 = sbr.rel (%p503) target = $region72
    $region71: #{gpt_forward.2} parent=5 // pred_region
      %s507 = ssub.s32 %s19, 1
      %p508 = scmp.lt.s32.totalorder %s28, 1
      %s509 = scalar_select %p508, %s28, 1
      %s510 = smul.addr %s509, 8
      %s511 = scalar_lea.vmem %s0, %s510
      %p512 = pneg %p57
      %p513 = pneg %p54
      %p514 = scmp.lt.s32.totalorder %s29, 7
      %s515 = scalar_select %p514, %s29, 7
      %s516 = scalar_lea.vmem %s1, %s515
      %p517 = pneg %p83
      %p518 = pneg %p80
      %p519 = scmp.lt.s32.totalorder %s29, 7
      %s520 = scalar_select %p519, %s29, 7
      %s521 = scalar_lea.vmem %s2, %s520
      %p522 = pneg %p109
      %p523 = pneg %p106
      %p524 = scmp.lt.s32.totalorder %s29, 7
      %s525 = scalar_select %p524, %s29, 7
      %s526 = smul.addr %s525, 4
      %s527 = smul.addr %s526, 4
      %s528 = scalar_lea.vmem %s3, %s527
      %p529 = pneg %p135
      %p530 = pneg %p132
      %p531 = scmp.lt.s32.totalorder %s29, 7
      %s532 = scalar_select %p531, %s29, 7
      %s533 = scalar_lea.vmem %s4, %s532
      %p534 = pneg %p161
      %p535 = pneg %p158
      %p536 = scmp.lt.s32.totalorder %s29, 7
      %s537 = scalar_select %p536, %s29, 7
      %s538 = smul.addr %s537, 4
      %s539 = smul.addr %s538, 4
      %s540 = scalar_lea.vmem %s5, %s539
      %p541 = pneg %p187
      %p542 = pneg %p184
      %p543 = scmp.lt.s32.totalorder %s29, 7
      %s544 = scalar_select %p543, %s29, 7
      %s545 = scalar_lea.vmem %s6, %s544
      %p546 = pneg %p213
      %p547 = pneg %p210
      %p548 = scmp.lt.s32.totalorder %s29, 7
      %s549 = scalar_select %p548, %s29, 7
      %s550 = scalar_lea.vmem %s7, %s549
      %p551 = pneg %p239
      %p552 = pneg %p236
      %p553 = scmp.lt.s32.totalorder %s29, 7
      %s554 = scalar_select %p553, %s29, 7
      %s555 = scalar_lea.vmem %s8, %s554
      %p556 = pneg %p265
      %p557 = pneg %p262
      %p558 = scmp.lt.s32.totalorder %s29, 7
      %s559 = scalar_select %p558, %s29, 7
      %s560 = smul.addr %s559, 4
      %s561 = smul.addr %s560, 4
      %s562 = scalar_lea.vmem %s9, %s561
      %p563 = pneg %p291
      %p564 = pneg %p288
      %p565 = scmp.lt.s32.totalorder %s29, 7
      %s566 = scalar_select %p565, %s29, 7
      %s567 = scalar_lea.vmem %s10, %s566
      %p568 = pneg %p317
      %p569 = pneg %p314
      %p570 = scmp.lt.s32.totalorder %s29, 7
      %s571 = scalar_select %p570, %s29, 7
      %s572 = smul.addr %s571, 16
      %s573 = smul.addr %s572, 4
      %s574 = scalar_lea.vmem %s11, %s573
      %p575 = pneg %p343
      %p576 = pneg %p340
      %p577 = scmp.lt.s32.totalorder %s29, 7
      %s578 = scalar_select %p577, %s29, 7
      %s579 = scalar_lea.vmem %s12, %s578
      %p580 = pneg %p369
      %p581 = pneg %p366
      %p582 = pneg %p395
      %p583 = pneg %p392
      %p584 = scmp.lt.s32.totalorder %s28, 1
      %s585 = scalar_select %p584, %s28, 1
      %s586 = smul.addr %s585, 8
      %s587 = scalar_lea.vmem %s13, %s586
      %p588 = scmp.lt.s32.totalorder %s28, 1
      %s589 = scalar_select %p588, %s28, 1
      %s590 = smul.addr %s589, 8
      %s591 = scalar_lea.vmem %s0, %s590
      %p592 = scmp.lt.s32.totalorder %s29, 7
      %s593 = scalar_select %p592, %s29, 7
      %s594 = scalar_lea.vmem %s1, %s593
      %p595 = scmp.lt.s32.totalorder %s29, 7
      %s596 = scalar_select %p595, %s29, 7
      %s597 = scalar_lea.vmem %s2, %s596
      %p598 = scmp.lt.s32.totalorder %s29, 7
      %s599 = scalar_select %p598, %s29, 7
      %s600 = smul.addr %s599, 4
      %s601 = smul.addr %s600, 4
      %s602 = scalar_lea.vmem %s3, %s601
      %p603 = scmp.lt.s32.totalorder %s29, 7
      %s604 = scalar_select %p603, %s29, 7
      %s605 = scalar_lea.vmem %s4, %s604
      %p606 = scmp.lt.s32.totalorder %s29, 7
      %s607 = scalar_select %p606, %s29, 7
      %s608 = smul.addr %s607, 4
      %s609 = smul.addr %s608, 4
      %s610 = scalar_lea.vmem %s5, %s609
      %p611 = scmp.lt.s32.totalorder %s29, 7
      %s612 = scalar_select %p611, %s29, 7
      %s613 = scalar_lea.vmem %s6, %s612
      %p614 = scmp.lt.s32.totalorder %s29, 7
      %s615 = scalar_select %p614, %s29, 7
      %s616 = scalar_lea.vmem %s7, %s615
      %p617 = scmp.lt.s32.totalorder %s29, 7
      %s618 = scalar_select %p617, %s29, 7
      %s619 = scalar_lea.vmem %s8, %s618
      %p620 = scmp.lt.s32.totalorder %s29, 7
      %s621 = scalar_select %p620, %s29, 7
      %s622 = smul.addr %s621, 4
      %s623 = smul.addr %s622, 4
      %s624 = scalar_lea.vmem %s9, %s623
      %p625 = scmp.lt.s32.totalorder %s29, 7
      %s626 = scalar_select %p625, %s29, 7
      %s627 = scalar_lea.vmem %s10, %s626
      %p628 = scmp.lt.s32.totalorder %s29, 7
      %s629 = scalar_select %p628, %s29, 7
      %s630 = smul.addr %s629, 16
      %s631 = smul.addr %s630, 4
      %s632 = scalar_lea.vmem %s11, %s631
      %p633 = scmp.lt.s32.totalorder %s29, 7
      %s634 = scalar_select %p633, %s29, 7
      %s635 = scalar_lea.vmem %s12, %s634
      %p636 = scmp.lt.s32.totalorder %s28, 1
      %s637 = scalar_select %p636, %s28, 1
      %s638 = smul.addr %s637, 8
      %s639 = scalar_lea.vmem %s13, %s638
      %p641 = scmp.eq.s32.totalorder %s29, 0
      // Predicated region
      $region73: #{gpt_forward.2} parent=71 // pred_check
        %p642 = pneg %p641
      $region74: #{gpt_forward.2} parent=71 // pred_check_branch
        %644 = sbr.rel (%p642) target = $region76
      $region75: #{gpt_forward.2} parent=71 // pred_region
        %v645 = vld [vmem:[%s591] sm:$0xff]
        %vm646 = vcmask 261120
        %647 = vst.msk [vmem:[%s639] sm:$0xff] %vm646, %v645
      $region76: #{gpt_forward.2} parent=71 // pred_fallthru
        _
      %v648 = vld [vmem:[%s639] sm:$0xff]
      %v649 = vld [vmem:[%s594] sm:$0x1]
      %v650 = vld [vmem:[%s597] sm:$0x1]
      %vm651 = vcmask 261120
      %v652 = vsel %vm651, %v648, 0.0
      %653 = vadd.xlane.f32.xlu0 %v652
      %v654 = vpop.xlane.xlu0 %653
      %v655 = vrcp.pop 32.0
      %v656 = vmul.f32 %v654, %v655
      %v657 = vsub.f32 %v648, %v656
      %v658 = vmul.f32 %v657, %v657
      %v659 = vsel %vm651, %v658, 0.0
      %660 = vadd.xlane.f32.xlu0 %v659
      %v661 = vpop.xlane.xlu0 %660
      %v662 = vmul.f32 %v661, %v655
      %v663 = vadd.f32 %v662, 1e-05
      %v664 = vrsqrt.pop %v663
      %v665 = vmul.f32 %v657, %v664
      %v667 = vlaneseq
      %v668 = vshrl.u32 %v667, 7
      %v669 = vsub.s32 0, %v668
      %v670 = vrot.slane %v649, %v669
      %v672 = vmul.f32 %v665, %v670
      %v674 = vlaneseq
      %v675 = vshrl.u32 %v674, 7
      %v676 = vsub.s32 0, %v675
      %v677 = vrot.slane %v650, %v676
      %v679 = vadd.f32 %v672, %v677
      %v680 = vpack.c.bf16 %v679, %v679
      %v681 = vld [vmem:[%s602] sm:$0xf]
      %v682 = vld [vmem:[%s602 + $0x4] sm:$0xf]
      %v683 = vld [vmem:[%s602 + $0x8] sm:$0xf]
      %v684 = vld [vmem:[%s602 + $0xc] sm:$0xf]
      %v685 = vld [vmem:[%s605] sm:$0x1]
      %v687 = vlaneseq
      %v688 = vshrl.u32 %v687, 7
      %v689 = vsub.s32 0, %v688
      %v690 = vrot.slane %v685, %v689
      %v696 = vunpack.c.l.b16 %v681
      %v697 = vunpack.c.l.b16 %v682
      %v698 = vunpack.c.l.b16 %v683
      %v699 = vunpack.c.l.b16 %v684
      %v700 = vpack.c.b16 %v697, %v696
      %v701 = vpack.c.b16 %v699, %v698
      %v705 = vsel %vm651, %v680, 0
      %707 = vmatprep.subr.bf16.mxu0 0
      %708 = vmatpush1.bf16.msra.mxu0 %v700
      %709 = vmatprep.subr.bf16.mxu0 0
      %710 = vmatpush1.bf16.msra.mxu0 %v701
      %711 = vmatprep.subr.bf16.mxu0 0
      %712 = vmatpush1.bf16.msra.mxu0 0
      %713 = vmatprep.subr.bf16.mxu0 0
      %714 = vmatpush1.bf16.msra.mxu0 0
      %715 = vmatprep.subr.bf16.mxu0 0
      %716 = vmatpush1.bf16.msra.mxu0 0
      %717 = vmatprep.subr.bf16.mxu0 0
      %718 = vmatpush1.bf16.msra.mxu0 0
      %719 = vmatprep.subr.bf16.mxu0 0
      %720 = vmatpush1.bf16.msra.mxu0 0
      %721 = vmatprep.subr.bf16.mxu0 0
      %722 = vmatpush1.bf16.msra.mxu0 0
      %723 = vmatprep.subr.bf16.mxu0 0
      %724 = vmatpush1.bf16.msra.mxu0 0
      %725 = vmatprep.subr.bf16.mxu0 0
      %726 = vmatpush1.bf16.msra.mxu0 0
      %727 = vmatprep.subr.bf16.mxu0 0
      %728 = vmatpush1.bf16.msra.mxu0 0
      %729 = vmatprep.subr.bf16.mxu0 0
      %730 = vmatpush1.bf16.msra.mxu0 0
      %731 = vmatprep.subr.bf16.mxu0 0
      %732 = vmatpush1.bf16.msra.mxu0 0
      %733 = vmatprep.subr.bf16.mxu0 0
      %734 = vmatpush1.bf16.msra.mxu0 0
      %735 = vmatprep.subr.bf16.mxu0 0
      %736 = vmatpush1.bf16.msra.mxu0 0
      %737 = vmatprep.subr.bf16.mxu0 0
      %738 = vmatpush1.bf16.msra.mxu0 0
      %739 = vmatprep.mubr.bf16.mxu0 0
      %740 = vmatmul.mubr.bf16.gmra.mrb[0].mxu0 %v705
      %v741 = vpop.f32.mrb[0].mxu0
      %v742 = vadd.f32 %v690, %v741
      %v743 = vpop.f32.mrb[0].mxu0
      %v744 = vpop.f32.mrb[0].mxu0
      %v745 = vpop.f32.mrb[0].mxu0
      %746 = vdwg.mxu0
      %v747 = vlaneseq
      %v748 = vshrl.u32 %v747, 7
      %v749 = vlaneseq
      %v750 = vand.u32 %v749, 127
      %vm751 = vcmp.le.s32.totalorder %v750, %v748
      %v752 = vpack.c.bf16 %v742, %v742
      %754 = vrot.lane.b32.xlu0 %v752, 96
      %v755 = vpop.permute.xlu0 %754
      %vm756 = vcmask 31744
      %v758 = vsel %vm756, %v752, 0
      %v761 = vsel %vm756, %v755, 0
      %763 = vmatprep.subr.bf16.mxu0 0
      %764 = vmatpush1.bf16.xpose.msra.mxu0 %v761
      %765 = vmatprep.subr.bf16.mxu0 0
      %766 = vmatpush1.bf16.xpose.msra.mxu0 0
      %767 = vmatprep.subr.bf16.mxu0 0
      %768 = vmatpush1.bf16.xpose.msra.mxu0 0
      %769 = vmatprep.subr.bf16.mxu0 0
      %770 = vmatpush1.bf16.xpose.msra.mxu0 0
      %771 = vmatprep.subr.bf16.mxu0 0
      %772 = vmatpush1.bf16.xpose.msra.mxu0 0
      %773 = vmatprep.subr.bf16.mxu0 0
      %774 = vmatpush1.bf16.xpose.msra.mxu0 0
      %775 = vmatprep.subr.bf16.mxu0 0
      %776 = vmatpush1.bf16.xpose.msra.mxu0 0
      %777 = vmatprep.subr.bf16.mxu0 0
      %778 = vmatpush1.bf16.xpose.msra.mxu0 0
      %779 = vmatprep.subr.bf16.mxu0 0
      %780 = vmatpush1.bf16.xpose.msra.mxu0 0
      %781 = vmatprep.subr.bf16.mxu0 0
      %782 = vmatpush1.bf16.xpose.msra.mxu0 0
      %783 = vmatprep.subr.bf16.mxu0 0
      %784 = vmatpush1.bf16.xpose.msra.mxu0 0
      %785 = vmatprep.subr.bf16.mxu0 0
      %786 = vmatpush1.bf16.xpose.msra.mxu0 0
      %787 = vmatprep.subr.bf16.mxu0 0
      %788 = vmatpush1.bf16.xpose.msra.mxu0 0
      %789 = vmatprep.subr.bf16.mxu0 0
      %790 = vmatpush1.bf16.xpose.msra.mxu0 0
      %791 = vmatprep.subr.bf16.mxu0 0
      %792 = vmatpush1.bf16.xpose.msra.mxu0 0
      %793 = vmatprep.subr.bf16.mxu0 0
      %794 = vmatpush1.bf16.xpose.msra.mxu0 0
      %795 = vmatprep.mubr.bf16.mxu0 0
      %796 = vmatmul.mubr.bf16.gmra.mrb[0].mxu0 %v758
      %v797 = vpop.f32.mrb[0].mxu0
      %v798 = vadd.f32 0.0, %v797
      %v799 = vpop.f32.mrb[0].mxu0
      %v800 = vpop.f32.mrb[0].mxu0
      %v801 = vpop.f32.mrb[0].mxu0
      %802 = vdwg.mxu0
      %v803 = vsel %vm751, %v798, -1e+30
      %vm804 = vcmask 64512
      %v805 = vsel %vm804, %v803, -inf
      %806 = vmax.xlane.f32.xlu0 %v805
      %v807 = vpop.xlane.xlu0 %806
      %v808 = vsub.f32 %v803, %v807
      %v809 = vmul.f32 %v808, 1.442695
      %v810 = vpow.pop %v809
      %v811 = vsel %vm804, %v810, 0.0
      %812 = vadd.xlane.f32.xlu0 %v811
      %v813 = vpop.xlane.xlu0 %812
      %v814 = vrcp.pop %v813
      %v815 = vmul.f32 %v810, %v814
      %v816 = vpack.c.bf16 %v815, %v815
      %817 = vrot.lane.b32.xlu0 %v752, 64
      %v818 = vpop.permute.xlu0 %817
      %v820 = vsel %vm804, %v816, 0
      %vm822 = vcmask 1043456
      %v824 = vsel %vm822, %v818, 0
      %826 = vmatprep.subr.bf16.mxu0 0
      %827 = vmatpush1.bf16.msra.mxu0 %v824
      %828 = vmatprep.subr.bf16.mxu0 0
      %829 = vmatpush1.bf16.msra.mxu0 0
      %830 = vmatprep.subr.bf16.mxu0 0
      %831 = vmatpush1.bf16.msra.mxu0 0
      %832 = vmatprep.subr.bf16.mxu0 0
      %833 = vmatpush1.bf16.msra.mxu0 0
      %834 = vmatprep.subr.bf16.mxu0 0
      %835 = vmatpush1.bf16.msra.mxu0 0
      %836 = vmatprep.subr.bf16.mxu0 0
      %837 = vmatpush1.bf16.msra.mxu0 0
      %838 = vmatprep.subr.bf16.mxu0 0
      %839 = vmatpush1.bf16.msra.mxu0 0
      %840 = vmatprep.subr.bf16.mxu0 0
      %841 = vmatpush1.bf16.msra.mxu0 0
      %842 = vmatprep.subr.bf16.mxu0 0
      %843 = vmatpush1.bf16.msra.mxu0 0
      %844 = vmatprep.subr.bf16.mxu0 0
      %845 = vmatpush1.bf16.msra.mxu0 0
      %846 = vmatprep.subr.bf16.mxu0 0
      %847 = vmatpush1.bf16.msra.mxu0 0
      %848 = vmatprep.subr.bf16.mxu0 0
      %849 = vmatpush1.bf16.msra.mxu0 0
      %850 = vmatprep.subr.bf16.mxu0 0
      %851 = vmatpush1.bf16.msra.mxu0 0
      %852 = vmatprep.subr.bf16.mxu0 0
      %853 = vmatpush1.bf16.msra.mxu0 0
      %854 = vmatprep.subr.bf16.mxu0 0
      %855 = vmatpush1.bf16.msra.mxu0 0
      %856 = vmatprep.subr.bf16.mxu0 0
      %857 = vmatpush1.bf16.msra.mxu0 0
      %858 = vmatprep.mubr.bf16.mxu0 0
      %859 = vmatmul.mubr.bf16.gmra.mrb[0].mxu0 %v820
      %v860 = vpop.f32.mrb[0].mxu0
      %v861 = vadd.f32 0.0, %v860
      %v862 = vpop.f32.mrb[0].mxu0
      %v863 = vpop.f32.mrb[0].mxu0
      %v864 = vpop.f32.mrb[0].mxu0
      %865 = vdwg.mxu0
      %866 = vrot.lane.b32.xlu0 %v752, 124
      %v867 = vpop.permute.xlu0 %866
      %868 = vrot.lane.b32.xlu0 %v752, 92
      %v869 = vpop.permute.xlu0 %868
      %v871 = vsel %vm756, %v867, 0
      %v874 = vsel %vm756, %v869, 0
      %876 = vmatprep.subr.bf16.mxu0 0
      %877 = vmatpush1.bf16.xpose.msra.mxu0 %v874
      %878 = vmatprep.subr.bf16.mxu0 0
      %879 = vmatpush1.bf16.xpose.msra.mxu0 0
      %880 = vmatprep.subr.bf16.mxu0 0
      %881 = vmatpush1.bf16.xpose.msra.mxu0 0
      %882 = vmatprep.subr.bf16.mxu0 0
      %883 = vmatpush1.bf16.xpose.msra.mxu0 0
      %884 = vmatprep.subr.bf16.mxu0 0
      %885 = vmatpush1.bf16.xpose.msra.mxu0 0
      %886 = vmatprep.subr.bf16.mxu0 0
      %887 = vmatpush1.bf16.xpose.msra.mxu0 0
      %888 = vmatprep.subr.bf16.mxu0 0
      %889 = vmatpush1.bf16.xpose.msra.mxu0 0
      %890 = vmatprep.subr.bf16.mxu0 0
      %891 = vmatpush1.bf16.xpose.msra.mxu0 0
      %892 = vmatprep.subr.bf16.mxu0 0
      %893 = vmatpush1.bf16.xpose.msra.mxu0 0
      %894 = vmatprep.subr.bf16.mxu0 0
      %895 = vmatpush1.bf16.xpose.msra.mxu0 0
      %896 = vmatprep.subr.bf16.mxu0 0
      %897 = vmatpush1.bf16.xpose.msra.mxu0 0
      %898 = vmatprep.subr.bf16.mxu0 0
      %899 = vmatpush1.bf16.xpose.msra.mxu0 0
      %900 = vmatprep.subr.bf16.mxu0 0
      %901 = vmatpush1.bf16.xpose.msra.mxu0 0
      %902 = vmatprep.subr.bf16.mxu0 0
      %903 = vmatpush1.bf16.xpose.msra.mxu0 0
      %904 = vmatprep.subr.bf16.mxu0 0
      %905 = vmatpush1.bf16.xpose.msra.mxu0 0
      %906 = vmatprep.subr.bf16.mxu0 0
      %907 = vmatpush1.bf16.xpose.msra.mxu0 0
      %908 = vmatprep.mubr.bf16.mxu0 0
      %909 = vmatmul.mubr.bf16.gmra.mrb[0].mxu0 %v871
      %v910 = vpop.f32.mrb[0].mxu0
      %v911 = vadd.f32 0.0, %v910
      %v912 = vpop.f32.mrb[0].mxu0
      %v913 = vpop.f32.mrb[0].mxu0
      %v914 = vpop.f32.mrb[0].mxu0
      %915 = vdwg.mxu0
      %v916 = vsel %vm751, %v911, -1e+30
      %v917 = vsel %vm804, %v916, -inf
      %918 = vmax.xlane.f32.xlu0 %v917
      %v919 = vpop.xlane.xlu0 %918
      %v920 = vsub.f32 %v916, %v919
      %v921 = vmul.f32 %v920, 1.442695
      %v922 = vpow.pop %v921
      %v923 = vsel %vm804, %v922, 0.0
      %924 = vadd.xlane.f32.xlu0 %v923
      %v925 = vpop.xlane.xlu0 %924
      %v926 = vrcp.pop %v925
      %v927 = vmul.f32 %v922, %v926
      %v928 = vpack.c.bf16 %v927, %v927
      %929 = vrot.lane.b32.xlu0 %v752, 60
      %v930 = vpop.permute.xlu0 %929
      %v932 = vsel %vm804, %v928, 0
      %v935 = vsel %vm822, %v930, 0
      %937 = vmatprep.subr.bf16.mxu0 0
      %938 = vmatpush1.bf16.msra.mxu0 %v935
      %939 = vmatprep.subr.bf16.mxu0 0
      %940 = vmatpush1.bf16.msra.mxu0 0
      %941 = vmatprep.subr.bf16.mxu0 0
      %942 = vmatpush1.bf16.msra.mxu0 0
      %943 = vmatprep.subr.bf16.mxu0 0
      %944 = vmatpush1.bf16.msra.mxu0 0
      %945 = vmatprep.subr.bf16.mxu0 0
      %946 = vmatpush1.bf16.msra.mxu0 0
      %947 = vmatprep.subr.bf16.mxu0 0
      %948 = vmatpush1.bf16.msra.mxu0 0
      %949 = vmatprep.subr.bf16.mxu0 0
      %950 = vmatpush1.bf16.msra.mxu0 0
      %951 = vmatprep.subr.bf16.mxu0 0
      %952 = vmatpush1.bf16.msra.mxu0 0
      %953 = vmatprep.subr.bf16.mxu0 0
      %954 = vmatpush1.bf16.msra.mxu0 0
      %955 = vmatprep.subr.bf16.mxu0 0
      %956 = vmatpush1.bf16.msra.mxu0 0
      %957 = vmatprep.subr.bf16.mxu0 0
      %958 = vmatpush1.bf16.msra.mxu0 0
      %959 = vmatprep.subr.bf16.mxu0 0
      %960 = vmatpush1.bf16.msra.mxu0 0
      %961 = vmatprep.subr.bf16.mxu0 0
      %962 = vmatpush1.bf16.msra.mxu0 0
      %963 = vmatprep.subr.bf16.mxu0 0
      %964 = vmatpush1.bf16.msra.mxu0 0
      %965 = vmatprep.subr.bf16.mxu0 0
      %966 = vmatpush1.bf16.msra.mxu0 0
      %967 = vmatprep.subr.bf16.mxu0 0
      %968 = vmatpush1.bf16.msra.mxu0 0
      %969 = vmatprep.mubr.bf16.mxu0 0
      %970 = vmatmul.mubr.bf16.gmra.mrb[0].mxu0 %v932
      %v971 = vpop.f32.mrb[0].mxu0
      %v972 = vadd.f32 0.0, %v971
      %v973 = vpop.f32.mrb[0].mxu0
      %v974 = vpop.f32.mrb[0].mxu0
      %v975 = vpop.f32.mrb[0].mxu0
      %976 = vdwg.mxu0
      %977 = vrot.lane.b32.xlu0 %v752, 120
      %v978 = vpop.permute.xlu0 %977
      %979 = vrot.lane.b32.xlu0 %v752, 88
      %v980 = vpop.permute.xlu0 %979
      %v982 = vsel %vm756, %v978, 0
      %v985 = vsel %vm756, %v980, 0
      %987 = vmatprep.subr.bf16.mxu0 0
      %988 = vmatpush1.bf16.xpose.msra.mxu0 %v985
      %989 = vmatprep.subr.bf16.mxu0 0
      %990 = vmatpush1.bf16.xpose.msra.mxu0 0
      %991 = vmatprep.subr.bf16.mxu0 0
      %992 = vmatpush1.bf16.xpose.msra.mxu0 0
      %993 = vmatprep.subr.bf16.mxu0 0
      %994 = vmatpush1.bf16.xpose.msra.mxu0 0
      %995 = vmatprep.subr.bf16.mxu0 0
      %996 = vmatpush1.bf16.xpose.msra.mxu0 0
      %997 = vmatprep.subr.bf16.mxu0 0
      %998 = vmatpush1.bf16.xpose.msra.mxu0 0
      %999 = vmatprep.subr.bf16.mxu0 0
      %1000 = vmatpush1.bf16.xpose.msra.mxu0 0
      %1001 = vmatprep.subr.bf16.mxu0 0
      %1002 = vmatpush1.bf16.xpose.msra.mxu0 0
      %1003 = vmatprep.subr.bf16.mxu0 0
      %1004 = vmatpush1.bf16.xpose.msra.mxu0 0
      %1005 = vmatprep.subr.bf16.mxu0 0
      %1006 = vmatpush1.bf16.xpose.msra.mxu0 0
      %1007 = vmatprep.subr.bf16.mxu0 0
      %1008 = vmatpush1.bf16.xpose.msra.mxu0 0
      %1009 = vmatprep.subr.bf16.mxu0 0
      %1010 = vmatpush1.bf16.xpose.msra.mxu0 0
      %1011 = vmatprep.subr.bf16.mxu0 0
      %1012 = vmatpush1.bf16.xpose.msra.mxu0 0
      %1013 = vmatprep.subr.bf16.mxu0 0
      %1014 = vmatpush1.bf16.xpose.msra.mxu0 0
      %1015 = vmatprep.subr.bf16.mxu0 0
      %1016 = vmatpush1.bf16.xpose.msra.mxu0 0
      %1017 = vmatprep.subr.bf16.mxu0 0
      %1018 = vmatpush1.bf16.xpose.msra.mxu0 0
      %1019 = vmatprep.mubr.bf16.mxu0 0
      %1020 = vmatmul.mubr.bf16.gmra.mrb[0].mxu0 %v982
      %v1021 = vpop.f32.mrb[0].mxu0
      %v1022 = vadd.f32 0.0, %v1021
      %v1023 = vpop.f32.mrb[0].mxu0
      %v1024 = vpop.f32.mrb[0].mxu0
      %v1025 = vpop.f32.mrb[0].mxu0
      %1026 = vdwg.mxu0
      %v1027 = vsel %vm751, %v1022, -1e+30
      %v1028 = vsel %vm804, %v1027, -inf
      %1029 = vmax.xlane.f32.xlu0 %v1028
      %v1030 = vpop.xlane.xlu0 %1029
      %v1031 = vsub.f32 %v1027, %v1030
      %v1032 = vmul.f32 %v1031, 1.442695
      %v1033 = vpow.pop %v1032
      %v1034 = vsel %vm804, %v1033, 0.0
      %1035 = vadd.xlane.f32.xlu0 %v1034
      %v1036 = vpop.xlane.xlu0 %1035
      %v1037 = vrcp.pop %v1036
      %v1038 = vmul.f32 %v1033, %v1037
      %v1039 = vpack.c.bf16 %v1038, %v1038
      %1040 = vrot.lane.b32.xlu0 %v752, 56
      %v1041 = vpop.permute.xlu0 %1040
      %v1043 = vsel %vm804, %v1039, 0
      %v1046 = vsel %vm822, %v1041, 0
      %1048 = vmatprep.subr.bf16.mxu0 0
      %1049 = vmatpush1.bf16.msra.mxu0 %v1046
      %1050 = vmatprep.subr.bf16.mxu0 0
      %1051 = vmatpush1.bf16.msra.mxu0 0
      %1052 = vmatprep.subr.bf16.mxu0 0
      %1053 = vmatpush1.bf16.msra.mxu0 0
      %1054 = vmatprep.subr.bf16.mxu0 0
      %1055 = vmatpush1.bf16.msra.mxu0 0
      %1056 = vmatprep.subr.bf16.mxu0 0
      %1057 = vmatpush1.bf16.msra.mxu0 0
      %1058 = vmatprep.subr.bf16.mxu0 0
      %1059 = vmatpush1.bf16.msra.mxu0 0
      %1060 = vmatprep.subr.bf16.mxu0 0
      %1061 = vmatpush1.bf16.msra.mxu0 0
      %1062 = vmatprep.subr.bf16.mxu0 0
      %1063 = vmatpush1.bf16.msra.mxu0 0
      %1064 = vmatprep.subr.bf16.mxu0 0
      %1065 = vmatpush1.bf16.msra.mxu0 0
      %1066 = vmatprep.subr.bf16.mxu0 0
      %1067 = vmatpush1.bf16.msra.mxu0 0
      %1068 = vmatprep.subr.bf16.mxu0 0
      %1069 = vmatpush1.bf16.msra.mxu0 0
      %1070 = vmatprep.subr.bf16.mxu0 0
      %1071 = vmatpush1.bf16.msra.mxu0 0
      %1072 = vmatprep.subr.bf16.mxu0 0
      %1073 = vmatpush1.bf16.msra.mxu0 0
      %1074 = vmatprep.subr.bf16.mxu0 0
      %1075 = vmatpush1.bf16.msra.mxu0 0
      %1076 = vmatprep.subr.bf16.mxu0 0
      %1077 = vmatpush1.bf16.msra.mxu0 0
      %1078 = vmatprep.subr.bf16.mxu0 0
      %1079 = vmatpush1.bf16.msra.mxu0 0
      %1080 = vmatprep.mubr.bf16.mxu0 0
      %1081 = vmatmul.mubr.bf16.gmra.mrb[0].mxu0 %v1043
      %v1082 = vpop.f32.mrb[0].mxu0
      %v1083 = vadd.f32 0.0, %v1082
      %v1084 = vpop.f32.mrb[0].mxu0
      %v1085 = vpop.f32.mrb[0].mxu0
      %v1086 = vpop.f32.mrb[0].mxu0
      %1087 = vdwg.mxu0
      %1088 = vrot.lane.b32.xlu0 %v752, 116
      %v1089 = vpop.permute.xlu0 %1088
      %1090 = vrot.lane.b32.xlu0 %v752, 84
      %v1091 = vpop.permute.xlu0 %1090
      %v1093 = vsel %vm756, %v1089, 0
      %v1096 = vsel %vm756, %v1091, 0
      %1098 = vmatprep.subr.bf16.mxu0 0
      %1099 = vmatpush1.bf16.xpose.msra.mxu0 %v1096
      %1100 = vmatprep.subr.bf16.mxu0 0
      %1101 = vmatpush1.bf16.xpose.msra.mxu0 0
      %1102 = vmatprep.subr.bf16.mxu0 0
      %1103 = vmatpush1.bf16.xpose.msra.mxu0 0
      %1104 = vmatprep.subr.bf16.mxu0 0
      %1105 = vmatpush1.bf16.xpose.msra.mxu0 0
      %1106 = vmatprep.subr.bf16.mxu0 0
      %1107 = vmatpush1.bf16.xpose.msra.mxu0 0
      %1108 = vmatprep.subr.bf16.mxu0 0
      %1109 = vmatpush1.bf16.xpose.msra.mxu0 0
      %1110 = vmatprep.subr.bf16.mxu0 0
      %1111 = vmatpush1.bf16.xpose.msra.mxu0 0
      %1112 = vmatprep.subr.bf16.mxu0 0
      %1113 = vmatpush1.bf16.xpose.msra.mxu0 0
      %1114 = vmatprep.subr.bf16.mxu0 0
      %1115 = vmatpush1.bf16.xpose.msra.mxu0 0
      %1116 = vmatprep.subr.bf16.mxu0 0
      %1117 = vmatpush1.bf16.xpose.msra.mxu0 0
      %1118 = vmatprep.subr.bf16.mxu0 0
      %1119 = vmatpush1.bf16.xpose.msra.mxu0 0
      %1120 = vmatprep.subr.bf16.mxu0 0
      %1121 = vmatpush1.bf16.xpose.msra.mxu0 0
      %1122 = vmatprep.subr.bf16.mxu0 0
      %1123 = vmatpush1.bf16.xpose.msra.mxu0 0
      %1124 = vmatprep.subr.bf16.mxu0 0
      %1125 = vmatpush1.bf16.xpose.msra.mxu0 0
      %1126 = vmatprep.subr.bf16.mxu0 0
      %1127 = vmatpush1.bf16.xpose.msra.mxu0 0
      %1128 = vmatprep.subr.bf16.mxu0 0
      %1129 = vmatpush1.bf16.xpose.msra.mxu0 0
      %1130 = vmatprep.mubr.bf16.mxu0 0
      %1131 = vmatmul.mubr.bf16.gmra.mrb[0].mxu0 %v1093
      %v1132 = vpop.f32.mrb[0].mxu0
      %v1133 = vadd.f32 0.0, %v1132
      %v1134 = vpop.f32.mrb[0].mxu0
      %v1135 = vpop.f32.mrb[0].mxu0
      %v1136 = vpop.f32.mrb[0].mxu0
      %1137 = vdwg.mxu0
      %v1138 = vsel %vm751, %v1133, -1e+30
      %v1139 = vsel %vm804, %v1138, -inf
      %1140 = vmax.xlane.f32.xlu0 %v1139
      %v1141 = vpop.xlane.xlu0 %1140
      %v1142 = vsub.f32 %v1138, %v1141
      %v1143 = vmul.f32 %v1142, 1.442695
      %v1144 = vpow.pop %v1143
      %v1145 = vsel %vm804, %v1144, 0.0
      %1146 = vadd.xlane.f32.xlu0 %v1145
      %v1147 = vpop.xlane.xlu0 %1146
      %v1148 = vrcp.pop %v1147
      %v1149 = vmul.f32 %v1144, %v1148
      %v1150 = vpack.c.bf16 %v1149, %v1149
      %1151 = vrot.lane.b32.xlu0 %v752, 52
      %v1152 = vpop.permute.xlu0 %1151
      %v1154 = vsel %vm804, %v1150, 0
      %v1157 = vsel %vm822, %v1152, 0
      %1159 = vmatprep.subr.bf16.mxu0 0
      %1160 = vmatpush1.bf16.msra.mxu0 %v1157
      %1161 = vmatprep.subr.bf16.mxu0 0
      %1162 = vmatpush1.bf16.msra.mxu0 0
      %1163 = vmatprep.subr.bf16.mxu0 0
      %1164 = vmatpush1.bf16.msra.mxu0 0
      %1165 = vmatprep.subr.bf16.mxu0 0
      %1166 = vmatpush1.bf16.msra.mxu0 0
      %1167 = vmatprep.subr.bf16.mxu0 0
      %1168 = vmatpush1.bf16.msra.mxu0 0
      %1169 = vmatprep.subr.bf16.mxu0 0
      %1170 = vmatpush1.bf16.msra.mxu0 0
      %1171 = vmatprep.subr.bf16.mxu0 0
      %1172 = vmatpush1.bf16.msra.mxu0 0
      %1173 = vmatprep.subr.bf16.mxu0 0
      %1174 = vmatpush1.bf16.msra.mxu0 0
      %1175 = vmatprep.subr.bf16.mxu0 0
      %1176 = vmatpush1.bf16.msra.mxu0 0
      %1177 = vmatprep.subr.bf16.mxu0 0
      %1178 = vmatpush1.bf16.msra.mxu0 0
      %1179 = vmatprep.subr.bf16.mxu0 0
      %1180 = vmatpush1.bf16.msra.mxu0 0
      %1181 = vmatprep.subr.bf16.mxu0 0
      %1182 = vmatpush1.bf16.msra.mxu0 0
      %1183 = vmatprep.subr.bf16.mxu0 0
      %1184 = vmatpush1.bf16.msra.mxu0 0
      %1185 = vmatprep.subr.bf16.mxu0 0
      %1186 = vmatpush1.bf16.msra.mxu0 0
      %1187 = vmatprep.subr.bf16.mxu0 0
      %1188 = vmatpush1.bf16.msra.mxu0 0
      %1189 = vmatprep.subr.bf16.mxu0 0
      %1190 = vmatpush1.bf16.msra.mxu0 0
      %1191 = vmatprep.mubr.bf16.mxu0 0
      %1192 = vmatmul.mubr.bf16.gmra.mrb[0].mxu0 %v1154
      %v1193 = vpop.f32.mrb[0].mxu0
      %v1194 = vadd.f32 0.0, %v1193
      %v1195 = vpop.f32.mrb[0].mxu0
      %v1196 = vpop.f32.mrb[0].mxu0
      %v1197 = vpop.f32.mrb[0].mxu0
      %1198 = vdwg.mxu0
      %1199 = vrot.lane.b32.xlu0 %v752, 112
      %v1200 = vpop.permute.xlu0 %1199
      %1201 = vrot.lane.b32.xlu0 %v752, 80
      %v1202 = vpop.permute.xlu0 %1201
      %v1204 = vsel %vm756, %v1200, 0
      %v1207 = vsel %vm756, %v1202, 0
      %1209 = vmatprep.subr.bf16.mxu0 0
      %1210 = vmatpush1.bf16.xpose.msra.mxu0 %v1207
      %1211 = vmatprep.subr.bf16.mxu0 0
      %1212 = vmatpush1.bf16.xpose.msra.mxu0 0
      %1213 = vmatprep.subr.bf16.mxu0 0
      %1214 = vmatpush1.bf16.xpose.msra.mxu0 0
      %1215 = vmatprep.subr.bf16.mxu0 0
      %1216 = vmatpush1.bf16.xpose.msra.mxu0 0
      %1217 = vmatprep.subr.bf16.mxu0 0
      %1218 = vmatpush1.bf16.xpose.msra.mxu0 0
      %1219 = vmatprep.subr.bf16.mxu0 0
      %1220 = vmatpush1.bf16.xpose.msra.mxu0 0
      %1221 = vmatprep.subr.bf16.mxu0 0
      %1222 = vmatpush1.bf16.xpose.msra.mxu0 0
      %1223 = vmatprep.subr.bf16.mxu0 0
      %1224 = vmatpush1.bf16.xpose.msra.mxu0 0
      %1225 = vmatprep.subr.bf16.mxu0 0
      %1226 = vmatpush1.bf16.xpose.msra.mxu0 0
      %1227 = vmatprep.subr.bf16.mxu0 0
      %1228 = vmatpush1.bf16.xpose.msra.mxu0 0
      %1229 = vmatprep.subr.bf16.mxu0 0
      %1230 = vmatpush1.bf16.xpose.msra.mxu0 0
      %1231 = vmatprep.subr.bf16.mxu0 0
      %1232 = vmatpush1.bf16.xpose.msra.mxu0 0
      %1233 = vmatprep.subr.bf16.mxu0 0
      %1234 = vmatpush1.bf16.xpose.msra.mxu0 0
      %1235 = vmatprep.subr.bf16.mxu0 0
      %1236 = vmatpush1.bf16.xpose.msra.mxu0 0
      %1237 = vmatprep.subr.bf16.mxu0 0
      %1238 = vmatpush1.bf16.xpose.msra.mxu0 0
      %1239 = vmatprep.subr.bf16.mxu0 0
      %1240 = vmatpush1.bf16.xpose.msra.mxu0 0
      %1241 = vmatprep.mubr.bf16.mxu0 0
      %1242 = vmatmul.mubr.bf16.gmra.mrb[0].mxu0 %v1204
      %v1243 = vpop.f32.mrb[0].mxu0
      %v1244 = vadd.f32 0.0, %v1243
      %v1245 = vpop.f32.mrb[0].mxu0
      %v1246 = vpop.f32.mrb[0].mxu0
      %v1247 = vpop.f32.mrb[0].mxu0
      %1248 = vdwg.mxu0
      %v1249 = vsel %vm751, %v1244, -1e+30
      %v1250 = vsel %vm804, %v1249, -inf
      %1251 = vmax.xlane.f32.xlu0 %v1250
      %v1252 = vpop.xlane.xlu0 %1251
      %v1253 = vsub.f32 %v1249, %v1252
      %v1254 = vmul.f32 %v1253, 1.442695
      %v1255 = vpow.pop %v1254
      %v1256 = vsel %vm804, %v1255, 0.0
      %1257 = vadd.xlane.f32.xlu0 %v1256
      %v1258 = vpop.xlane.xlu0 %1257
      %v1259 = vrcp.pop %v1258
      %v1260 = vmul.f32 %v1255, %v1259
      %v1261 = vpack.c.bf16 %v1260, %v1260
      %1262 = vrot.lane.b32.xlu0 %v752, 48
      %v1263 = vpop.permute.xlu0 %1262
      %v1265 = vsel %vm804, %v1261, 0
      %v1268 = vsel %vm822, %v1263, 0
      %1270 = vmatprep.subr.bf16.mxu0 0
      %1271 = vmatpush1.bf16.msra.mxu0 %v1268
      %1272 = vmatprep.subr.bf16.mxu0 0
      %1273 = vmatpush1.bf16.msra.mxu0 0
      %1274 = vmatprep.subr.bf16.mxu0 0
      %1275 = vmatpush1.bf16.msra.mxu0 0
      %1276 = vmatprep.subr.bf16.mxu0 0
      %1277 = vmatpush1.bf16.msra.mxu0 0
      %1278 = vmatprep.subr.bf16.mxu0 0
      %1279 = vmatpush1.bf16.msra.mxu0 0
      %1280 = vmatprep.subr.bf16.mxu0 0
      %1281 = vmatpush1.bf16.msra.mxu0 0
      %1282 = vmatprep.subr.bf16.mxu0 0
      %1283 = vmatpush1.bf16.msra.mxu0 0
      %1284 = vmatprep.subr.bf16.mxu0 0
      %1285 = vmatpush1.bf16.msra.mxu0 0
      %1286 = vmatprep.subr.bf16.mxu0 0
      %1287 = vmatpush1.bf16.msra.mxu0 0
      %1288 = vmatprep.subr.bf16.mxu0 0
      %1289 = vmatpush1.bf16.msra.mxu0 0
      %1290 = vmatprep.subr.bf16.mxu0 0
      %1291 = vmatpush1.bf16.msra.mxu0 0
      %1292 = vmatprep.subr.bf16.mxu0 0
      %1293 = vmatpush1.bf16.msra.mxu0 0
      %1294 = vmatprep.subr.bf16.mxu0 0
      %1295 = vmatpush1.bf16.msra.mxu0 0
      %1296 = vmatprep.subr.bf16.mxu0 0
      %1297 = vmatpush1.bf16.msra.mxu0 0
      %1298 = vmatprep.subr.bf16.mxu0 0
      %1299 = vmatpush1.bf16.msra.mxu0 0
      %1300 = vmatprep.subr.bf16.mxu0 0
      %1301 = vmatpush1.bf16.msra.mxu0 0
      %1302 = vmatprep.mubr.bf16.mxu0 0
      %1303 = vmatmul.mubr.bf16.gmra.mrb[0].mxu0 %v1265
      %v1304 = vpop.f32.mrb[0].mxu0
      %v1305 = vadd.f32 0.0, %v1304
      %v1306 = vpop.f32.mrb[0].mxu0
      %v1307 = vpop.f32.mrb[0].mxu0
      %v1308 = vpop.f32.mrb[0].mxu0
      %1309 = vdwg.mxu0
      %1310 = vrot.lane.b32.xlu0 %v752, 108
      %v1311 = vpop.permute.xlu0 %1310
      %1312 = vrot.lane.b32.xlu0 %v752, 76
      %v1313 = vpop.permute.xlu0 %1312
      %v1315 = vsel %vm756, %v1311, 0
      %v1318 = vsel %vm756, %v1313, 0
      %1320 = vmatprep.subr.bf16.mxu0 0
      %1321 = vmatpush1.bf16.xpose.msra.mxu0 %v1318
      %1322 = vmatprep.subr.bf16.mxu0 0
      %1323 = vmatpush1.bf16.xpose.msra.mxu0 0
      %1324 = vmatprep.subr.bf16.mxu0 0
      %1325 = vmatpush1.bf16.xpose.msra.mxu0 0
      %1326 = vmatprep.subr.bf16.mxu0 0
      %1327 = vmatpush1.bf16.xpose.msra.mxu0 0
      %1328 = vmatprep.subr.bf16.mxu0 0
      %1329 = vmatpush1.bf16.xpose.msra.mxu0 0
      %1330 = vmatprep.subr.bf16.mxu0 0
      %1331 = vmatpush1.bf16.xpose.msra.mxu0 0
      %1332 = vmatprep.subr.bf16.mxu0 0
      %1333 = vmatpush1.bf16.xpose.msra.mxu0 0
      %1334 = vmatprep.subr.bf16.mxu0 0
      %1335 = vmatpush1.bf16.xpose.msra.mxu0 0
      %1336 = vmatprep.subr.bf16.mxu0 0
      %1337 = vmatpush1.bf16.xpose.msra.mxu0 0
      %1338 = vmatprep.subr.bf16.mxu0 0
      %1339 = vmatpush1.bf16.xpose.msra.mxu0 0
      %1340 = vmatprep.subr.bf16.mxu0 0
      %1341 = vmatpush1.bf16.xpose.msra.mxu0 0
      %1342 = vmatprep.subr.bf16.mxu0 0
      %1343 = vmatpush1.bf16.xpose.msra.mxu0 0
      %1344 = vmatprep.subr.bf16.mxu0 0
      %1345 = vmatpush1.bf16.xpose.msra.mxu0 0
      %1346 = vmatprep.subr.bf16.mxu0 0
      %1347 = vmatpush1.bf16.xpose.msra.mxu0 0
      %1348 = vmatprep.subr.bf16.mxu0 0
      %1349 = vmatpush1.bf16.xpose.msra.mxu0 0
      %1350 = vmatprep.subr.bf16.mxu0 0
      %1351 = vmatpush1.bf16.xpose.msra.mxu0 0
      %1352 = vmatprep.mubr.bf16.mxu0 0
      %1353 = vmatmul.mubr.bf16.gmra.mrb[0].mxu0 %v1315
      %v1354 = vpop.f32.mrb[0].mxu0
      %v1355 = vadd.f32 0.0, %v1354
      %v1356 = vpop.f32.mrb[0].mxu0
      %v1357 = vpop.f32.mrb[0].mxu0
      %v1358 = vpop.f32.mrb[0].mxu0
      %1359 = vdwg.mxu0
      %v1360 = vsel %vm751, %v1355, -1e+30
      %v1361 = vsel %vm804, %v1360, -inf
      %1362 = vmax.xlane.f32.xlu0 %v1361
      %v1363 = vpop.xlane.xlu0 %1362
      %v1364 = vsub.f32 %v1360, %v1363
      %v1365 = vmul.f32 %v1364, 1.442695
      %v1366 = vpow.pop %v1365
      %v1367 = vsel %vm804, %v1366, 0.0
      %1368 = vadd.xlane.f32.xlu0 %v1367
      %v1369 = vpop.xlane.xlu0 %1368
      %v1370 = vrcp.pop %v1369
      %v1371 = vmul.f32 %v1366, %v1370
      %v1372 = vpack.c.bf16 %v1371, %v1371
      %1373 = vrot.lane.b32.xlu0 %v752, 44
      %v1374 = vpop.permute.xlu0 %1373
      %v1376 = vsel %vm804, %v1372, 0
      %v1379 = vsel %vm822, %v1374, 0
      %1381 = vmatprep.subr.bf16.mxu0 0
      %1382 = vmatpush1.bf16.msra.mxu0 %v1379
      %1383 = vmatprep.subr.bf16.mxu0 0
      %1384 = vmatpush1.bf16.msra.mxu0 0
      %1385 = vmatprep.subr.bf16.mxu0 0
      %1386 = vmatpush1.bf16.msra.mxu0 0
      %1387 = vmatprep.subr.bf16.mxu0 0
      %1388 = vmatpush1.bf16.msra.mxu0 0
      %1389 = vmatprep.subr.bf16.mxu0 0
      %1390 = vmatpush1.bf16.msra.mxu0 0
      %1391 = vmatprep.subr.bf16.mxu0 0
      %1392 = vmatpush1.bf16.msra.mxu0 0
      %1393 = vmatprep.subr.bf16.mxu0 0
      %1394 = vmatpush1.bf16.msra.mxu0 0
      %1395 = vmatprep.subr.bf16.mxu0 0
      %1396 = vmatpush1.bf16.msra.mxu0 0
      %1397 = vmatprep.subr.bf16.mxu0 0
      %1398 = vmatpush1.bf16.msra.mxu0 0
      %1399 = vmatprep.subr.bf16.mxu0 0
      %1400 = vmatpush1.bf16.msra.mxu0 0
      %1401 = vmatprep.subr.bf16.mxu0 0
      %1402 = vmatpush1.bf16.msra.mxu0 0
      %1403 = vmatprep.subr.bf16.mxu0 0
      %1404 = vmatpush1.bf16.msra.mxu0 0
      %1405 = vmatprep.subr.bf16.mxu0 0
      %1406 = vmatpush1.bf16.msra.mxu0 0
      %1407 = vmatprep.subr.bf16.mxu0 0
      %1408 = vmatpush1.bf16.msra.mxu0 0
      %1409 = vmatprep.subr.bf16.mxu0 0
      %1410 = vmatpush1.bf16.msra.mxu0 0
      %1411 = vmatprep.subr.bf16.mxu0 0
      %1412 = vmatpush1.bf16.msra.mxu0 0
      %1413 = vmatprep.mubr.bf16.mxu0 0
      %1414 = vmatmul.mubr.bf16.gmra.mrb[0].mxu0 %v1376
      %v1415 = vpop.f32.mrb[0].mxu0
      %v1416 = vadd.f32 0.0, %v1415
      %v1417 = vpop.f32.mrb[0].mxu0
      %v1418 = vpop.f32.mrb[0].mxu0
      %v1419 = vpop.f32.mrb[0].mxu0
      %1420 = vdwg.mxu0
      %1421 = vrot.lane.b32.xlu0 %v752, 104
      %v1422 = vpop.permute.xlu0 %1421
      %1423 = vrot.lane.b32.xlu0 %v752, 72
      %v1424 = vpop.permute.xlu0 %1423
      %v1426 = vsel %vm756, %v1422, 0
      %v1429 = vsel %vm756, %v1424, 0
      %1431 = vmatprep.subr.bf16.mxu0 0
      %1432 = vmatpush1.bf16.xpose.msra.mxu0 %v1429
      %1433 = vmatprep.subr.bf16.mxu0 0
      %1434 = vmatpush1.bf16.xpose.msra.mxu0 0
      %1435 = vmatprep.subr.bf16.mxu0 0
      %1436 = vmatpush1.bf16.xpose.msra.mxu0 0
      %1437 = vmatprep.subr.bf16.mxu0 0
      %1438 = vmatpush1.bf16.xpose.msra.mxu0 0
      %1439 = vmatprep.subr.bf16.mxu0 0
      %1440 = vmatpush1.bf16.xpose.msra.mxu0 0
      %1441 = vmatprep.subr.bf16.mxu0 0
      %1442 = vmatpush1.bf16.xpose.msra.mxu0 0
      %1443 = vmatprep.subr.bf16.mxu0 0
      %1444 = vmatpush1.bf16.xpose.msra.mxu0 0
      %1445 = vmatprep.subr.bf16.mxu0 0
      %1446 = vmatpush1.bf16.xpose.msra.mxu0 0
      %1447 = vmatprep.subr.bf16.mxu0 0
      %1448 = vmatpush1.bf16.xpose.msra.mxu0 0
      %1449 = vmatprep.subr.bf16.mxu0 0
      %1450 = vmatpush1.bf16.xpose.msra.mxu0 0
      %1451 = vmatprep.subr.bf16.mxu0 0
      %1452 = vmatpush1.bf16.xpose.msra.mxu0 0
      %1453 = vmatprep.subr.bf16.mxu0 0
      %1454 = vmatpush1.bf16.xpose.msra.mxu0 0
      %1455 = vmatprep.subr.bf16.mxu0 0
      %1456 = vmatpush1.bf16.xpose.msra.mxu0 0
      %1457 = vmatprep.subr.bf16.mxu0 0
      %1458 = vmatpush1.bf16.xpose.msra.mxu0 0
      %1459 = vmatprep.subr.bf16.mxu0 0
      %1460 = vmatpush1.bf16.xpose.msra.mxu0 0
      %1461 = vmatprep.subr.bf16.mxu0 0
      %1462 = vmatpush1.bf16.xpose.msra.mxu0 0
      %1463 = vmatprep.mubr.bf16.mxu0 0
      %1464 = vmatmul.mubr.bf16.gmra.mrb[0].mxu0 %v1426
      %v1465 = vpop.f32.mrb[0].mxu0
      %v1466 = vadd.f32 0.0, %v1465
      %v1467 = vpop.f32.mrb[0].mxu0
      %v1468 = vpop.f32.mrb[0].mxu0
      %v1469 = vpop.f32.mrb[0].mxu0
      %1470 = vdwg.mxu0
      %v1471 = vsel %vm751, %v1466, -1e+30
      %v1472 = vsel %vm804, %v1471, -inf
      %1473 = vmax.xlane.f32.xlu0 %v1472
      %v1474 = vpop.xlane.xlu0 %1473
      %v1475 = vsub.f32 %v1471, %v1474
      %v1476 = vmul.f32 %v1475, 1.442695
      %v1477 = vpow.pop %v1476
      %v1478 = vsel %vm804, %v1477, 0.0
      %1479 = vadd.xlane.f32.xlu0 %v1478
      %v1480 = vpop.xlane.xlu0 %1479
      %v1481 = vrcp.pop %v1480
      %v1482 = vmul.f32 %v1477, %v1481
      %v1483 = vpack.c.bf16 %v1482, %v1482
      %1484 = vrot.lane.b32.xlu0 %v752, 40
      %v1485 = vpop.permute.xlu0 %1484
      %v1487 = vsel %vm804, %v1483, 0
      %v1490 = vsel %vm822, %v1485, 0
      %1492 = vmatprep.subr.bf16.mxu0 0
      %1493 = vmatpush1.bf16.msra.mxu0 %v1490
      %1494 = vmatprep.subr.bf16.mxu0 0
      %1495 = vmatpush1.bf16.msra.mxu0 0
      %1496 = vmatprep.subr.bf16.mxu0 0
      %1497 = vmatpush1.bf16.msra.mxu0 0
      %1498 = vmatprep.subr.bf16.mxu0 0
      %1499 = vmatpush1.bf16.msra.mxu0 0
      %1500 = vmatprep.subr.bf16.mxu0 0
      %1501 = vmatpush1.bf16.msra.mxu0 0
      %1502 = vmatprep.subr.bf16.mxu0 0
      %1503 = vmatpush1.bf16.msra.mxu0 0
      %1504 = vmatprep.subr.bf16.mxu0 0
      %1505 = vmatpush1.bf16.msra.mxu0 0
      %1506 = vmatprep.subr.bf16.mxu0 0
      %1507 = vmatpush1.bf16.msra.mxu0 0
      %1508 = vmatprep.subr.bf16.mxu0 0
      %1509 = vmatpush1.bf16.msra.mxu0 0
      %1510 = vmatprep.subr.bf16.mxu0 0
      %1511 = vmatpush1.bf16.msra.mxu0 0
      %1512 = vmatprep.subr.bf16.mxu0 0
      %1513 = vmatpush1.bf16.msra.mxu0 0
      %1514 = vmatprep.subr.bf16.mxu0 0
      %1515 = vmatpush1.bf16.msra.mxu0 0
      %1516 = vmatprep.subr.bf16.mxu0 0
      %1517 = vmatpush1.bf16.msra.mxu0 0
      %1518 = vmatprep.subr.bf16.mxu0 0
      %1519 = vmatpush1.bf16.msra.mxu0 0
      %1520 = vmatprep.subr.bf16.mxu0 0
      %1521 = vmatpush1.bf16.msra.mxu0 0
      %1522 = vmatprep.subr.bf16.mxu0 0
      %1523 = vmatpush1.bf16.msra.mxu0 0
      %1524 = vmatprep.mubr.bf16.mxu0 0
      %1525 = vmatmul.mubr.bf16.gmra.mrb[0].mxu0 %v1487
      %v1526 = vpop.f32.mrb[0].mxu0
      %v1527 = vadd.f32 0.0, %v1526
      %v1528 = vpop.f32.mrb[0].mxu0
      %v1529 = vpop.f32.mrb[0].mxu0
      %v1530 = vpop.f32.mrb[0].mxu0
      %1531 = vdwg.mxu0
      %1532 = vrot.lane.b32.xlu0 %v752, 100
      %v1533 = vpop.permute.xlu0 %1532
      %1534 = vrot.lane.b32.xlu0 %v752, 68
      %v1535 = vpop.permute.xlu0 %1534
      %v1537 = vsel %vm756, %v1533, 0
      %v1540 = vsel %vm756, %v1535, 0
      %1542 = vmatprep.subr.bf16.mxu0 0
      %1543 = vmatpush1.bf16.xpose.msra.mxu0 %v1540
      %1544 = vmatprep.subr.bf16.mxu0 0
      %1545 = vmatpush1.bf16.xpose.msra.mxu0 0
      %1546 = vmatprep.subr.bf16.mxu0 0
      %1547 = vmatpush1.bf16.xpose.msra.mxu0 0
      %1548 = vmatprep.subr.bf16.mxu0 0
      %1549 = vmatpush1.bf16.xpose.msra.mxu0 0
      %1550 = vmatprep.subr.bf16.mxu0 0
      %1551 = vmatpush1.bf16.xpose.msra.mxu0 0
      %1552 = vmatprep.subr.bf16.mxu0 0
      %1553 = vmatpush1.bf16.xpose.msra.mxu0 0
      %1554 = vmatprep.subr.bf16.mxu0 0
      %1555 = vmatpush1.bf16.xpose.msra.mxu0 0
      %1556 = vmatprep.subr.bf16.mxu0 0
      %1557 = vmatpush1.bf16.xpose.msra.mxu0 0
      %1558 = vmatprep.subr.bf16.mxu0 0
      %1559 = vmatpush1.bf16.xpose.msra.mxu0 0
      %1560 = vmatprep.subr.bf16.mxu0 0
      %1561 = vmatpush1.bf16.xpose.msra.mxu0 0
      %1562 = vmatprep.subr.bf16.mxu0 0
      %1563 = vmatpush1.bf16.xpose.msra.mxu0 0
      %1564 = vmatprep.subr.bf16.mxu0 0
      %1565 = vmatpush1.bf16.xpose.msra.mxu0 0
      %1566 = vmatprep.subr.bf16.mxu0 0
      %1567 = vmatpush1.bf16.xpose.msra.mxu0 0
      %1568 = vmatprep.subr.bf16.mxu0 0
      %1569 = vmatpush1.bf16.xpose.msra.mxu0 0
      %1570 = vmatprep.subr.bf16.mxu0 0
      %1571 = vmatpush1.bf16.xpose.msra.mxu0 0
      %1572 = vmatprep.subr.bf16.mxu0 0
      %1573 = vmatpush1.bf16.xpose.msra.mxu0 0
      %1574 = vmatprep.mubr.bf16.mxu0 0
      %1575 = vmatmul.mubr.bf16.gmra.mrb[0].mxu0 %v1537
      %v1576 = vpop.f32.mrb[0].mxu0
      %v1577 = vadd.f32 0.0, %v1576
      %v1578 = vpop.f32.mrb[0].mxu0
      %v1579 = vpop.f32.mrb[0].mxu0
      %v1580 = vpop.f32.mrb[0].mxu0
      %1581 = vdwg.mxu0
      %v1582 = vsel %vm751, %v1577, -1e+30
      %v1583 = vsel %vm804, %v1582, -inf
      %1584 = vmax.xlane.f32.xlu0 %v1583
      %v1585 = vpop.xlane.xlu0 %1584
      %v1586 = vsub.f32 %v1582, %v1585
      %v1587 = vmul.f32 %v1586, 1.442695
      %v1588 = vpow.pop %v1587
      %v1589 = vsel %vm804, %v1588, 0.0
      %1590 = vadd.xlane.f32.xlu0 %v1589
      %v1591 = vpop.xlane.xlu0 %1590
      %v1592 = vrcp.pop %v1591
      %v1593 = vmul.f32 %v1588, %v1592
      %v1594 = vpack.c.bf16 %v1593, %v1593
      %1595 = vrot.lane.b32.xlu0 %v752, 36
      %v1596 = vpop.permute.xlu0 %1595
      %v1598 = vsel %vm804, %v1594, 0
      %v1601 = vsel %vm822, %v1596, 0
      %1603 = vmatprep.subr.bf16.mxu0 0
      %1604 = vmatpush1.bf16.msra.mxu0 %v1601
      %1605 = vmatprep.subr.bf16.mxu0 0
      %1606 = vmatpush1.bf16.msra.mxu0 0
      %1607 = vmatprep.subr.bf16.mxu0 0
      %1608 = vmatpush1.bf16.msra.mxu0 0
      %1609 = vmatprep.subr.bf16.mxu0 0
      %1610 = vmatpush1.bf16.msra.mxu0 0
      %1611 = vmatprep.subr.bf16.mxu0 0
      %1612 = vmatpush1.bf16.msra.mxu0 0
      %1613 = vmatprep.subr.bf16.mxu0 0
      %1614 = vmatpush1.bf16.msra.mxu0 0
      %1615 = vmatprep.subr.bf16.mxu0 0
      %1616 = vmatpush1.bf16.msra.mxu0 0
      %1617 = vmatprep.subr.bf16.mxu0 0
      %1618 = vmatpush1.bf16.msra.mxu0 0
      %1619 = vmatprep.subr.bf16.mxu0 0
      %1620 = vmatpush1.bf16.msra.mxu0 0
      %1621 = vmatprep.subr.bf16.mxu0 0
      %1622 = vmatpush1.bf16.msra.mxu0 0
      %1623 = vmatprep.subr.bf16.mxu0 0
      %1624 = vmatpush1.bf16.msra.mxu0 0
      %1625 = vmatprep.subr.bf16.mxu0 0
      %1626 = vmatpush1.bf16.msra.mxu0 0
      %1627 = vmatprep.subr.bf16.mxu0 0
      %1628 = vmatpush1.bf16.msra.mxu0 0
      %1629 = vmatprep.subr.bf16.mxu0 0
      %1630 = vmatpush1.bf16.msra.mxu0 0
      %1631 = vmatprep.subr.bf16.mxu0 0
      %1632 = vmatpush1.bf16.msra.mxu0 0
      %1633 = vmatprep.subr.bf16.mxu0 0
      %1634 = vmatpush1.bf16.msra.mxu0 0
      %1635 = vmatprep.mubr.bf16.mxu0 0
      %1636 = vmatmul.mubr.bf16.gmra.mrb[0].mxu0 %v1598
      %v1637 = vpop.f32.mrb[0].mxu0
      %v1638 = vadd.f32 0.0, %v1637
      %v1639 = vpop.f32.mrb[0].mxu0
      %v1640 = vpop.f32.mrb[0].mxu0
      %v1641 = vpop.f32.mrb[0].mxu0
      %1642 = vdwg.mxu0
      %1644 = vrot.lane.b32.xlu0 %v972, 4
      %v1645 = vpop.permute.xlu0 %1644
      %1648 = vrot.lane.b32.xlu0 %v1083, 8
      %v1649 = vpop.permute.xlu0 %1648
      %1652 = vrot.lane.b32.xlu0 %v1194, 12
      %v1653 = vpop.permute.xlu0 %1652
      %1656 = vrot.lane.b32.xlu0 %v1305, 16
      %v1657 = vpop.permute.xlu0 %1656
      %1660 = vrot.lane.b32.xlu0 %v1416, 20
      %v1661 = vpop.permute.xlu0 %1660
      %1664 = vrot.lane.b32.xlu0 %v1527, 24
      %v1665 = vpop.permute.xlu0 %1664
      %1668 = vrot.lane.b32.xlu0 %v1638, 28
      %v1669 = vpop.permute.xlu0 %1668
      %v1671 = vsel %vm756, %v861, %v1645
      %v1672 = vsel %vm804, %v1671, %v1649
      %vm1673 = vcmask 97280
      %v1674 = vsel %vm1673, %v1672, %v1653
      %vm1675 = vcmask 130048
      %v1676 = vsel %vm1675, %v1674, %v1657
      %vm1677 = vcmask 162816
      %v1678 = vsel %vm1677, %v1676, %v1661
      %vm1679 = vcmask 195584
      %v1680 = vsel %vm1679, %v1678, %v1665
      %vm1681 = vcmask 228352
      %v1682 = vsel %vm1681, %v1680, %v1669
      %v1683 = vpack.c.bf16 %v1682, %v1682
      %v1684 = vld [vmem:[%s610] sm:$0xf]
      %v1685 = vld [vmem:[%s610 + $0x4] sm:$0xf]
      %v1686 = vld [vmem:[%s610 + $0x8] sm:$0xf]
      %v1687 = vld [vmem:[%s610 + $0xc] sm:$0xf]
      %v1688 = vld [vmem:[%s613] sm:$0x1]
      %v1690 = vlaneseq
      %v1691 = vshrl.u32 %v1690, 7
      %v1692 = vsub.s32 0, %v1691
      %v1693 = vrot.slane %v1688, %v1692
      %v1699 = vunpack.c.l.b16 %v1684
      %v1700 = vunpack.c.l.b16 %v1685
      %v1701 = vunpack.c.l.b16 %v1686
      %v1702 = vunpack.c.l.b16 %v1687
      %v1703 = vpack.c.b16 %v1700, %v1699
      %v1704 = vpack.c.b16 %v1702, %v1701
      %v1708 = vsel %vm651, %v1683, 0
      %1710 = vmatprep.subr.bf16.mxu0 0
      %1711 = vmatpush1.bf16.msra.mxu0 %v1703
      %1712 = vmatprep.subr.bf16.mxu0 0
      %1713 = vmatpush1.bf16.msra.mxu0 %v1704
      %1714 = vmatprep.subr.bf16.mxu0 0
      %1715 = vmatpush1.bf16.msra.mxu0 0
      %1716 = vmatprep.subr.bf16.mxu0 0
      %1717 = vmatpush1.bf16.msra.mxu0 0
      %1718 = vmatprep.subr.bf16.mxu0 0
      %1719 = vmatpush1.bf16.msra.mxu0 0
      %1720 = vmatprep.subr.bf16.mxu0 0
      %1721 = vmatpush1.bf16.msra.mxu0 0
      %1722 = vmatprep.subr.bf16.mxu0 0
      %1723 = vmatpush1.bf16.msra.mxu0 0
      %1724 = vmatprep.subr.bf16.mxu0 0
      %1725 = vmatpush1.bf16.msra.mxu0 0
      %1726 = vmatprep.subr.bf16.mxu0 0
      %1727 = vmatpush1.bf16.msra.mxu0 0
      %1728 = vmatprep.subr.bf16.mxu0 0
      %1729 = vmatpush1.bf16.msra.mxu0 0
      %1730 = vmatprep.subr.bf16.mxu0 0
      %1731 = vmatpush1.bf16.msra.mxu0 0
      %1732 = vmatprep.subr.bf16.mxu0 0
      %1733 = vmatpush1.bf16.msra.mxu0 0
      %1734 = vmatprep.subr.bf16.mxu0 0
      %1735 = vmatpush1.bf16.msra.mxu0 0
      %1736 = vmatprep.subr.bf16.mxu0 0
      %1737 = vmatpush1.bf16.msra.mxu0 0
      %1738 = vmatprep.subr.bf16.mxu0 0
      %1739 = vmatpush1.bf16.msra.mxu0 0
      %1740 = vmatprep.subr.bf16.mxu0 0
      %1741 = vmatpush1.bf16.msra.mxu0 0
      %1742 = vmatprep.mubr.bf16.mxu0 0
      %1743 = vmatmul.mubr.bf16.gmra.mrb[0].mxu0 %v1708
      %v1744 = vpop.f32.mrb[0].mxu0
      %v1745 = vadd.f32 %v1693, %v1744
      %v1746 = vpop.f32.mrb[0].mxu0
      %v1747 = vpop.f32.mrb[0].mxu0
      %v1748 = vpop.f32.mrb[0].mxu0
      %1749 = vdwg.mxu0
      %v1750 = vadd.f32 %v648, %v1745
      %v1751 = vld [vmem:[%s616] sm:$0x1]
      %v1752 = vld [vmem:[%s619] sm:$0x1]
      %v1753 = vsel %vm651, %v1750, 0.0
      %1754 = vadd.xlane.f32.xlu0 %v1753
      %v1755 = vpop.xlane.xlu0 %1754
      %v1756 = vmul.f32 %v1755, %v655
      %v1757 = vsub.f32 %v1750, %v1756
      %v1758 = vmul.f32 %v1757, %v1757
      %v1759 = vsel %vm651, %v1758, 0.0
      %1760 = vadd.xlane.f32.xlu0 %v1759
      %v1761 = vpop.xlane.xlu0 %1760
      %v1762 = vmul.f32 %v1761, %v655
      %v1763 = vadd.f32 %v1762, 1e-05
      %v1764 = vrsqrt.pop %v1763
      %v1765 = vmul.f32 %v1757, %v1764
      %v1767 = vlaneseq
      %v1768 = vshrl.u32 %v1767, 7
      %v1769 = vsub.s32 0, %v1768
      %v1770 = vrot.slane %v1751, %v1769
      %v1772 = vmul.f32 %v1765, %v1770
      %v1774 = vlaneseq
      %v1775 = vshrl.u32 %v1774, 7
      %v1776 = vsub.s32 0, %v1775
      %v1777 = vrot.slane %v1752, %v1776
      %v1779 = vadd.f32 %v1772, %v1777
      %v1780 = vpack.c.bf16 %v1779, %v1779
      %v1781 = vld [vmem:[%s624] sm:$0xf]
      %v1782 = vld [vmem:[%s624 + $0x4] sm:$0xf]
      %v1783 = vld [vmem:[%s624 + $0x8] sm:$0xf]
      %v1784 = vld [vmem:[%s624 + $0xc] sm:$0xf]
      %v1785 = vld [vmem:[%s627] sm:$0x1]
      %v1787 = vlaneseq
      %v1788 = vshrl.u32 %v1787, 7
      %v1789 = vsub.s32 0, %v1788
      %v1790 = vrot.slane %v1785, %v1789
      %v1796 = vunpack.c.l.b16 %v1781
      %v1797 = vunpack.c.l.b16 %v1782
      %v1798 = vunpack.c.l.b16 %v1783
      %v1799 = vunpack.c.l.b16 %v1784
      %v1800 = vpack.c.b16 %v1797, %v1796
      %v1801 = vpack.c.b16 %v1799, %v1798
      %v1805 = vsel %vm651, %v1780, 0
      %1807 = vmatprep.subr.bf16.mxu0 0
      %1808 = vmatpush1.bf16.msra.mxu0 %v1800
      %1809 = vmatprep.subr.bf16.mxu0 0
      %1810 = vmatpush1.bf16.msra.mxu0 %v1801
      %1811 = vmatprep.subr.bf16.mxu0 0
      %1812 = vmatpush1.bf16.msra.mxu0 0
      %1813 = vmatprep.subr.bf16.mxu0 0
      %1814 = vmatpush1.bf16.msra.mxu0 0
      %1815 = vmatprep.subr.bf16.mxu0 0
      %1816 = vmatpush1.bf16.msra.mxu0 0
      %1817 = vmatprep.subr.bf16.mxu0 0
      %1818 = vmatpush1.bf16.msra.mxu0 0
      %1819 = vmatprep.subr.bf16.mxu0 0
      %1820 = vmatpush1.bf16.msra.mxu0 0
      %1821 = vmatprep.subr.bf16.mxu0 0
      %1822 = vmatpush1.bf16.msra.mxu0 0
      %1823 = vmatprep.subr.bf16.mxu0 0
      %1824 = vmatpush1.bf16.msra.mxu0 0
      %1825 = vmatprep.subr.bf16.mxu0 0
      %1826 = vmatpush1.bf16.msra.mxu0 0
      %1827 = vmatprep.subr.bf16.mxu0 0
      %1828 = vmatpush1.bf16.msra.mxu0 0
      %1829 = vmatprep.subr.bf16.mxu0 0
      %1830 = vmatpush1.bf16.msra.mxu0 0
      %1831 = vmatprep.subr.bf16.mxu0 0
      %1832 = vmatpush1.bf16.msra.mxu0 0
      %1833 = vmatprep.subr.bf16.mxu0 0
      %1834 = vmatpush1.bf16.msra.mxu0 0
      %1835 = vmatprep.subr.bf16.mxu0 0
      %1836 = vmatpush1.bf16.msra.mxu0 0
      %1837 = vmatprep.subr.bf16.mxu0 0
      %1838 = vmatpush1.bf16.msra.mxu0 0
      %1839 = vmatprep.mubr.bf16.mxu0 0
      %1840 = vmatmul.mubr.bf16.gmra.mrb[0].mxu0 %v1805
      %v1841 = vpop.f32.mrb[0].mxu0
      %v1842 = vadd.f32 %v1790, %v1841
      %v1843 = vpop.f32.mrb[0].mxu0
      %v1844 = vpop.f32.mrb[0].mxu0
      %v1845 = vpop.f32.mrb[0].mxu0
      %1846 = vdwg.mxu0
      %v1847 = vmul.f32 %v1842, 0.5
      %v1848 = vmul.f32 %v1842, 0.044715
      %v1849 = vmul.f32 %v1848, %v1842
      %v1850 = vmul.f32 %v1849, %v1842
      %v1851 = vadd.f32 %v1842, %v1850
      %v1852 = vmul.f32 %v1851, 0.7978846
      %v1853 = vtanh.pop %v1852
      %v1854 = vadd.f32 %v1853, 1.0
      %v1855 = vmul.f32 %v1847, %v1854
      %v1856 = vpack.c.bf16 %v1855, %v1855
      %v1857 = vld [vmem:[%s632] sm:$0xf]
      %v1858 = vld [vmem:[%s632 + $0x4] sm:$0xf]
      %v1859 = vld [vmem:[%s632 + $0x8] sm:$0xf]
      %v1860 = vld [vmem:[%s632 + $0xc] sm:$0xf]
      %v1861 = vld [vmem:[%s632 + $0x10] sm:$0xf]
      %v1862 = vld [vmem:[%s632 + $0x14] sm:$0xf]
      %v1863 = vld [vmem:[%s632 + $0x18] sm:$0xf]
      %v1864 = vld [vmem:[%s632 + $0x1c] sm:$0xf]
      %v1865 = vld [vmem:[%s632 + $0x20] sm:$0xf]
      %v1866 = vld [vmem:[%s632 + $0x24] sm:$0xf]
      %v1867 = vld [vmem:[%s632 + $0x28] sm:$0xf]
      %v1868 = vld [vmem:[%s632 + $0x2c] sm:$0xf]
      %v1869 = vld [vmem:[%s632 + $0x30] sm:$0xf]
      %v1870 = vld [vmem:[%s632 + $0x34] sm:$0xf]
      %v1871 = vld [vmem:[%s632 + $0x38] sm:$0xf]
      %v1872 = vld [vmem:[%s632 + $0x3c] sm:$0xf]
      %v1873 = vld [vmem:[%s635] sm:$0x1]
      %v1875 = vlaneseq
      %v1876 = vshrl.u32 %v1875, 7
      %v1877 = vsub.s32 0, %v1876
      %v1878 = vrot.slane %v1873, %v1877
      %v1896 = vunpack.c.l.b16 %v1857
      %v1897 = vunpack.c.l.b16 %v1858
      %v1898 = vunpack.c.l.b16 %v1859
      %v1899 = vunpack.c.l.b16 %v1860
      %v1900 = vunpack.c.l.b16 %v1861
      %v1901 = vunpack.c.l.b16 %v1862
      %v1902 = vunpack.c.l.b16 %v1863
      %v1903 = vunpack.c.l.b16 %v1864
      %v1904 = vunpack.c.l.b16 %v1865
      %v1905 = vunpack.c.l.b16 %v1866
      %v1906 = vunpack.c.l.b16 %v1867
      %v1907 = vunpack.c.l.b16 %v1868
      %v1908 = vunpack.c.l.b16 %v1869
      %v1909 = vunpack.c.l.b16 %v1870
      %v1910 = vunpack.c.l.b16 %v1871
      %v1911 = vunpack.c.l.b16 %v1872
      %v1912 = vpack.c.b16 %v1897, %v1896
      %v1913 = vpack.c.b16 %v1899, %v1898
      %v1914 = vpack.c.b16 %v1901, %v1900
      %v1915 = vpack.c.b16 %v1903, %v1902
      %v1916 = vpack.c.b16 %v1905, %v1904
      %v1917 = vpack.c.b16 %v1907, %v1906
      %v1918 = vpack.c.b16 %v1909, %v1908
      %v1919 = vpack.c.b16 %v1911, %v1910
      %1928 = vmatprep.subr.bf16.mxu0 0
      %1929 = vmatpush1.bf16.msra.mxu0 %v1912
      %1930 = vmatprep.subr.bf16.mxu0 0
      %1931 = vmatpush1.bf16.msra.mxu0 %v1913
      %1932 = vmatprep.subr.bf16.mxu0 0
      %1933 = vmatpush1.bf16.msra.mxu0 %v1914
      %1934 = vmatprep.subr.bf16.mxu0 0
      %1935 = vmatpush1.bf16.msra.mxu0 %v1915
      %1936 = vmatprep.subr.bf16.mxu0 0
      %1937 = vmatpush1.bf16.msra.mxu0 %v1916
      %1938 = vmatprep.subr.bf16.mxu0 0
      %1939 = vmatpush1.bf16.msra.mxu0 %v1917
      %1940 = vmatprep.subr.bf16.mxu0 0
      %1941 = vmatpush1.bf16.msra.mxu0 %v1918
      %1942 = vmatprep.subr.bf16.mxu0 0
      %1943 = vmatpush1.bf16.msra.mxu0 %v1919
      %1944 = vmatprep.subr.bf16.mxu0 0
      %1945 = vmatpush1.bf16.msra.mxu0 0
      %1946 = vmatprep.subr.bf16.mxu0 0
      %1947 = vmatpush1.bf16.msra.mxu0 0
      %1948 = vmatprep.subr.bf16.mxu0 0
      %1949 = vmatpush1.bf16.msra.mxu0 0
      %1950 = vmatprep.subr.bf16.mxu0 0
      %1951 = vmatpush1.bf16.msra.mxu0 0
      %1952 = vmatprep.subr.bf16.mxu0 0
      %1953 = vmatpush1.bf16.msra.mxu0 0
      %1954 = vmatprep.subr.bf16.mxu0 0
      %1955 = vmatpush1.bf16.msra.mxu0 0
      %1956 = vmatprep.subr.bf16.mxu0 0
      %1957 = vmatpush1.bf16.msra.mxu0 0
      %1958 = vmatprep.subr.bf16.mxu0 0
      %1959 = vmatpush1.bf16.msra.mxu0 0
      %1960 = vmatprep.mubr.bf16.mxu0 0
      %1961 = vmatmul.mubr.bf16.gmra.mrb[0].mxu0 %v1856
      %v1962 = vpop.f32.mrb[0].mxu0
      %v1963 = vadd.f32 %v1878, %v1962
      %v1964 = vpop.f32.mrb[0].mxu0
      %v1965 = vpop.f32.mrb[0].mxu0
      %v1966 = vpop.f32.mrb[0].mxu0
      %1967 = vdwg.mxu0
      %v1968 = vadd.f32 %v1750, %v1963
      %1969 = vst.msk [vmem:[%s639] sm:$0xff] %vm651, %v1968
      %p1970 = scmp.lt.s32.totalorder %s28, 1
      %s1971 = scalar_select %p1970, %s28, 1
      %s1972 = smul.addr %s1971, 8
      %s1973 = scalar_lea.vmem %s13, %s1972
      // Predicated region
      $region77: #{gpt_forward.2} parent=71 // pred_check
        %p1974 = pneg %p392
      $region78: #{gpt_forward.2} parent=71 // pred_check_branch
        %1976 = sbr.rel (%p1974) target = $region80
      $region79: #{gpt_forward.2} parent=71 // pred_region
        _
      $region80: #{gpt_forward.2} parent=71 // pred_fallthru
        _
    $region72: #{gpt_forward.2} parent=5 // pred_fallthru
      _
    %p1977 = scmp.le.s32.totalorder 2, %s19
    // Predicated region
    $region81: #{gpt_forward.2} parent=5 // pred_check
      %p1978 = pneg %p1977
    $region82: #{gpt_forward.2} parent=5 // pred_check_branch
      %1980 = sbr.rel (%p1978) target = $region84
    $region83: #{gpt_forward.2} parent=5 // pred_region
      %s1981 = ssub.s32 %s19, 2
      // Predicated region
      $region85: #{gpt_forward.2} parent=83 // pred_check
        %p1982 = pneg %p398
      $region86: #{gpt_forward.2} parent=83 // pred_check_branch
        %1984 = sbr.rel (%p1982) target = $region88
      $region87: #{gpt_forward.2} parent=83 // pred_region
        %p1985 = scmp.lt.s32.totalorder %s30, 1
        %s1986 = scalar_select %p1985, %s30, 1
        %s1987 = smul.addr %s1986, 8
        %s1988 = scalar_lea.vmem %s13, %s1987
      $region88: #{gpt_forward.2} parent=83 // pred_fallthru
        _
    $region84: #{gpt_forward.2} parent=5 // pred_fallthru
      _
  $region6: #{gpt_forward.2} parent=0 // loop_footer
    %s23 = sadd.s32 1, %s19
  $region7: #{gpt_forward.2} parent=0 // loop_footer_branch
    %18 = sbr.rel target = $region3
  $region8: #{gpt_forward.2} parent=0 // loop_exit
    _

</llo_original>
